<compile_context>
chip_gen: v7x
topology: tpu7x:2x2x1
jax: 0.10.0
libtpu: 0.0.40
codegen_flags: <defaults>
</compile_context>

<pallas_src>
import functools

import numpy as np
import jax
import jax.numpy as jnp
from jax.experimental import pallas as pl
from jax.experimental.pallas import tpu as pltpu


# ----------------------------------------------------------------------------
# Host-side builders for the structured matrices
# ----------------------------------------------------------------------------

def bilinear_time_matrix(t_in, t_out):
    """Row-resize matrix reproducing F.interpolate(mode='bilinear',
    align_corners=False) along time; width (== num_joint) resize is identity."""
    Wm = np.zeros((t_out, t_in), dtype=np.float32)
    scale = t_in / t_out
    for t in range(t_out):
        src = max((t + 0.5) * scale - 0.5, 0.0)
        i0 = min(int(np.floor(src)), t_in - 1)
        i1 = min(i0 + 1, t_in - 1)
        lam = src - i0
        Wm[t, i0] += 1.0 - lam
        Wm[t, i1] += lam
    return Wm


def time_diff_matrix(t):
    D = np.zeros((t - 1, t), dtype=np.float32)
    for i in range(t - 1):
        D[i, i] = -1.0
        D[i, i + 1] = 1.0
    return D


def conv_col_matrix(w, k, r):
    """Column-space matrix for kernel-row r of a torch-layout conv weight
    k: (Cout, Cin, kh, kw), acting on the (H, W*Cin) layout, padding kw//2."""
    cout, cin, _, kw = k.shape
    m = np.zeros((w * cin, w * cout), dtype=np.float32)
    for wo in range(w):
        for dx in range(kw):
            wi = wo + dx - (kw // 2)
            if 0 <= wi < w:
                m[wi * cin:(wi + 1) * cin, wo * cout:(wo + 1) * cout] += k[:, :, r, dx].T
    return m


def pool_col_even_matrix(w, c):
    """(W*C, (W//2)*C) even-w column compaction (applied after the column pair-max)."""
    ce = np.zeros((w * c, (w // 2) * c), dtype=np.float32)
    for i in range(w // 2):
        for ch in range(c):
            ce[(2 * i) * c + ch, i * c + ch] = 1.0
    return ce


def even_row_select_matrix(rows):
    P = np.zeros((rows // 2, rows), dtype=np.float32)
    P[np.arange(rows // 2), 2 * np.arange(rows // 2)] = 1.0
    return P


def chw_permute_matrix(w_old, c_old):
    """Column permutation realizing NCHW permute(0,3,2,1): col v*C+ws -> ws*W+v."""
    p = np.zeros((w_old * c_old, c_old * w_old), dtype=np.float32)
    for v in range(w_old):
        for ws in range(c_old):
            p[v * c_old + ws, ws * w_old + v] = 1.0
    return p


# ----------------------------------------------------------------------------
# Parameter init (torch layout), rounded once to bf16 (the MXU operand dtype)
# ----------------------------------------------------------------------------

def init_params(key, *, in_channel, num_joint, out_channel, window_size, seq_len, num_class):
    C, V, OC, WS, T = in_channel, num_joint, out_channel, window_size, seq_len
    ks = jax.random.split(key, 8)

    def winit(k, shape, fan_in):
        w = np.asarray(jax.random.normal(k, shape, jnp.float32)) / np.sqrt(fan_in)
        # round once to bf16 so the fused kernel and the XLA reference share the
        # exact same effective weights
        return np.asarray(jnp.asarray(w, jnp.bfloat16)).astype(np.float32)

    raw = {
        'K1': winit(ks[0], (OC, C, 1, 1), C),                   'b1': np.zeros(OC, np.float32),
        'K2': winit(ks[1], (WS, OC, 3, 1), OC * 3),             'b2': np.zeros(WS, np.float32),
        'K3': winit(ks[2], (OC // 2, V, 3, 3), V * 9),          'b3': np.zeros(OC // 2, np.float32),
        'K4': winit(ks[3], (OC, OC // 2, 3, 3), (OC // 2) * 9), 'b4': np.zeros(OC, np.float32),
        'K5': winit(ks[4], (2 * OC, OC, 3, 3), OC * 9),         'b5': np.zeros(2 * OC, np.float32),
        'K6': winit(ks[5], (4 * OC, 2 * OC, 3, 3), 2 * OC * 9), 'b6': np.zeros(4 * OC, np.float32),
    }
    F7 = 4 * OC * (WS // 16) * (T // 16)
    raw['W7'] = winit(ks[6], (F7, 512), F7)
    raw['b7'] = np.zeros(512, np.float32)
    raw['W8'] = winit(ks[7], (512, num_class), 512)
    raw['b8'] = np.zeros(num_class, np.float32)
    raw['Wt'] = bilinear_time_matrix(T - 1, T)
    return raw


# ----------------------------------------------------------------------------
# Build the packed constant slabs + the static op plan the fused kernel executes
# ----------------------------------------------------------------------------

def pack_constants(raw, *, B, C, V, T, OC, WS, num_class):
    assert B * T <= 128, "the block-diagonal time matrix must fit 128 lanes"

    blocks, index = [], {}

    def addA(name, m):
        m = np.asarray(m, np.float32)
        r, c = m.shape
        assert c <= 128, (name, m.shape)
        pad = (-r) % 16                                # bf16 sublane packing alignment
        blk = np.zeros((r + pad, 128), np.float32)
        blk[:r, :c] = m
        off = sum(b.shape[0] for b in blocks)
        blocks.append(blk)
        index[name] = (off, r, c)
        return index[name]

    bias_rows = np.zeros((8, 128), np.float32)
    n_bias = 0

    def addbias(v):
        nonlocal n_bias
        i = n_bias
        bias_rows[i, :v.shape[0]] = v
        n_bias += 1
        return i

    plan = []

    # temporal diff + bilinear time-resize, block-diagonal over the B stacked samples
    L1 = raw['Wt'] @ time_diff_matrix(T)                                   # (T, T)
    plan.append(('lmul', addA('L', np.kron(np.eye(B, dtype=np.float32), L1))))

    # conv1m (1x1) + ReLU
    plan.append(('conv', addA('M1', conv_col_matrix(V, raw['K1'], 0)),
                 addbias(np.tile(raw['b1'], V)), T, 1, True))

    # conv2m (3x1), NCHW permute(0,3,2,1) folded into its matrices and bias
    P = chw_permute_matrix(V, WS)
    M2 = np.vstack([conv_col_matrix(V, raw['K2'], r) @ P for r in range(3)])
    plan.append(('conv', addA('M2', M2),
                 addbias(np.tile(raw['b2'], V) @ P), T, 3, False))

    H, W_ = T, WS

    def add_pool(name, H, W_, Cc):
        plan.append(('rowpool', addA(name, even_row_select_matrix(B * H))))
        plan.append(('colmax', Cc))
        return H // 2, W_ // 2, pool_col_even_matrix(W_, Cc)

    # conv3m (3x3) + pool
    M3 = np.vstack([conv_col_matrix(W_, raw['K3'], r) for r in range(3)])
    plan.append(('conv', addA('M3', M3), addbias(np.tile(raw['b3'], W_)), H, 3, False))
    Cc = OC // 2
    H, W_, ce = add_pool('P1', H, W_, Cc)

    # conv4m (3x3, dropout2d = identity) + pool; column compaction folded in
    M4 = np.vstack([ce @ conv_col_matrix(W_, raw['K4'], r) for r in range(3)])
    plan.append(('conv', addA('M4', M4), addbias(np.tile(raw['b4'], W_)), H, 3, False))
    Cc = OC
    H, W_, ce = add_pool('P2', H, W_, Cc)

    # conv5 (3x3) + ReLU + pool
    M5 = np.vstack([ce @ conv_col_matrix(W_, raw['K5'], r) for r in range(3)])
    plan.append(('conv', addA('M5', M5), addbias(np.tile(raw['b5'], W_)), H, 3, True))
    Cc = 2 * OC
    H, W_, ce = add_pool('P3', H, W_, Cc)

    # conv6 (3x3) + ReLU + pool
    M6 = np.vstack([ce @ conv_col_matrix(W_, raw['K6'], r) for r in range(3)])
    plan.append(('conv', addA('M6', M6), addbias(np.tile(raw['b6'], W_)), H, 3, True))
    Cc = 4 * OC
    H, W_, ce = add_pool('P4', H, W_, Cc)

    # fc7: torch flatten order (c, h, w) -> our (w, c) lane order, last pool's
    # column compaction folded into the weight.
    # TODO(synk): configs with seq_len//16 > 1 need a per-row fc7 accumulation.
    assert H == 1, "fused fc7 path assumes seq_len // 16 == 1"
    w7r = np.zeros((W_ * Cc, 512), np.float32)
    for w in range(W_):
        for c_ in range(Cc):
            w7r[w * Cc + c_, :] = raw['W7'][c_ * W_ + w, :]
    w7_folded = ce @ w7r                                            # (pre-pool lanes, 512)
    plan.append(('fc7',))

    # fc8, classes padded to 128 lanes so the final store is unmasked
    W8p = np.zeros((512, 128), np.float32)
    W8p[:, :num_class] = raw['W8']
    b8p = np.zeros(128, np.float32)
    b8p[:num_class] = raw['b8']
    plan.append(('fc8', addA('W8', W8p), addbias(b8p)))

    packed = (
        jnp.asarray(np.concatenate(blocks, axis=0), dtype=jnp.bfloat16),   # slab A (all 128-wide mats)
        jnp.asarray(w7_folded, dtype=jnp.bfloat16),                        # fc7 weight (128, 512)
        jnp.asarray(bias_rows, dtype=jnp.float32),                         # 128-wide biases
        jnp.asarray(raw['b7'][None, :], dtype=jnp.float32),                # fc7 bias (1, 512)
    )
    return packed, tuple(plan)


# ----------------------------------------------------------------------------
# The fused Pallas kernel
# ----------------------------------------------------------------------------

def hcn_kernel(x_ref, slabA_ref, w7_ref, biasA_ref, b7_ref, out_ref, *, plan):
    def mat(entry):                      # static sub-view of the packed bf16 slab
        off, r, c = entry
        return slabA_ref[off:off + r, 0:c]

    def bias(i):
        return biasA_ref[i:i + 1, :]

    def mm(u, v):                        # bf16 MXU operands, f32 accumulate
        return jnp.dot(u.astype(jnp.bfloat16), v.astype(jnp.bfloat16),
                       preferred_element_type=jnp.float32)

    a = x_ref[...]                                   # (B*T, V*C) f32, B samples stacked on rows
    for op in plan:
        kind = op[0]
        if kind == 'lmul':                           # temporal diff + bilinear resize
            a = mm(mat(op[1]), a)
        elif kind == 'conv':                         # conv as ONE K=3*W*Cin GEMM
            _, me, bi, H, kh, relu = op
            if kh == 1:
                src = a
            else:
                rows = a.shape[0]
                up = pltpu.roll(a, shift=rows - 1, axis=0)      # up[r] = a[r + 1]
                dn = pltpu.roll(a, shift=1, axis=0)             # dn[r] = a[r - 1]
                rr = jax.lax.broadcasted_iota(jnp.int32, a.shape, 0)
                up = jnp.where((rr % H) != (H - 1), up, 0.0)    # per-sample zero padding
                dn = jnp.where((rr % H) != 0, dn, 0.0)
                src = jnp.concatenate([dn, a, up], axis=-1)
            acc = mm(src, mat(me)) + bias(bi)
            a = jnp.maximum(acc, 0.0) if relu else acc
        elif kind == 'rowpool':                      # MaxPool rows: roll+max, one select GEMM
            rows = a.shape[0]
            m = jnp.maximum(a, pltpu.roll(a, shift=rows - 1, axis=0))
            a = mm(mat(op[1]), m)
        elif kind == 'colmax':                       # MaxPool cols: roll+max; compaction is
            ncols = a.shape[1]                       # folded into the next layer's matrix
            a = jnp.maximum(a, pltpu.roll(a, shift=ncols - op[1], axis=1))
        elif kind == 'fc7':
            a = jnp.maximum(mm(a, w7_ref[...]) + b7_ref[0:1, :], 0.0)
        elif kind == 'fc8':
            a = mm(a, mat(op[1])) + bias(op[2])
    out_ref[...] = a


def hcn_forward(x, packed, *, plan, B, num_class):
    N, C, T, V, M = x.shape
    assert N % B == 0, "pad the batch to a multiple of the per-step block"
    # person index 0 only (num_person=1); motion branch only (motion_only=True)
    xin = jnp.transpose(x[..., 0].astype(jnp.float32), (0, 2, 3, 1)).reshape(N * T, V * C)
    slabA, w7, biasA, b7 = packed

    kernel = functools.partial(hcn_kernel, plan=plan)
    out = pl.pallas_call(
        kernel,
        grid=(N // B,),
        in_specs=[
            pl.BlockSpec((B * T, V * C), lambda n: (n, 0)),     # B samples stacked on sublanes
            pl.BlockSpec(slabA.shape, lambda n: (0, 0)),        # constant slabs, fetched once
            pl.BlockSpec(w7.shape, lambda n: (0, 0)),
            pl.BlockSpec(biasA.shape, lambda n: (0, 0)),
            pl.BlockSpec(b7.shape, lambda n: (0, 0)),
        ],
        out_specs=pl.BlockSpec((B, 128), lambda n: (n, 0)),
        out_shape=jax.ShapeDtypeStruct((N, 128), jnp.float32),  # classes padded to 128 lanes
        compiler_params=pltpu.CompilerParams(dimension_semantics=("parallel",)),
    )(xin, slabA, w7, biasA, b7)
    return out[:, :num_class]


# ----------------------------------------------------------------------------
# Plain-XLA reference (mirrors the PyTorch forward) for the in-script check
# ----------------------------------------------------------------------------

def hcn_reference(x, raw):
    N, C, T, V, M = x.shape
    xs = x.astype(jnp.float32)
    Wt = jnp.asarray(raw['Wt'], jnp.float32)
    diff = xs[:, :, 1:, :, :] - xs[:, :, :-1, :, :]
    d = jnp.transpose(diff, (0, 1, 4, 2, 3)).reshape(N, C * M, T - 1, V)
    d = jnp.einsum('ts,ncsv->nctv', Wt, d)                   # bilinear time resize
    motion = d.reshape(N, C, M, T, V).transpose(0, 1, 3, 4, 2)
    out = motion[..., 0]

    def conv(o, k, b, pad):
        o = jax.lax.conv_general_dilated(
            o, jnp.asarray(k, jnp.float32), (1, 1),
            [(pad[0], pad[0]), (pad[1], pad[1])],
            dimension_numbers=('NCHW', 'OIHW', 'NCHW'))
        return o + jnp.asarray(b, jnp.float32)[None, :, None, None]

    def pool(o):
        return jax.lax.reduce_window(o, jnp.array(-jnp.inf, o.dtype), jax.lax.max,
                                     (1, 1, 2, 2), (1, 1, 2, 2), 'VALID')

    out = jax.nn.relu(conv(out, raw['K1'], raw['b1'], (0, 0)))
    out = conv(out, raw['K2'], raw['b2'], (1, 0))
    out = jnp.transpose(out, (0, 3, 2, 1))
    out = pool(conv(out, raw['K3'], raw['b3'], (1, 1)))
    out = pool(conv(out, raw['K4'], raw['b4'], (1, 1)))
    out = pool(jax.nn.relu(conv(out, raw['K5'], raw['b5'], (1, 1))))
    out = pool(jax.nn.relu(conv(out, raw['K6'], raw['b6'], (1, 1))))
    out = out.reshape(N, -1)
    out = jax.nn.relu(out @ jnp.asarray(raw['W7']) + jnp.asarray(raw['b7']))
    out = out @ jnp.asarray(raw['W8']) + jnp.asarray(raw['b8'])
    return out


# ----------------------------------------------------------------------------
# Main
# ----------------------------------------------------------------------------

if __name__ == "__main__":
    # Small, self-consistent config: in_channel=3, num_joint=8, num_person=1,
    # out_channel=16, window_size=16, seq_len=T=16, num_class=10.
    N, C, T, V, M = 16, 3, 16, 8, 1
    OC, WS, NUM_CLASS = 16, 16, 10
    B = 8                               # samples fused per grid step -> MXU M = B*T = 128

    key = jax.random.PRNGKey(0)
    kx, kp = jax.random.split(key)
    x = jax.random.normal(kx, (N, C, T, V, M), dtype=jnp.float32)

    raw = init_params(kp, in_channel=C, num_joint=V, out_channel=OC,
                      window_size=WS, seq_len=T, num_class=NUM_CLASS)
    packed, plan = pack_constants(raw, B=B, C=C, V=V, T=T, OC=OC, WS=WS,
                                  num_class=NUM_CLASS)

    fwd = jax.jit(functools.partial(hcn_forward, plan=plan, B=B, num_class=NUM_CLASS))
    out = jax.block_until_ready(fwd(x, packed))

    assert out.shape == (N, NUM_CLASS), out.shape
    assert not bool(jnp.isnan(out).any())            # mirrors `assert not (t != t).any()`
    assert float(jnp.abs(out).sum()) != 0.0          # mirrors `assert not t.abs().sum() == 0`

    # Cross-check the fused Pallas kernel against the XLA reference.  Both sides
    # use the same bf16-rounded weights; the kernel additionally rounds
    # activations to bf16 at MXU inputs, so a few-percent tolerance is expected
    # (structural/transcription errors would show up as O(1) relative error).
    ref = hcn_reference(x, raw)
    rel = float(jnp.linalg.norm(out - ref) / (jnp.linalg.norm(ref) + 1e-6))
    assert rel < 0.05, rel

    print("KERNEL_OK")
</pallas_src>

<mosaic_0001>
module attributes {stable_mosaic.version = 11 : i64} {
  func.func @hcn_kernel(%arg0: i32, %arg1: memref<128x24xf32, #tpu.memory_space<vmem>>, %arg2: memref<2720x128xbf16, #tpu.memory_space<vmem>>, %arg3: memref<128x512xbf16, #tpu.memory_space<vmem>>, %arg4: memref<8x128xf32, #tpu.memory_space<vmem>>, %arg5: memref<1x512xf32, #tpu.memory_space<vmem>>, %arg6: memref<8x128xf32, #tpu.memory_space<vmem>>) attributes {dimension_semantics = [#tpu.dimension_semantics<parallel>], iteration_bounds = array<i64: 2>, scalar_prefetch = 0 : i64, scratch_operands = 0 : i64, tpu.core_type = #tpu.core_type<tc>, window_params = [{transform_indices = @transform_0, window_bounds = array<i64: 128, 24>}, {pipeline_mode = #tpu.pipeline_mode<synchronous>, transform_indices = @transform_1, window_bounds = array<i64: 2720, 128>}, {pipeline_mode = #tpu.pipeline_mode<synchronous>, transform_indices = @transform_2, window_bounds = array<i64: 128, 512>}, {pipeline_mode = #tpu.pipeline_mode<synchronous>, transform_indices = @transform_3, window_bounds = array<i64: 8, 128>}, {pipeline_mode = #tpu.pipeline_mode<synchronous>, transform_indices = @transform_4, window_bounds = array<i64: 1, 512>}, {transform_indices = @transform_5, window_bounds = array<i64: 8, 128>}]} {
    %c0 = arith.constant 0 : index
    %c0_0 = arith.constant 0 : index
    %0 = vector.load %arg1[%c0, %c0_0] : memref<128x24xf32, #tpu.memory_space<vmem>>, vector<128x24xf32>
    %c0_1 = arith.constant 0 : index
    %c0_2 = arith.constant 0 : index
    %1 = vector.load %arg2[%c0_1, %c0_2] : memref<2720x128xbf16, #tpu.memory_space<vmem>>, vector<128x128xbf16>
    %2 = arith.truncf %0 : vector<128x24xf32> to vector<128x24xbf16>
    %cst = arith.constant dense<0.000000e+00> : vector<128x24xf32>
    %3 = tpu.matmul %1, %2, %cst {dimension_numbers = #tpu.dot_dimension_numbers<[1], [0], [0], [1], [0, 0, 1, 1], [], []>} : vector<128x128xbf16>, vector<128x24xbf16>, vector<128x24xf32> -> vector<128x24xf32>
    %c128 = arith.constant 128 : index
    %c0_3 = arith.constant 0 : index
    %4 = vector.load %arg2[%c128, %c0_3] : memref<2720x128xbf16, #tpu.memory_space<vmem>>, vector<24x128xbf16>
    %5 = arith.truncf %3 : vector<128x24xf32> to vector<128x24xbf16>
    %cst_4 = arith.constant dense<0.000000e+00> : vector<128x128xf32>
    %6 = tpu.matmul %5, %4, %cst_4 {dimension_numbers = #tpu.dot_dimension_numbers<[1], [0], [0], [1], [0, 0, 1, 1], [], []>} : vector<128x24xbf16>, vector<24x128xbf16>, vector<128x128xf32> -> vector<128x128xf32>
    %c0_5 = arith.constant 0 : index
    %c0_6 = arith.constant 0 : index
    %7 = vector.load %arg4[%c0_5, %c0_6] : memref<8x128xf32, #tpu.memory_space<vmem>>, vector<1x128xf32>
    %8 = vector.broadcast %7 : vector<1x128xf32> to vector<128x128xf32>
    %9 = arith.addf %6, %8 : vector<128x128xf32>
    %cst_7 = arith.constant 0.000000e+00 : f32
    %10 = vector.broadcast %cst_7 : f32 to vector<128x128xf32>
    %11 = arith.maximumf %9, %10 : vector<128x128xf32>
    %c127_i32 = arith.constant 127 : i32
    %12 = tpu.dynamic_rotate %11 by %c127_i32 dim 0 : vector<128x128xf32>, i32 -> vector<128x128xf32>
    %c1_i32 = arith.constant 1 : i32
    %13 = tpu.dynamic_rotate %11 by %c1_i32 dim 0 : vector<128x128xf32>, i32 -> vector<128x128xf32>
    %14 = tpu.iota {dimensions = array<i32: 0>} : vector<128x128xi32>
    %c16_i32 = arith.constant 16 : i32
    %c0_i32 = arith.constant 0 : i32
    %15 = arith.cmpi eq, %c16_i32, %c0_i32 : i32
    %c1_i32_8 = arith.constant 1 : i32
    %16 = arith.select %15, %c1_i32_8, %c16_i32 : i32
    %17 = vector.broadcast %16 : i32 to vector<128x128xi32>
    %18 = arith.remsi %14, %17 : vector<128x128xi32>
    %c0_i32_9 = arith.constant 0 : i32
    %19 = vector.broadcast %c0_i32_9 : i32 to vector<128x128xi32>
    %20 = arith.cmpi ne, %18, %19 : vector<128x128xi32>
    %c0_i32_10 = arith.constant 0 : i32
    %21 = vector.broadcast %c0_i32_10 : i32 to vector<128x128xi32>
    %22 = arith.cmpi slt, %18, %21 : vector<128x128xi32>
    %c0_i32_11 = arith.constant 0 : i32
    %23 = arith.cmpi slt, %16, %c0_i32_11 : i32
    %24 = vector.broadcast %23 : i1 to vector<128x128xi1>
    %25 = vector.broadcast %24 : vector<128x128xi1> to vector<128x128xi1>
    %26 = arith.xori %22, %25 : vector<128x128xi1>
    %27 = arith.andi %26, %20 : vector<128x128xi1>
    %28 = vector.broadcast %16 : i32 to vector<128x128xi32>
    %29 = arith.addi %18, %28 : vector<128x128xi32>
    %30 = arith.select %27, %29, %18 : vector<128x128xi1>, vector<128x128xi32>
    %c15_i32 = arith.constant 15 : i32
    %31 = vector.broadcast %c15_i32 : i32 to vector<128x128xi32>
    %32 = arith.cmpi ne, %30, %31 : vector<128x128xi32>
    %cst_12 = arith.constant 0.000000e+00 : f32
    %33 = vector.broadcast %cst_12 : f32 to vector<128x128xf32>
    %34 = arith.select %32, %12, %33 : vector<128x128xi1>, vector<128x128xf32>
    %c16_i32_13 = arith.constant 16 : i32
    %c0_i32_14 = arith.constant 0 : i32
    %35 = arith.cmpi eq, %c16_i32_13, %c0_i32_14 : i32
    %c1_i32_15 = arith.constant 1 : i32
    %36 = arith.select %35, %c1_i32_15, %c16_i32_13 : i32
    %37 = vector.broadcast %36 : i32 to vector<128x128xi32>
    %38 = arith.remsi %14, %37 : vector<128x128xi32>
    %c0_i32_16 = arith.constant 0 : i32
    %39 = vector.broadcast %c0_i32_16 : i32 to vector<128x128xi32>
    %40 = arith.cmpi ne, %38, %39 : vector<128x128xi32>
    %c0_i32_17 = arith.constant 0 : i32
    %41 = vector.broadcast %c0_i32_17 : i32 to vector<128x128xi32>
    %42 = arith.cmpi slt, %38, %41 : vector<128x128xi32>
    %c0_i32_18 = arith.constant 0 : i32
    %43 = arith.cmpi slt, %36, %c0_i32_18 : i32
    %44 = vector.broadcast %43 : i1 to vector<128x128xi1>
    %45 = vector.broadcast %44 : vector<128x128xi1> to vector<128x128xi1>
    %46 = arith.xori %42, %45 : vector<128x128xi1>
    %47 = arith.andi %46, %40 : vector<128x128xi1>
    %48 = vector.broadcast %36 : i32 to vector<128x128xi32>
    %49 = arith.addi %38, %48 : vector<128x128xi32>
    %50 = arith.select %47, %49, %38 : vector<128x128xi1>, vector<128x128xi32>
    %c0_i32_19 = arith.constant 0 : i32
    %51 = vector.broadcast %c0_i32_19 : i32 to vector<128x128xi32>
    %52 = arith.cmpi ne, %50, %51 : vector<128x128xi32>
    %cst_20 = arith.constant 0.000000e+00 : f32
    %53 = vector.broadcast %cst_20 : f32 to vector<128x128xf32>
    %54 = arith.select %52, %13, %53 : vector<128x128xi1>, vector<128x128xf32>
    %55 = tpu.concatenate %54, %11, %34 in 1 : vector<128x128xf32>, vector<128x128xf32>, vector<128x128xf32> -> vector<128x384xf32>
    %c160 = arith.constant 160 : index
    %c0_21 = arith.constant 0 : index
    %56 = vector.load %arg2[%c160, %c0_21] : memref<2720x128xbf16, #tpu.memory_space<vmem>>, vector<384x128xbf16>
    %57 = arith.truncf %55 : vector<128x384xf32> to vector<128x384xbf16>
    %cst_22 = arith.constant dense<0.000000e+00> : vector<128x128xf32>
    %58 = tpu.matmul %57, %56, %cst_22 {dimension_numbers = #tpu.dot_dimension_numbers<[1], [0], [0], [1], [0, 0, 1, 1], [], []>} : vector<128x384xbf16>, vector<384x128xbf16>, vector<128x128xf32> -> vector<128x128xf32>
    %c1 = arith.constant 1 : index
    %c0_23 = arith.constant 0 : index
    %59 = vector.load %arg4[%c1, %c0_23] : memref<8x128xf32, #tpu.memory_space<vmem>>, vector<1x128xf32>
    %60 = vector.broadcast %59 : vector<1x128xf32> to vector<128x128xf32>
    %61 = arith.addf %58, %60 : vector<128x128xf32>
    %c127_i32_24 = arith.constant 127 : i32
    %62 = tpu.dynamic_rotate %61 by %c127_i32_24 dim 0 : vector<128x128xf32>, i32 -> vector<128x128xf32>
    %c1_i32_25 = arith.constant 1 : i32
    %63 = tpu.dynamic_rotate %61 by %c1_i32_25 dim 0 : vector<128x128xf32>, i32 -> vector<128x128xf32>
    %64 = tpu.iota {dimensions = array<i32: 0>} : vector<128x128xi32>
    %c16_i32_26 = arith.constant 16 : i32
    %c0_i32_27 = arith.constant 0 : i32
    %65 = arith.cmpi eq, %c16_i32_26, %c0_i32_27 : i32
    %c1_i32_28 = arith.constant 1 : i32
    %66 = arith.select %65, %c1_i32_28, %c16_i32_26 : i32
    %67 = vector.broadcast %66 : i32 to vector<128x128xi32>
    %68 = arith.remsi %64, %67 : vector<128x128xi32>
    %c0_i32_29 = arith.constant 0 : i32
    %69 = vector.broadcast %c0_i32_29 : i32 to vector<128x128xi32>
    %70 = arith.cmpi ne, %68, %69 : vector<128x128xi32>
    %c0_i32_30 = arith.constant 0 : i32
    %71 = vector.broadcast %c0_i32_30 : i32 to vector<128x128xi32>
    %72 = arith.cmpi slt, %68, %71 : vector<128x128xi32>
    %c0_i32_31 = arith.constant 0 : i32
    %73 = arith.cmpi slt, %66, %c0_i32_31 : i32
    %74 = vector.broadcast %73 : i1 to vector<128x128xi1>
    %75 = vector.broadcast %74 : vector<128x128xi1> to vector<128x128xi1>
    %76 = arith.xori %72, %75 : vector<128x128xi1>
    %77 = arith.andi %76, %70 : vector<128x128xi1>
    %78 = vector.broadcast %66 : i32 to vector<128x128xi32>
    %79 = arith.addi %68, %78 : vector<128x128xi32>
    %80 = arith.select %77, %79, %68 : vector<128x128xi1>, vector<128x128xi32>
    %c15_i32_32 = arith.constant 15 : i32
    %81 = vector.broadcast %c15_i32_32 : i32 to vector<128x128xi32>
    %82 = arith.cmpi ne, %80, %81 : vector<128x128xi32>
    %cst_33 = arith.constant 0.000000e+00 : f32
    %83 = vector.broadcast %cst_33 : f32 to vector<128x128xf32>
    %84 = arith.select %82, %62, %83 : vector<128x128xi1>, vector<128x128xf32>
    %c16_i32_34 = arith.constant 16 : i32
    %c0_i32_35 = arith.constant 0 : i32
    %85 = arith.cmpi eq, %c16_i32_34, %c0_i32_35 : i32
    %c1_i32_36 = arith.constant 1 : i32
    %86 = arith.select %85, %c1_i32_36, %c16_i32_34 : i32
    %87 = vector.broadcast %86 : i32 to vector<128x128xi32>
    %88 = arith.remsi %64, %87 : vector<128x128xi32>
    %c0_i32_37 = arith.constant 0 : i32
    %89 = vector.broadcast %c0_i32_37 : i32 to vector<128x128xi32>
    %90 = arith.cmpi ne, %88, %89 : vector<128x128xi32>
    %c0_i32_38 = arith.constant 0 : i32
    %91 = vector.broadcast %c0_i32_38 : i32 to vector<128x128xi32>
    %92 = arith.cmpi slt, %88, %91 : vector<128x128xi32>
    %c0_i32_39 = arith.constant 0 : i32
    %93 = arith.cmpi slt, %86, %c0_i32_39 : i32
    %94 = vector.broadcast %93 : i1 to vector<128x128xi1>
    %95 = vector.broadcast %94 : vector<128x128xi1> to vector<128x128xi1>
    %96 = arith.xori %92, %95 : vector<128x128xi1>
    %97 = arith.andi %96, %90 : vector<128x128xi1>
    %98 = vector.broadcast %86 : i32 to vector<128x128xi32>
    %99 = arith.addi %88, %98 : vector<128x128xi32>
    %100 = arith.select %97, %99, %88 : vector<128x128xi1>, vector<128x128xi32>
    %c0_i32_40 = arith.constant 0 : i32
    %101 = vector.broadcast %c0_i32_40 : i32 to vector<128x128xi32>
    %102 = arith.cmpi ne, %100, %101 : vector<128x128xi32>
    %cst_41 = arith.constant 0.000000e+00 : f32
    %103 = vector.broadcast %cst_41 : f32 to vector<128x128xf32>
    %104 = arith.select %102, %63, %103 : vector<128x128xi1>, vector<128x128xf32>
    %105 = tpu.concatenate %104, %61, %84 in 1 : vector<128x128xf32>, vector<128x128xf32>, vector<128x128xf32> -> vector<128x384xf32>
    %c544 = arith.constant 544 : index
    %c0_42 = arith.constant 0 : index
    %106 = vector.load %arg2[%c544, %c0_42] : memref<2720x128xbf16, #tpu.memory_space<vmem>>, vector<384x128xbf16>
    %107 = arith.truncf %105 : vector<128x384xf32> to vector<128x384xbf16>
    %cst_43 = arith.constant dense<0.000000e+00> : vector<128x128xf32>
    %108 = tpu.matmul %107, %106, %cst_43 {dimension_numbers = #tpu.dot_dimension_numbers<[1], [0], [0], [1], [0, 0, 1, 1], [], []>} : vector<128x384xbf16>, vector<384x128xbf16>, vector<128x128xf32> -> vector<128x128xf32>
    %c2 = arith.constant 2 : index
    %c0_44 = arith.constant 0 : index
    %109 = vector.load %arg4[%c2, %c0_44] : memref<8x128xf32, #tpu.memory_space<vmem>>, vector<1x128xf32>
    %110 = vector.broadcast %109 : vector<1x128xf32> to vector<128x128xf32>
    %111 = arith.addf %108, %110 : vector<128x128xf32>
    %c127_i32_45 = arith.constant 127 : i32
    %112 = tpu.dynamic_rotate %111 by %c127_i32_45 dim 0 : vector<128x128xf32>, i32 -> vector<128x128xf32>
    %113 = arith.maximumf %111, %112 : vector<128x128xf32>
    %c928 = arith.constant 928 : index
    %c0_46 = arith.constant 0 : index
    %114 = vector.load %arg2[%c928, %c0_46] : memref<2720x128xbf16, #tpu.memory_space<vmem>>, vector<64x128xbf16>
    %115 = arith.truncf %113 : vector<128x128xf32> to vector<128x128xbf16>
    %cst_47 = arith.constant dense<0.000000e+00> : vector<64x128xf32>
    %116 = tpu.matmul %114, %115, %cst_47 {dimension_numbers = #tpu.dot_dimension_numbers<[1], [0], [0], [1], [0, 0, 1, 1], [], []>} : vector<64x128xbf16>, vector<128x128xbf16>, vector<64x128xf32> -> vector<64x128xf32>
    %c120_i32 = arith.constant 120 : i32
    %117 = tpu.dynamic_rotate %116 by %c120_i32 dim 1 : vector<64x128xf32>, i32 -> vector<64x128xf32>
    %118 = arith.maximumf %116, %117 : vector<64x128xf32>
    %c63_i32 = arith.constant 63 : i32
    %119 = tpu.dynamic_rotate %118 by %c63_i32 dim 0 : vector<64x128xf32>, i32 -> vector<64x128xf32>
    %c1_i32_48 = arith.constant 1 : i32
    %120 = tpu.dynamic_rotate %118 by %c1_i32_48 dim 0 : vector<64x128xf32>, i32 -> vector<64x128xf32>
    %121 = tpu.iota {dimensions = array<i32: 0>} : vector<64x128xi32>
    %c8_i32 = arith.constant 8 : i32
    %c0_i32_49 = arith.constant 0 : i32
    %122 = arith.cmpi eq, %c8_i32, %c0_i32_49 : i32
    %c1_i32_50 = arith.constant 1 : i32
    %123 = arith.select %122, %c1_i32_50, %c8_i32 : i32
    %124 = vector.broadcast %123 : i32 to vector<64x128xi32>
    %125 = arith.remsi %121, %124 : vector<64x128xi32>
    %c0_i32_51 = arith.constant 0 : i32
    %126 = vector.broadcast %c0_i32_51 : i32 to vector<64x128xi32>
    %127 = arith.cmpi ne, %125, %126 : vector<64x128xi32>
    %c0_i32_52 = arith.constant 0 : i32
    %128 = vector.broadcast %c0_i32_52 : i32 to vector<64x128xi32>
    %129 = arith.cmpi slt, %125, %128 : vector<64x128xi32>
    %c0_i32_53 = arith.constant 0 : i32
    %130 = arith.cmpi slt, %123, %c0_i32_53 : i32
    %131 = vector.broadcast %130 : i1 to vector<64x128xi1>
    %132 = vector.broadcast %131 : vector<64x128xi1> to vector<64x128xi1>
    %133 = arith.xori %129, %132 : vector<64x128xi1>
    %134 = arith.andi %133, %127 : vector<64x128xi1>
    %135 = vector.broadcast %123 : i32 to vector<64x128xi32>
    %136 = arith.addi %125, %135 : vector<64x128xi32>
    %137 = arith.select %134, %136, %125 : vector<64x128xi1>, vector<64x128xi32>
    %c7_i32 = arith.constant 7 : i32
    %138 = vector.broadcast %c7_i32 : i32 to vector<64x128xi32>
    %139 = arith.cmpi ne, %137, %138 : vector<64x128xi32>
    %cst_54 = arith.constant 0.000000e+00 : f32
    %140 = vector.broadcast %cst_54 : f32 to vector<64x128xf32>
    %141 = arith.select %139, %119, %140 : vector<64x128xi1>, vector<64x128xf32>
    %c8_i32_55 = arith.constant 8 : i32
    %c0_i32_56 = arith.constant 0 : i32
    %142 = arith.cmpi eq, %c8_i32_55, %c0_i32_56 : i32
    %c1_i32_57 = arith.constant 1 : i32
    %143 = arith.select %142, %c1_i32_57, %c8_i32_55 : i32
    %144 = vector.broadcast %143 : i32 to vector<64x128xi32>
    %145 = arith.remsi %121, %144 : vector<64x128xi32>
    %c0_i32_58 = arith.constant 0 : i32
    %146 = vector.broadcast %c0_i32_58 : i32 to vector<64x128xi32>
    %147 = arith.cmpi ne, %145, %146 : vector<64x128xi32>
    %c0_i32_59 = arith.constant 0 : i32
    %148 = vector.broadcast %c0_i32_59 : i32 to vector<64x128xi32>
    %149 = arith.cmpi slt, %145, %148 : vector<64x128xi32>
    %c0_i32_60 = arith.constant 0 : i32
    %150 = arith.cmpi slt, %143, %c0_i32_60 : i32
    %151 = vector.broadcast %150 : i1 to vector<64x128xi1>
    %152 = vector.broadcast %151 : vector<64x128xi1> to vector<64x128xi1>
    %153 = arith.xori %149, %152 : vector<64x128xi1>
    %154 = arith.andi %153, %147 : vector<64x128xi1>
    %155 = vector.broadcast %143 : i32 to vector<64x128xi32>
    %156 = arith.addi %145, %155 : vector<64x128xi32>
    %157 = arith.select %154, %156, %145 : vector<64x128xi1>, vector<64x128xi32>
    %c0_i32_61 = arith.constant 0 : i32
    %158 = vector.broadcast %c0_i32_61 : i32 to vector<64x128xi32>
    %159 = arith.cmpi ne, %157, %158 : vector<64x128xi32>
    %cst_62 = arith.constant 0.000000e+00 : f32
    %160 = vector.broadcast %cst_62 : f32 to vector<64x128xf32>
    %161 = arith.select %159, %120, %160 : vector<64x128xi1>, vector<64x128xf32>
    %162 = tpu.concatenate %161, %118, %141 in 1 : vector<64x128xf32>, vector<64x128xf32>, vector<64x128xf32> -> vector<64x384xf32>
    %c992 = arith.constant 992 : index
    %c0_63 = arith.constant 0 : index
    %163 = vector.load %arg2[%c992, %c0_63] : memref<2720x128xbf16, #tpu.memory_space<vmem>>, vector<384x128xbf16>
    %164 = arith.truncf %162 : vector<64x384xf32> to vector<64x384xbf16>
    %cst_64 = arith.constant dense<0.000000e+00> : vector<64x128xf32>
    %165 = tpu.matmul %164, %163, %cst_64 {dimension_numbers = #tpu.dot_dimension_numbers<[1], [0], [0], [1], [0, 0, 1, 1], [], []>} : vector<64x384xbf16>, vector<384x128xbf16>, vector<64x128xf32> -> vector<64x128xf32>
    %c3 = arith.constant 3 : index
    %c0_65 = arith.constant 0 : index
    %166 = vector.load %arg4[%c3, %c0_65] : memref<8x128xf32, #tpu.memory_space<vmem>>, vector<1x128xf32>
    %167 = vector.broadcast %166 : vector<1x128xf32> to vector<64x128xf32>
    %168 = arith.addf %165, %167 : vector<64x128xf32>
    %c63_i32_66 = arith.constant 63 : i32
    %169 = tpu.dynamic_rotate %168 by %c63_i32_66 dim 0 : vector<64x128xf32>, i32 -> vector<64x128xf32>
    %170 = arith.maximumf %168, %169 : vector<64x128xf32>
    %c1376 = arith.constant 1376 : index
    %c0_67 = arith.constant 0 : index
    %171 = vector.load %arg2[%c1376, %c0_67] : memref<2720x128xbf16, #tpu.memory_space<vmem>>, vector<32x64xbf16>
    %172 = arith.truncf %170 : vector<64x128xf32> to vector<64x128xbf16>
    %cst_68 = arith.constant dense<0.000000e+00> : vector<32x128xf32>
    %173 = tpu.matmul %171, %172, %cst_68 {dimension_numbers = #tpu.dot_dimension_numbers<[1], [0], [0], [1], [0, 0, 1, 1], [], []>} : vector<32x64xbf16>, vector<64x128xbf16>, vector<32x128xf32> -> vector<32x128xf32>
    %c112_i32 = arith.constant 112 : i32
    %174 = tpu.dynamic_rotate %173 by %c112_i32 dim 1 : vector<32x128xf32>, i32 -> vector<32x128xf32>
    %175 = arith.maximumf %173, %174 : vector<32x128xf32>
    %c31_i32 = arith.constant 31 : i32
    %176 = tpu.dynamic_rotate %175 by %c31_i32 dim 0 : vector<32x128xf32>, i32 -> vector<32x128xf32>
    %c1_i32_69 = arith.constant 1 : i32
    %177 = tpu.dynamic_rotate %175 by %c1_i32_69 dim 0 : vector<32x128xf32>, i32 -> vector<32x128xf32>
    %178 = tpu.iota {dimensions = array<i32: 0>} : vector<32x128xi32>
    %c4_i32 = arith.constant 4 : i32
    %c0_i32_70 = arith.constant 0 : i32
    %179 = arith.cmpi eq, %c4_i32, %c0_i32_70 : i32
    %c1_i32_71 = arith.constant 1 : i32
    %180 = arith.select %179, %c1_i32_71, %c4_i32 : i32
    %181 = vector.broadcast %180 : i32 to vector<32x128xi32>
    %182 = arith.remsi %178, %181 : vector<32x128xi32>
    %c0_i32_72 = arith.constant 0 : i32
    %183 = vector.broadcast %c0_i32_72 : i32 to vector<32x128xi32>
    %184 = arith.cmpi ne, %182, %183 : vector<32x128xi32>
    %c0_i32_73 = arith.constant 0 : i32
    %185 = vector.broadcast %c0_i32_73 : i32 to vector<32x128xi32>
    %186 = arith.cmpi slt, %182, %185 : vector<32x128xi32>
    %c0_i32_74 = arith.constant 0 : i32
    %187 = arith.cmpi slt, %180, %c0_i32_74 : i32
    %188 = vector.broadcast %187 : i1 to vector<32x128xi1>
    %189 = vector.broadcast %188 : vector<32x128xi1> to vector<32x128xi1>
    %190 = arith.xori %186, %189 : vector<32x128xi1>
    %191 = arith.andi %190, %184 : vector<32x128xi1>
    %192 = vector.broadcast %180 : i32 to vector<32x128xi32>
    %193 = arith.addi %182, %192 : vector<32x128xi32>
    %194 = arith.select %191, %193, %182 : vector<32x128xi1>, vector<32x128xi32>
    %c3_i32 = arith.constant 3 : i32
    %195 = vector.broadcast %c3_i32 : i32 to vector<32x128xi32>
    %196 = arith.cmpi ne, %194, %195 : vector<32x128xi32>
    %cst_75 = arith.constant 0.000000e+00 : f32
    %197 = vector.broadcast %cst_75 : f32 to vector<32x128xf32>
    %198 = arith.select %196, %176, %197 : vector<32x128xi1>, vector<32x128xf32>
    %c4_i32_76 = arith.constant 4 : i32
    %c0_i32_77 = arith.constant 0 : i32
    %199 = arith.cmpi eq, %c4_i32_76, %c0_i32_77 : i32
    %c1_i32_78 = arith.constant 1 : i32
    %200 = arith.select %199, %c1_i32_78, %c4_i32_76 : i32
    %201 = vector.broadcast %200 : i32 to vector<32x128xi32>
    %202 = arith.remsi %178, %201 : vector<32x128xi32>
    %c0_i32_79 = arith.constant 0 : i32
    %203 = vector.broadcast %c0_i32_79 : i32 to vector<32x128xi32>
    %204 = arith.cmpi ne, %202, %203 : vector<32x128xi32>
    %c0_i32_80 = arith.constant 0 : i32
    %205 = vector.broadcast %c0_i32_80 : i32 to vector<32x128xi32>
    %206 = arith.cmpi slt, %202, %205 : vector<32x128xi32>
    %c0_i32_81 = arith.constant 0 : i32
    %207 = arith.cmpi slt, %200, %c0_i32_81 : i32
    %208 = vector.broadcast %207 : i1 to vector<32x128xi1>
    %209 = vector.broadcast %208 : vector<32x128xi1> to vector<32x128xi1>
    %210 = arith.xori %206, %209 : vector<32x128xi1>
    %211 = arith.andi %210, %204 : vector<32x128xi1>
    %212 = vector.broadcast %200 : i32 to vector<32x128xi32>
    %213 = arith.addi %202, %212 : vector<32x128xi32>
    %214 = arith.select %211, %213, %202 : vector<32x128xi1>, vector<32x128xi32>
    %c0_i32_82 = arith.constant 0 : i32
    %215 = vector.broadcast %c0_i32_82 : i32 to vector<32x128xi32>
    %216 = arith.cmpi ne, %214, %215 : vector<32x128xi32>
    %cst_83 = arith.constant 0.000000e+00 : f32
    %217 = vector.broadcast %cst_83 : f32 to vector<32x128xf32>
    %218 = arith.select %216, %177, %217 : vector<32x128xi1>, vector<32x128xf32>
    %219 = tpu.concatenate %218, %175, %198 in 1 : vector<32x128xf32>, vector<32x128xf32>, vector<32x128xf32> -> vector<32x384xf32>
    %c1408 = arith.constant 1408 : index
    %c0_84 = arith.constant 0 : index
    %220 = vector.load %arg2[%c1408, %c0_84] : memref<2720x128xbf16, #tpu.memory_space<vmem>>, vector<384x128xbf16>
    %221 = arith.truncf %219 : vector<32x384xf32> to vector<32x384xbf16>
    %cst_85 = arith.constant dense<0.000000e+00> : vector<32x128xf32>
    %222 = tpu.matmul %221, %220, %cst_85 {dimension_numbers = #tpu.dot_dimension_numbers<[1], [0], [0], [1], [0, 0, 1, 1], [], []>} : vector<32x384xbf16>, vector<384x128xbf16>, vector<32x128xf32> -> vector<32x128xf32>
    %c4 = arith.constant 4 : index
    %c0_86 = arith.constant 0 : index
    %223 = vector.load %arg4[%c4, %c0_86] : memref<8x128xf32, #tpu.memory_space<vmem>>, vector<1x128xf32>
    %224 = vector.broadcast %223 : vector<1x128xf32> to vector<32x128xf32>
    %225 = arith.addf %222, %224 : vector<32x128xf32>
    %cst_87 = arith.constant 0.000000e+00 : f32
    %226 = vector.broadcast %cst_87 : f32 to vector<32x128xf32>
    %227 = arith.maximumf %225, %226 : vector<32x128xf32>
    %c31_i32_88 = arith.constant 31 : i32
    %228 = tpu.dynamic_rotate %227 by %c31_i32_88 dim 0 : vector<32x128xf32>, i32 -> vector<32x128xf32>
    %229 = arith.maximumf %227, %228 : vector<32x128xf32>
    %c1792 = arith.constant 1792 : index
    %c0_89 = arith.constant 0 : index
    %230 = vector.load %arg2[%c1792, %c0_89] : memref<2720x128xbf16, #tpu.memory_space<vmem>>, vector<16x32xbf16>
    %231 = arith.truncf %229 : vector<32x128xf32> to vector<32x128xbf16>
    %cst_90 = arith.constant dense<0.000000e+00> : vector<16x128xf32>
    %232 = tpu.matmul %230, %231, %cst_90 {dimension_numbers = #tpu.dot_dimension_numbers<[1], [0], [0], [1], [0, 0, 1, 1], [], []>} : vector<16x32xbf16>, vector<32x128xbf16>, vector<16x128xf32> -> vector<16x128xf32>
    %c96_i32 = arith.constant 96 : i32
    %233 = tpu.dynamic_rotate %232 by %c96_i32 dim 1 : vector<16x128xf32>, i32 -> vector<16x128xf32>
    %234 = arith.maximumf %232, %233 : vector<16x128xf32>
    %c15_i32_91 = arith.constant 15 : i32
    %235 = tpu.dynamic_rotate %234 by %c15_i32_91 dim 0 : vector<16x128xf32>, i32 -> vector<16x128xf32>
    %c1_i32_92 = arith.constant 1 : i32
    %236 = tpu.dynamic_rotate %234 by %c1_i32_92 dim 0 : vector<16x128xf32>, i32 -> vector<16x128xf32>
    %237 = tpu.iota {dimensions = array<i32: 0>} : vector<16x128xi32>
    %c2_i32 = arith.constant 2 : i32
    %c0_i32_93 = arith.constant 0 : i32
    %238 = arith.cmpi eq, %c2_i32, %c0_i32_93 : i32
    %c1_i32_94 = arith.constant 1 : i32
    %239 = arith.select %238, %c1_i32_94, %c2_i32 : i32
    %240 = vector.broadcast %239 : i32 to vector<16x128xi32>
    %241 = arith.remsi %237, %240 : vector<16x128xi32>
    %c0_i32_95 = arith.constant 0 : i32
    %242 = vector.broadcast %c0_i32_95 : i32 to vector<16x128xi32>
    %243 = arith.cmpi ne, %241, %242 : vector<16x128xi32>
    %c0_i32_96 = arith.constant 0 : i32
    %244 = vector.broadcast %c0_i32_96 : i32 to vector<16x128xi32>
    %245 = arith.cmpi slt, %241, %244 : vector<16x128xi32>
    %c0_i32_97 = arith.constant 0 : i32
    %246 = arith.cmpi slt, %239, %c0_i32_97 : i32
    %247 = vector.broadcast %246 : i1 to vector<16x128xi1>
    %248 = vector.broadcast %247 : vector<16x128xi1> to vector<16x128xi1>
    %249 = arith.xori %245, %248 : vector<16x128xi1>
    %250 = arith.andi %249, %243 : vector<16x128xi1>
    %251 = vector.broadcast %239 : i32 to vector<16x128xi32>
    %252 = arith.addi %241, %251 : vector<16x128xi32>
    %253 = arith.select %250, %252, %241 : vector<16x128xi1>, vector<16x128xi32>
    %c1_i32_98 = arith.constant 1 : i32
    %254 = vector.broadcast %c1_i32_98 : i32 to vector<16x128xi32>
    %255 = arith.cmpi ne, %253, %254 : vector<16x128xi32>
    %cst_99 = arith.constant 0.000000e+00 : f32
    %256 = vector.broadcast %cst_99 : f32 to vector<16x128xf32>
    %257 = arith.select %255, %235, %256 : vector<16x128xi1>, vector<16x128xf32>
    %c2_i32_100 = arith.constant 2 : i32
    %c0_i32_101 = arith.constant 0 : i32
    %258 = arith.cmpi eq, %c2_i32_100, %c0_i32_101 : i32
    %c1_i32_102 = arith.constant 1 : i32
    %259 = arith.select %258, %c1_i32_102, %c2_i32_100 : i32
    %260 = vector.broadcast %259 : i32 to vector<16x128xi32>
    %261 = arith.remsi %237, %260 : vector<16x128xi32>
    %c0_i32_103 = arith.constant 0 : i32
    %262 = vector.broadcast %c0_i32_103 : i32 to vector<16x128xi32>
    %263 = arith.cmpi ne, %261, %262 : vector<16x128xi32>
    %c0_i32_104 = arith.constant 0 : i32
    %264 = vector.broadcast %c0_i32_104 : i32 to vector<16x128xi32>
    %265 = arith.cmpi slt, %261, %264 : vector<16x128xi32>
    %c0_i32_105 = arith.constant 0 : i32
    %266 = arith.cmpi slt, %259, %c0_i32_105 : i32
    %267 = vector.broadcast %266 : i1 to vector<16x128xi1>
    %268 = vector.broadcast %267 : vector<16x128xi1> to vector<16x128xi1>
    %269 = arith.xori %265, %268 : vector<16x128xi1>
    %270 = arith.andi %269, %263 : vector<16x128xi1>
    %271 = vector.broadcast %259 : i32 to vector<16x128xi32>
    %272 = arith.addi %261, %271 : vector<16x128xi32>
    %273 = arith.select %270, %272, %261 : vector<16x128xi1>, vector<16x128xi32>
    %c0_i32_106 = arith.constant 0 : i32
    %274 = vector.broadcast %c0_i32_106 : i32 to vector<16x128xi32>
    %275 = arith.cmpi ne, %273, %274 : vector<16x128xi32>
    %cst_107 = arith.constant 0.000000e+00 : f32
    %276 = vector.broadcast %cst_107 : f32 to vector<16x128xf32>
    %277 = arith.select %275, %236, %276 : vector<16x128xi1>, vector<16x128xf32>
    %278 = tpu.concatenate %277, %234, %257 in 1 : vector<16x128xf32>, vector<16x128xf32>, vector<16x128xf32> -> vector<16x384xf32>
    %c1808 = arith.constant 1808 : index
    %c0_108 = arith.constant 0 : index
    %279 = vector.load %arg2[%c1808, %c0_108] : memref<2720x128xbf16, #tpu.memory_space<vmem>>, vector<384x128xbf16>
    %280 = arith.truncf %278 : vector<16x384xf32> to vector<16x384xbf16>
    %cst_109 = arith.constant dense<0.000000e+00> : vector<16x128xf32>
    %281 = tpu.matmul %280, %279, %cst_109 {dimension_numbers = #tpu.dot_dimension_numbers<[1], [0], [0], [1], [0, 0, 1, 1], [], []>} : vector<16x384xbf16>, vector<384x128xbf16>, vector<16x128xf32> -> vector<16x128xf32>
    %c5 = arith.constant 5 : index
    %c0_110 = arith.constant 0 : index
    %282 = vector.load %arg4[%c5, %c0_110] : memref<8x128xf32, #tpu.memory_space<vmem>>, vector<1x128xf32>
    %283 = vector.broadcast %282 : vector<1x128xf32> to vector<16x128xf32>
    %284 = arith.addf %281, %283 : vector<16x128xf32>
    %cst_111 = arith.constant 0.000000e+00 : f32
    %285 = vector.broadcast %cst_111 : f32 to vector<16x128xf32>
    %286 = arith.maximumf %284, %285 : vector<16x128xf32>
    %c15_i32_112 = arith.constant 15 : i32
    %287 = tpu.dynamic_rotate %286 by %c15_i32_112 dim 0 : vector<16x128xf32>, i32 -> vector<16x128xf32>
    %288 = arith.maximumf %286, %287 : vector<16x128xf32>
    %c2192 = arith.constant 2192 : index
    %c0_113 = arith.constant 0 : index
    %289 = vector.load %arg2[%c2192, %c0_113] : memref<2720x128xbf16, #tpu.memory_space<vmem>>, vector<8x16xbf16>
    %290 = arith.truncf %288 : vector<16x128xf32> to vector<16x128xbf16>
    %cst_114 = arith.constant dense<0.000000e+00> : vector<8x128xf32>
    %291 = tpu.matmul %289, %290, %cst_114 {dimension_numbers = #tpu.dot_dimension_numbers<[1], [0], [0], [1], [0, 0, 1, 1], [], []>} : vector<8x16xbf16>, vector<16x128xbf16>, vector<8x128xf32> -> vector<8x128xf32>
    %c64_i32 = arith.constant 64 : i32
    %292 = tpu.dynamic_rotate %291 by %c64_i32 dim 1 : vector<8x128xf32>, i32 -> vector<8x128xf32>
    %293 = arith.maximumf %291, %292 : vector<8x128xf32>
    %c0_115 = arith.constant 0 : index
    %c0_116 = arith.constant 0 : index
    %294 = vector.load %arg3[%c0_115, %c0_116] : memref<128x512xbf16, #tpu.memory_space<vmem>>, vector<128x512xbf16>
    %295 = arith.truncf %293 : vector<8x128xf32> to vector<8x128xbf16>
    %cst_117 = arith.constant dense<0.000000e+00> : vector<8x512xf32>
    %296 = tpu.matmul %295, %294, %cst_117 {dimension_numbers = #tpu.dot_dimension_numbers<[1], [0], [0], [1], [0, 0, 1, 1], [], []>} : vector<8x128xbf16>, vector<128x512xbf16>, vector<8x512xf32> -> vector<8x512xf32>
    %c0_118 = arith.constant 0 : index
    %c0_119 = arith.constant 0 : index
    %297 = vector.load %arg5[%c0_118, %c0_119] : memref<1x512xf32, #tpu.memory_space<vmem>>, vector<1x512xf32>
    %298 = vector.broadcast %297 : vector<1x512xf32> to vector<8x512xf32>
    %299 = arith.addf %296, %298 : vector<8x512xf32>
    %cst_120 = arith.constant 0.000000e+00 : f32
    %300 = vector.broadcast %cst_120 : f32 to vector<8x512xf32>
    %301 = arith.maximumf %299, %300 : vector<8x512xf32>
    %c2208 = arith.constant 2208 : index
    %c0_121 = arith.constant 0 : index
    %302 = vector.load %arg2[%c2208, %c0_121] : memref<2720x128xbf16, #tpu.memory_space<vmem>>, vector<512x128xbf16>
    %303 = arith.truncf %301 : vector<8x512xf32> to vector<8x512xbf16>
    %cst_122 = arith.constant dense<0.000000e+00> : vector<8x128xf32>
    %304 = tpu.matmul %303, %302, %cst_122 {dimension_numbers = #tpu.dot_dimension_numbers<[1], [0], [0], [1], [0, 0, 1, 1], [], []>} : vector<8x512xbf16>, vector<512x128xbf16>, vector<8x128xf32> -> vector<8x128xf32>
    %c6 = arith.constant 6 : index
    %c0_123 = arith.constant 0 : index
    %305 = vector.load %arg4[%c6, %c0_123] : memref<8x128xf32, #tpu.memory_space<vmem>>, vector<1x128xf32>
    %306 = vector.broadcast %305 : vector<1x128xf32> to vector<8x128xf32>
    %307 = arith.addf %304, %306 : vector<8x128xf32>
    %c0_124 = arith.constant 0 : index
    %c0_125 = arith.constant 0 : index
    %308 = vector.load %arg6[%c0_124, %c0_125] : memref<8x128xf32, #tpu.memory_space<vmem>>, vector<8x128xf32>
    tpu.vector_store %arg6[%c0_124, %c0_125], %307 {strides = array<i32>} : memref<8x128xf32, #tpu.memory_space<vmem>>, vector<8x128xf32>,
    return
  }
  func.func @transform_0(%arg0: i32) -> (i32, i32) {
    %c0_i32 = arith.constant 0 : i32
    %c0_i32_0 = arith.constant 0 : i32
    return %arg0, %c0_i32 : i32, i32
  }
  func.func @transform_1(%arg0: i32) -> (i32, i32) {
    %c0_i32 = arith.constant 0 : i32
    %c0_i32_0 = arith.constant 0 : i32
    %c0_i32_1 = arith.constant 0 : i32
    return %c0_i32, %c0_i32_0 : i32, i32
  }
  func.func @transform_2(%arg0: i32) -> (i32, i32) {
    %c0_i32 = arith.constant 0 : i32
    %c0_i32_0 = arith.constant 0 : i32
    %c0_i32_1 = arith.constant 0 : i32
    return %c0_i32, %c0_i32_0 : i32, i32
  }
  func.func @transform_3(%arg0: i32) -> (i32, i32) {
    %c0_i32 = arith.constant 0 : i32
    %c0_i32_0 = arith.constant 0 : i32
    %c0_i32_1 = arith.constant 0 : i32
    return %c0_i32, %c0_i32_0 : i32, i32
  }
  func.func @transform_4(%arg0: i32) -> (i32, i32) {
    %c0_i32 = arith.constant 0 : i32
    %c0_i32_0 = arith.constant 0 : i32
    %c0_i32_1 = arith.constant 0 : i32
    return %c0_i32, %c0_i32_0 : i32, i32
  }
  func.func @transform_5(%arg0: i32) -> (i32, i32) {
    %c0_i32 = arith.constant 0 : i32
    %c0_i32_0 = arith.constant 0 : i32
    return %arg0, %c0_i32 : i32, i32
  }
}

</mosaic_0001>

<llo_original>
// kernel: hcn_forward.1
$region0: #{hcn_forward.1}
  #allocation0 [shape = 'u32[]', space=smem, size = 0x4, offset = 0x4, fixed_abs, tag = 'smem constant byte address 0x4 - core index']
  #allocation1 [shape = 'u32[144,128]{1,0:T(1,128)}', space=vmem, size = 0x12000, scoped, tag = 'internal scratch']
  %s0 = inlined_call_operand.vmem [shape: f32[256,24], index: 0, kind: input, shape index: {}]
  %s1 = inlined_call_operand.vmem [shape: bf16[2720,128], index: 1, kind: input, shape index: {}]
  %s2 = inlined_call_operand.hbm [shape: bf16[128,512], index: 2, kind: input, shape index: {}]
  %s3 = inlined_call_operand.vmem [shape: f32[8,128], index: 3, kind: input, shape index: {}]
  %s4 = inlined_call_operand.vmem [shape: f32[1,512], index: 4, kind: input, shape index: {}]
  %s5 = inlined_call_operand.hbm [shape: f32[16,128], index: 5, kind: output, shape index: {}]
  %s6 = sld [smem:[#allocation0]]
  $region57: #{hcn_forward.1} parent=0
    _
  %s8 = ssub.s32 1, %s6
  %s9 = scalar_select 0, %s8, %s6
  $region1: #{hcn_forward.1} parent=0
    #allocation2 [shape = 'u8[131072]{0}', space=vmem, size = 0x20000, scoped, tag = 'input window, operand 2, single buffered']
    #allocation3 [shape = 's32[2]{0}', space=sflag, size = 0x8, scoped, tag = 'scoped memory for hcn_forward.1']
    #allocation4 [shape = 's32[2]{0}', space=sflag, size = 0x8, scoped, tag = 'scoped memory for hcn_forward.1']
    #allocation5 [shape = 'u8[8192]{0}', space=vmem, size = 0x2000, scoped, tag = 'output window, operand 0']
    %10 = vsyncpa [#allocation3], 0
    %11 = vsyncpa [#allocation4], 0
    %s12 = scalar_lea.sflag [#allocation4], 1
    %13 = vsyncpa %s12, 0
    loop: start=0, step=1, limit=4
    $region2: #{hcn_forward.1} parent=1 // loop_pre_header
      _
    $region3: #{hcn_forward.1} parent=1 // loop_header
      %s15 = sphi 0, %s19
      %p16 = scmp.ge.s32.totalorder %s15, 4
      %s25 = sphi 0, %s27
      %s28 = sphi 0, %s25
      %s29 = sphi 0, %s28
      %s45 = sphi 0, %s29
      %s49 = sphi 0, %s49
      %s51 = sphi 0, %s49
      %s52 = sphi 0, %s51
      %s66 = sphi 0, %s52
      %s70 = sphi 0, %s70
      %s72 = sphi 0, %s70
      %s73 = sphi 0, %s72
      %s87 = sphi 0, %s73
      %s91 = sphi 0, %s91
      %s93 = sphi 0, %s91
      %s94 = sphi 0, %s93
      %s108 = sphi 0, %s94
      %s112 = sphi 0, %s112
      %s114 = sphi 0, %s112
      %s115 = sphi 0, %s114
      %s129 = sphi 0, %s115
      %s135 = sphi 0, %s137
      %s138 = sphi 0, %s135
      %s139 = sphi 0, %s138
      %s155 = sphi 0, %s139
    $region4: #{hcn_forward.1} parent=1 // loop_header_branch
      %18 = sbr.rel (%p16) target = $region8
    $region5: #{hcn_forward.1} parent=1 // loop_body
      %s20 = ssub.s32 %s15, 1
      %s21 = ssub.s32 %s15, 2
      %s22 = sadd.s32 %s15, 1
      %s23 = ssub.s32 %s15, %s22
      %p24 = scmp.eq.s32.totalorder %s23, 0
      %s26 = sadd.s32 %s25, 1
      %s27 = scalar_select %p24, %s25, %s26
      %p30 = pneg %p24
      %p31 = scmp.eq.s32.totalorder %s15, 1
      %p32 = por %p30, %p31
      %p33 = scmp.ne.s32.totalorder %s25, %s28
      %p34 = scmp.eq.s32.totalorder %s15, 0
      %p35 = por %p33, %p34
      %p36 = scmp.ne.s32.totalorder %s25, %s28
      %p37 = scmp.eq.s32.totalorder %s20, 1
      %p38 = por %p36, %p37
      %p39 = scmp.ne.s32.totalorder %s28, %s29
      %p40 = scmp.eq.s32.totalorder %s20, 0
      %p41 = por %p39, %p40
      %p42 = scmp.ne.s32.totalorder %s28, %s29
      %p43 = scmp.eq.s32.totalorder %s21, 1
      %p44 = por %p42, %p43
      %p46 = scmp.ne.s32.totalorder %s29, %s45
      %p47 = scmp.eq.s32.totalorder %s21, 0
      %p48 = por %p46, %p47
      %s50 = sadd.s32 %s49, 1
      %p53 = scmp.eq.s32.totalorder %s15, 1
      %p54 = scmp.ne.s32.totalorder %s49, %s51
      %p55 = scmp.eq.s32.totalorder %s15, 0
      %p56 = por %p54, %p55
      %p57 = scmp.ne.s32.totalorder %s49, %s51
      %p58 = scmp.eq.s32.totalorder %s20, 1
      %p59 = por %p57, %p58
      %p60 = scmp.ne.s32.totalorder %s51, %s52
      %p61 = scmp.eq.s32.totalorder %s20, 0
      %p62 = por %p60, %p61
      %p63 = scmp.ne.s32.totalorder %s51, %s52
      %p64 = scmp.eq.s32.totalorder %s21, 1
      %p65 = por %p63, %p64
      %p67 = scmp.ne.s32.totalorder %s52, %s66
      %p68 = scmp.eq.s32.totalorder %s21, 0
      %p69 = por %p67, %p68
      %s71 = sadd.s32 %s70, 1
      %p74 = scmp.eq.s32.totalorder %s15, 1
      %p75 = scmp.ne.s32.totalorder %s70, %s72
      %p76 = scmp.eq.s32.totalorder %s15, 0
      %p77 = por %p75, %p76
      %p78 = scmp.ne.s32.totalorder %s70, %s72
      %p79 = scmp.eq.s32.totalorder %s20, 1
      %p80 = por %p78, %p79
      %p81 = scmp.ne.s32.totalorder %s72, %s73
      %p82 = scmp.eq.s32.totalorder %s20, 0
      %p83 = por %p81, %p82
      %p84 = scmp.ne.s32.totalorder %s72, %s73
      %p85 = scmp.eq.s32.totalorder %s21, 1
      %p86 = por %p84, %p85
      %p88 = scmp.ne.s32.totalorder %s73, %s87
      %p89 = scmp.eq.s32.totalorder %s21, 0
      %p90 = por %p88, %p89
      %s92 = sadd.s32 %s91, 1
      %p95 = scmp.eq.s32.totalorder %s15, 1
      %p96 = scmp.ne.s32.totalorder %s91, %s93
      %p97 = scmp.eq.s32.totalorder %s15, 0
      %p98 = por %p96, %p97
      %p99 = scmp.ne.s32.totalorder %s91, %s93
      %p100 = scmp.eq.s32.totalorder %s20, 1
      %p101 = por %p99, %p100
      %p102 = scmp.ne.s32.totalorder %s93, %s94
      %p103 = scmp.eq.s32.totalorder %s20, 0
      %p104 = por %p102, %p103
      %p105 = scmp.ne.s32.totalorder %s93, %s94
      %p106 = scmp.eq.s32.totalorder %s21, 1
      %p107 = por %p105, %p106
      %p109 = scmp.ne.s32.totalorder %s94, %s108
      %p110 = scmp.eq.s32.totalorder %s21, 0
      %p111 = por %p109, %p110
      %s113 = sadd.s32 %s112, 1
      %p116 = scmp.eq.s32.totalorder %s15, 1
      %p117 = scmp.ne.s32.totalorder %s112, %s114
      %p118 = scmp.eq.s32.totalorder %s15, 0
      %p119 = por %p117, %p118
      %p120 = scmp.ne.s32.totalorder %s112, %s114
      %p121 = scmp.eq.s32.totalorder %s20, 1
      %p122 = por %p120, %p121
      %p123 = scmp.ne.s32.totalorder %s114, %s115
      %p124 = scmp.eq.s32.totalorder %s20, 0
      %p125 = por %p123, %p124
      %p126 = scmp.ne.s32.totalorder %s114, %s115
      %p127 = scmp.eq.s32.totalorder %s21, 1
      %p128 = por %p126, %p127
      %p130 = scmp.ne.s32.totalorder %s115, %s129
      %p131 = scmp.eq.s32.totalorder %s21, 0
      %p132 = por %p130, %p131
      %s133 = ssub.s32 %s15, %s22
      %p134 = scmp.eq.s32.totalorder %s133, 0
      %s136 = sadd.s32 %s135, 1
      %s137 = scalar_select %p134, %s135, %s136
      %p140 = pneg %p134
      %p141 = scmp.eq.s32.totalorder %s15, 1
      %p142 = por %p140, %p141
      %p143 = scmp.ne.s32.totalorder %s135, %s138
      %p144 = scmp.eq.s32.totalorder %s15, 0
      %p145 = por %p143, %p144
      %p146 = scmp.ne.s32.totalorder %s135, %s138
      %p147 = scmp.eq.s32.totalorder %s20, 1
      %p148 = por %p146, %p147
      %p149 = scmp.ne.s32.totalorder %s138, %s139
      %p150 = scmp.eq.s32.totalorder %s20, 0
      %p151 = por %p149, %p150
      %p152 = scmp.ne.s32.totalorder %s138, %s139
      %p153 = scmp.eq.s32.totalorder %s21, 1
      %p154 = por %p152, %p153
      %p156 = scmp.ne.s32.totalorder %s139, %s155
      %p157 = scmp.eq.s32.totalorder %s21, 0
      %p158 = por %p156, %p157
      %p159 = scmp.le.s32.totalorder 1, %s15
      %p160 = scmp.lt.s32.totalorder %s15, 3
      %p161 = pnand %p159, %p160
      %p162 = pneg %p161
      // Predicated region
      $region9: #{hcn_forward.1} parent=5 // pred_check
        _
      $region10: #{hcn_forward.1} parent=5 // pred_check_branch
        %164 = sbr.rel (%p161) target = $region12
      $region11: #{hcn_forward.1} parent=5 // pred_region
        %s165 = ssub.s32 %s15, 1
        // Predicated region
        $region13: #{hcn_forward.1} parent=11 // pred_check
          %p166 = pneg %p62
        $region14: #{hcn_forward.1} parent=11 // pred_check_branch
          %168 = sbr.rel (%p166) target = $region16
        $region15: #{hcn_forward.1} parent=11 // pred_region
          _
        $region16: #{hcn_forward.1} parent=11 // pred_fallthru
          _
        // Predicated region
        $region17: #{hcn_forward.1} parent=11 // pred_check
          %p169 = pneg %p83
        $region18: #{hcn_forward.1} parent=11 // pred_check_branch
          %171 = sbr.rel (%p169) target = $region20
        $region19: #{hcn_forward.1} parent=11 // pred_region
          %s173 = ssub.s32 4096, 4096
          %174 = vsyncadd [#allocation3], %s173
          %s175 = sshll.u32 [#allocation2], 4
          %s176 = int_to_ptr.vmem [resolvable:$true] %s175
          %181 = dma.hbm_to_vmem [thread:$0]  %s2, 4096, %s176, [#allocation3], 256, 256, 16
        $region20: #{hcn_forward.1} parent=11 // pred_fallthru
          _
        // Predicated region
        $region21: #{hcn_forward.1} parent=11 // pred_check
          %p182 = pneg %p104
        $region22: #{hcn_forward.1} parent=11 // pred_check_branch
          %184 = sbr.rel (%p182) target = $region24
        $region23: #{hcn_forward.1} parent=11 // pred_region
          _
        $region24: #{hcn_forward.1} parent=11 // pred_fallthru
          _
        // Predicated region
        $region25: #{hcn_forward.1} parent=11 // pred_check
          %p185 = pneg %p125
        $region26: #{hcn_forward.1} parent=11 // pred_check_branch
          %187 = sbr.rel (%p185) target = $region28
        $region27: #{hcn_forward.1} parent=11 // pred_region
          _
        $region28: #{hcn_forward.1} parent=11 // pred_fallthru
          _
      $region12: #{hcn_forward.1} parent=5 // pred_fallthru
        _
      %p188 = scmp.lt.s32.totalorder %s15, 2
      // Predicated region
      $region29: #{hcn_forward.1} parent=5 // pred_check
        %p189 = pneg %p188
      $region30: #{hcn_forward.1} parent=5 // pred_check_branch
        %191 = sbr.rel (%p189) target = $region32
      $region31: #{hcn_forward.1} parent=5 // pred_region
        // Predicated region
        $region33: #{hcn_forward.1} parent=31 // pred_check
          %p192 = pneg %p35
        $region34: #{hcn_forward.1} parent=31 // pred_check_branch
          %194 = sbr.rel (%p192) target = $region36
        $region35: #{hcn_forward.1} parent=31 // pred_region
          %s195 = smul.u32 16, %s15
          %p196 = scmp.lt.s32.totalorder %s195, 31
          %s197 = scalar_select %p196, %s195, 31
          %s198 = smul.addr %s197, 8
          %s199 = scalar_lea.vmem %s0, %s198
          %s200 = smul.u32 16, %s15
        $region36: #{hcn_forward.1} parent=31 // pred_fallthru
          _
      $region32: #{hcn_forward.1} parent=5 // pred_fallthru
        _
      %p201 = scmp.le.s32.totalorder 1, %s15
      %p202 = scmp.lt.s32.totalorder %s15, 3
      %p203 = pnand %p201, %p202
      %p204 = pneg %p203
      // Predicated region
      $region37: #{hcn_forward.1} parent=5 // pred_check
        _
      $region38: #{hcn_forward.1} parent=5 // pred_check_branch
        %206 = sbr.rel (%p203) target = $region40
      $region39: #{hcn_forward.1} parent=5 // pred_region
        %s207 = ssub.s32 %s15, 1
        // Predicated region
        $region41: #{hcn_forward.1} parent=39 // pred_check
          %p208 = pneg %p83
        $region42: #{hcn_forward.1} parent=39 // pred_check_branch
          %210 = sbr.rel (%p208) target = $region44
        $region43: #{hcn_forward.1} parent=39 // pred_region
          %211 = dma.done [#allocation3], 4096
        $region44: #{hcn_forward.1} parent=39 // pred_fallthru
          _
        %s212 = smul.u32 16, %s20
        %p213 = scmp.lt.s32.totalorder %s212, 31
        %s214 = scalar_select %p213, %s212, 31
        %s215 = smul.addr %s214, 8
        %s216 = scalar_lea.vmem %s0, %s215
        %p217 = pneg %p41
        %p218 = pneg %p38
        %p219 = pneg %p62
        %p220 = pneg %p59
        %p221 = pneg %p83
        %p222 = pneg %p80
        %p223 = pneg %p104
        %p224 = pneg %p101
        %p225 = pneg %p125
        %p226 = pneg %p122
        %p227 = pneg %p151
        %p228 = pneg %p148
        %s229 = sand.u32 %s138, 1
        %s230 = scalar_lea.sflag [#allocation4], %s229
        %s231 = sand.u32 %s138, 1
        %s232 = smul.addr %s231, 8
        %s233 = scalar_lea.vmem [#allocation5], %s232
        %s234 = smul.u32 16, %s20
        %p235 = scmp.lt.s32.totalorder %s234, 31
        %s236 = scalar_select %p235, %s234, 31
        %s237 = smul.addr %s236, 8
        %s238 = scalar_lea.vmem %s0, %s237
        %s239 = smul.u32 16, %s20
        %v241 = vld [vmem:[%s238] sm:$0xff]
        %v242 = vld [vmem:[%s238 + $0x8] sm:$0xff]
        %v243 = vld [vmem:[%s238 + $0x10] sm:$0xff]
        %v244 = vld [vmem:[%s238 + $0x18] sm:$0xff]
        %v245 = vld [vmem:[%s238 + $0x20] sm:$0xff]
        %v246 = vld [vmem:[%s238 + $0x28] sm:$0xff]
        %v247 = vld [vmem:[%s238 + $0x30] sm:$0xff]
        %v248 = vld [vmem:[%s238 + $0x38] sm:$0xff]
        %v249 = vld [vmem:[%s238 + $0x40] sm:$0xff]
        %v250 = vld [vmem:[%s238 + $0x48] sm:$0xff]
        %v251 = vld [vmem:[%s238 + $0x50] sm:$0xff]
        %v252 = vld [vmem:[%s238 + $0x58] sm:$0xff]
        %v253 = vld [vmem:[%s238 + $0x60] sm:$0xff]
        %v254 = vld [vmem:[%s238 + $0x68] sm:$0xff]
        %v255 = vld [vmem:[%s238 + $0x70] sm:$0xff]
        %v256 = vld [vmem:[%s238 + $0x78] sm:$0xff]
        %v257 = vld [vmem:[%s1] sm:$0xf]
        %v258 = vld [vmem:[%s1 + $0x4] sm:$0xf]
        %v259 = vld [vmem:[%s1 + $0x8] sm:$0xf]
        %v260 = vld [vmem:[%s1 + $0xc] sm:$0xf]
        %v261 = vld [vmem:[%s1 + $0x10] sm:$0xf]
        %v262 = vld [vmem:[%s1 + $0x14] sm:$0xf]
        %v263 = vld [vmem:[%s1 + $0x18] sm:$0xf]
        %v264 = vld [vmem:[%s1 + $0x1c] sm:$0xf]
        %v265 = vld [vmem:[%s1 + $0x20] sm:$0xf]
        %v266 = vld [vmem:[%s1 + $0x24] sm:$0xf]
        %v267 = vld [vmem:[%s1 + $0x28] sm:$0xf]
        %v268 = vld [vmem:[%s1 + $0x2c] sm:$0xf]
        %v269 = vld [vmem:[%s1 + $0x30] sm:$0xf]
        %v270 = vld [vmem:[%s1 + $0x34] sm:$0xf]
        %v271 = vld [vmem:[%s1 + $0x38] sm:$0xf]
        %v272 = vld [vmem:[%s1 + $0x3c] sm:$0xf]
        %v273 = vpack.c.bf16 %v242, %v241
        %v274 = vpack.c.bf16 %v244, %v243
        %v275 = vpack.c.bf16 %v246, %v245
        %v276 = vpack.c.bf16 %v248, %v247
        %v277 = vpack.c.bf16 %v250, %v249
        %v278 = vpack.c.bf16 %v252, %v251
        %v279 = vpack.c.bf16 %v254, %v253
        %v280 = vpack.c.bf16 %v256, %v255
        %v297 = vunpack.c.l.b16 %v257
        %v298 = vunpack.c.l.b16 %v258
        %v299 = vunpack.c.l.b16 %v259
        %v300 = vunpack.c.l.b16 %v260
        %v301 = vunpack.c.l.b16 %v261
        %v302 = vunpack.c.l.b16 %v262
        %v303 = vunpack.c.l.b16 %v263
        %v304 = vunpack.c.l.b16 %v264
        %v305 = vunpack.c.l.b16 %v265
        %v306 = vunpack.c.l.b16 %v266
        %v307 = vunpack.c.l.b16 %v267
        %v308 = vunpack.c.l.b16 %v268
        %v309 = vunpack.c.l.b16 %v269
        %v310 = vunpack.c.l.b16 %v270
        %v311 = vunpack.c.l.b16 %v271
        %v312 = vunpack.c.l.b16 %v272
        %v313 = vpack.c.b16 %v298, %v297
        %v314 = vpack.c.b16 %v300, %v299
        %v315 = vpack.c.b16 %v302, %v301
        %v316 = vpack.c.b16 %v304, %v303
        %v317 = vpack.c.b16 %v306, %v305
        %v318 = vpack.c.b16 %v308, %v307
        %v319 = vpack.c.b16 %v310, %v309
        %v320 = vpack.c.b16 %v312, %v311
        %329 = vmatprep.subr.bf16.mxu0 0
        %330 = vmatpush1.bf16.msra.mxu0 %v273
        %331 = vmatprep.subr.bf16.mxu0 0
        %332 = vmatpush1.bf16.msra.mxu0 %v274
        %333 = vmatprep.subr.bf16.mxu0 0
        %334 = vmatpush1.bf16.msra.mxu0 %v275
        %335 = vmatprep.subr.bf16.mxu0 0
        %336 = vmatpush1.bf16.msra.mxu0 %v276
        %337 = vmatprep.subr.bf16.mxu0 0
        %338 = vmatpush1.bf16.msra.mxu0 %v277
        %339 = vmatprep.subr.bf16.mxu0 0
        %340 = vmatpush1.bf16.msra.mxu0 %v278
        %341 = vmatprep.subr.bf16.mxu0 0
        %342 = vmatpush1.bf16.msra.mxu0 %v279
        %343 = vmatprep.subr.bf16.mxu0 0
        %344 = vmatpush1.bf16.msra.mxu0 %v280
        %345 = vmatprep.subr.bf16.mxu0 0
        %346 = vmatpush1.bf16.msra.mxu0 0
        %347 = vmatprep.subr.bf16.mxu0 0
        %348 = vmatpush1.bf16.msra.mxu0 0
        %349 = vmatprep.subr.bf16.mxu0 0
        %350 = vmatpush1.bf16.msra.mxu0 0
        %351 = vmatprep.subr.bf16.mxu0 0
        %352 = vmatpush1.bf16.msra.mxu0 0
        %353 = vmatprep.subr.bf16.mxu0 0
        %354 = vmatpush1.bf16.msra.mxu0 0
        %355 = vmatprep.subr.bf16.mxu0 0
        %356 = vmatpush1.bf16.msra.mxu0 0
        %357 = vmatprep.subr.bf16.mxu0 0
        %358 = vmatpush1.bf16.msra.mxu0 0
        %359 = vmatprep.subr.bf16.mxu0 0
        %360 = vmatpush1.bf16.msra.mxu0 0
        %361 = vmatprep.mubr.bf16.mxu0 0
        %362 = vmatmul.mubr.bf16.gmra.mrb[0].mxu0 %v313
        %v363 = vpop.f32.mrb[0].mxu0
        %v364 = vadd.f32 0.0, %v363
        %v365 = vpop.f32.mrb[0].mxu0
        %v366 = vpop.f32.mrb[0].mxu0
        %v367 = vadd.f32 0.0, %v366
        %v368 = vpop.f32.mrb[0].mxu0
        %369 = vmatprep.mubr.bf16.mxu0 0
        %370 = vmatmul.mubr.bf16.gmra.mrb[0].mxu0 %v314
        %v371 = vpop.f32.mrb[0].mxu0
        %v372 = vadd.f32 0.0, %v371
        %v373 = vpop.f32.mrb[0].mxu0
        %v374 = vpop.f32.mrb[0].mxu0
        %v375 = vadd.f32 0.0, %v374
        %v376 = vpop.f32.mrb[0].mxu0
        %377 = vmatprep.mubr.bf16.mxu0 0
        %378 = vmatmul.mubr.bf16.gmra.mrb[0].mxu0 %v315
        %v379 = vpop.f32.mrb[0].mxu0
        %v380 = vadd.f32 0.0, %v379
        %v381 = vpop.f32.mrb[0].mxu0
        %v382 = vpop.f32.mrb[0].mxu0
        %v383 = vadd.f32 0.0, %v382
        %v384 = vpop.f32.mrb[0].mxu0
        %385 = vmatprep.mubr.bf16.mxu0 0
        %386 = vmatmul.mubr.bf16.gmra.mrb[0].mxu0 %v316
        %v387 = vpop.f32.mrb[0].mxu0
        %v388 = vadd.f32 0.0, %v387
        %v389 = vpop.f32.mrb[0].mxu0
        %v390 = vpop.f32.mrb[0].mxu0
        %v391 = vadd.f32 0.0, %v390
        %v392 = vpop.f32.mrb[0].mxu0
        %393 = vmatprep.mubr.bf16.mxu0 0
        %394 = vmatmul.mubr.bf16.gmra.mrb[0].mxu0 %v317
        %v395 = vpop.f32.mrb[0].mxu0
        %v396 = vadd.f32 0.0, %v395
        %v397 = vpop.f32.mrb[0].mxu0
        %v398 = vpop.f32.mrb[0].mxu0
        %v399 = vadd.f32 0.0, %v398
        %v400 = vpop.f32.mrb[0].mxu0
        %401 = vmatprep.mubr.bf16.mxu0 0
        %402 = vmatmul.mubr.bf16.gmra.mrb[0].mxu0 %v318
        %v403 = vpop.f32.mrb[0].mxu0
        %v404 = vadd.f32 0.0, %v403
        %v405 = vpop.f32.mrb[0].mxu0
        %v406 = vpop.f32.mrb[0].mxu0
        %v407 = vadd.f32 0.0, %v406
        %v408 = vpop.f32.mrb[0].mxu0
        %409 = vmatprep.mubr.bf16.mxu0 0
        %410 = vmatmul.mubr.bf16.gmra.mrb[0].mxu0 %v319
        %v411 = vpop.f32.mrb[0].mxu0
        %v412 = vadd.f32 0.0, %v411
        %v413 = vpop.f32.mrb[0].mxu0
        %v414 = vpop.f32.mrb[0].mxu0
        %v415 = vadd.f32 0.0, %v414
        %v416 = vpop.f32.mrb[0].mxu0
        %417 = vmatprep.mubr.bf16.mxu0 0
        %418 = vmatmul.mubr.bf16.gmra.mrb[0].mxu0 %v320
        %v419 = vpop.f32.mrb[0].mxu0
        %v420 = vadd.f32 0.0, %v419
        %v421 = vpop.f32.mrb[0].mxu0
        %v422 = vpop.f32.mrb[0].mxu0
        %v423 = vadd.f32 0.0, %v422
        %v424 = vpop.f32.mrb[0].mxu0
        %425 = vdwg.mxu0
        %v426 = vld [vmem:[%s1 + $0x40] sm:$0xf]
        %v427 = vld [vmem:[%s1 + $0x44] sm:$0xf]
        %v428 = vld [vmem:[%s1 + $0x48] sm:$0xf]
        %v429 = vpack.c.bf16 %v367, %v364
        %v430 = vpack.c.bf16 %v375, %v372
        %v431 = vpack.c.bf16 %v383, %v380
        %v432 = vpack.c.bf16 %v391, %v388
        %v433 = vpack.c.bf16 %v399, %v396
        %v434 = vpack.c.bf16 %v407, %v404
        %v435 = vpack.c.bf16 %v415, %v412
        %v436 = vpack.c.bf16 %v423, %v420
        %v437 = vld [vmem:[%s3] sm:$0x1]
        %v438 = vlaneseq
        %v439 = vshrl.u32 %v438, 7
        %v440 = vsub.s32 0, %v439
        %v441 = vrot.slane %v437, %v440
        %v445 = vunpack.c.l.b16 %v426
        %v446 = vunpack.c.l.b16 %v427
        %v447 = vunpack.c.l.b16 %v428
        %v448 = vpack.c.b16 %v446, %v445
        %v449 = vpack.c.b16 %v447, %v447
        %vm451 = vcmask 195584
        %v453 = vsel %vm451, %v429, 0
        %v456 = vsel %vm451, %v430, 0
        %v459 = vsel %vm451, %v431, 0
        %v462 = vsel %vm451, %v432, 0
        %v465 = vsel %vm451, %v433, 0
        %v468 = vsel %vm451, %v434, 0
        %v471 = vsel %vm451, %v435, 0
        %v474 = vsel %vm451, %v436, 0
        %vm476 = vcmask 1043456
        %v478 = vsel %vm476, %v449, 0
        %480 = vmatprep.subr.bf16.mxu0 0
        %481 = vmatpush1.bf16.msra.mxu0 %v448
        %482 = vmatprep.subr.bf16.mxu0 0
        %483 = vmatpush1.bf16.msra.mxu0 %v478
        %484 = vmatprep.subr.bf16.mxu0 0
        %485 = vmatpush1.bf16.msra.mxu0 0
        %486 = vmatprep.subr.bf16.mxu0 0
        %487 = vmatpush1.bf16.msra.mxu0 0
        %488 = vmatprep.subr.bf16.mxu0 0
        %489 = vmatpush1.bf16.msra.mxu0 0
        %490 = vmatprep.subr.bf16.mxu0 0
        %491 = vmatpush1.bf16.msra.mxu0 0
        %492 = vmatprep.subr.bf16.mxu0 0
        %493 = vmatpush1.bf16.msra.mxu0 0
        %494 = vmatprep.subr.bf16.mxu0 0
        %495 = vmatpush1.bf16.msra.mxu0 0
        %496 = vmatprep.subr.bf16.mxu0 0
        %497 = vmatpush1.bf16.msra.mxu0 0
        %498 = vmatprep.subr.bf16.mxu0 0
        %499 = vmatpush1.bf16.msra.mxu0 0
        %500 = vmatprep.subr.bf16.mxu0 0
        %501 = vmatpush1.bf16.msra.mxu0 0
        %502 = vmatprep.subr.bf16.mxu0 0
        %503 = vmatpush1.bf16.msra.mxu0 0
        %504 = vmatprep.subr.bf16.mxu0 0
        %505 = vmatpush1.bf16.msra.mxu0 0
        %506 = vmatprep.subr.bf16.mxu0 0
        %507 = vmatpush1.bf16.msra.mxu0 0
        %508 = vmatprep.subr.bf16.mxu0 0
        %509 = vmatpush1.bf16.msra.mxu0 0
        %510 = vmatprep.subr.bf16.mxu0 0
        %511 = vmatpush1.bf16.msra.mxu0 0
        %512 = vmatprep.mubr.bf16.mxu0 0
        %513 = vmatmul.mubr.bf16.gmra.mrb[0].mxu0 %v453
        %v514 = vpop.f32.mrb[0].mxu0
        %v515 = vadd.f32 %v441, %v514
        %v516 = vpop.f32.mrb[0].mxu0
        %v517 = vpop.f32.mrb[0].mxu0
        %v518 = vadd.f32 %v441, %v517
        %v519 = vpop.f32.mrb[0].mxu0
        %520 = vmatprep.mubr.bf16.mxu0 0
        %521 = vmatmul.mubr.bf16.gmra.mrb[0].mxu0 %v456
        %v522 = vpop.f32.mrb[0].mxu0
        %v523 = vadd.f32 %v441, %v522
        %v524 = vpop.f32.mrb[0].mxu0
        %v525 = vpop.f32.mrb[0].mxu0
        %v526 = vadd.f32 %v441, %v525
        %v527 = vpop.f32.mrb[0].mxu0
        %528 = vmatprep.mubr.bf16.mxu0 0
        %529 = vmatmul.mubr.bf16.gmra.mrb[0].mxu0 %v459
        %v530 = vpop.f32.mrb[0].mxu0
        %v531 = vadd.f32 %v441, %v530
        %v532 = vpop.f32.mrb[0].mxu0
        %v533 = vpop.f32.mrb[0].mxu0
        %v534 = vadd.f32 %v441, %v533
        %v535 = vpop.f32.mrb[0].mxu0
        %536 = vmatprep.mubr.bf16.mxu0 0
        %537 = vmatmul.mubr.bf16.gmra.mrb[0].mxu0 %v462
        %v538 = vpop.f32.mrb[0].mxu0
        %v539 = vadd.f32 %v441, %v538
        %v540 = vpop.f32.mrb[0].mxu0
        %v541 = vpop.f32.mrb[0].mxu0
        %v542 = vadd.f32 %v441, %v541
        %v543 = vpop.f32.mrb[0].mxu0
        %544 = vmatprep.mubr.bf16.mxu0 0
        %545 = vmatmul.mubr.bf16.gmra.mrb[0].mxu0 %v465
        %v546 = vpop.f32.mrb[0].mxu0
        %v547 = vadd.f32 %v441, %v546
        %v548 = vpop.f32.mrb[0].mxu0
        %v549 = vpop.f32.mrb[0].mxu0
        %v550 = vadd.f32 %v441, %v549
        %v551 = vpop.f32.mrb[0].mxu0
        %552 = vmatprep.mubr.bf16.mxu0 0
        %553 = vmatmul.mubr.bf16.gmra.mrb[0].mxu0 %v468
        %v554 = vpop.f32.mrb[0].mxu0
        %v555 = vadd.f32 %v441, %v554
        %v556 = vpop.f32.mrb[0].mxu0
        %v557 = vpop.f32.mrb[0].mxu0
        %v558 = vadd.f32 %v441, %v557
        %v559 = vpop.f32.mrb[0].mxu0
        %560 = vmatprep.mubr.bf16.mxu0 0
        %561 = vmatmul.mubr.bf16.gmra.mrb[0].mxu0 %v471
        %v562 = vpop.f32.mrb[0].mxu0
        %v563 = vadd.f32 %v441, %v562
        %v564 = vpop.f32.mrb[0].mxu0
        %v565 = vpop.f32.mrb[0].mxu0
        %v566 = vadd.f32 %v441, %v565
        %v567 = vpop.f32.mrb[0].mxu0
        %568 = vmatprep.mubr.bf16.mxu0 0
        %569 = vmatmul.mubr.bf16.gmra.mrb[0].mxu0 %v474
        %v570 = vpop.f32.mrb[0].mxu0
        %v571 = vadd.f32 %v441, %v570
        %v572 = vpop.f32.mrb[0].mxu0
        %v573 = vpop.f32.mrb[0].mxu0
        %v574 = vadd.f32 %v441, %v573
        %v575 = vpop.f32.mrb[0].mxu0
        %576 = vdwg.mxu0
        %v577 = vmax.f32 %v515, 0.0
        %v578 = vmax.f32 %v518, 0.0
        %v579 = vmax.f32 %v523, 0.0
        %v580 = vmax.f32 %v526, 0.0
        %v581 = vmax.f32 %v531, 0.0
        %v582 = vmax.f32 %v534, 0.0
        %v583 = vmax.f32 %v539, 0.0
        %v584 = vmax.f32 %v542, 0.0
        %v585 = vmax.f32 %v547, 0.0
        %v586 = vmax.f32 %v550, 0.0
        %v587 = vmax.f32 %v555, 0.0
        %v588 = vmax.f32 %v558, 0.0
        %v589 = vmax.f32 %v563, 0.0
        %v590 = vmax.f32 %v566, 0.0
        %v591 = vmax.f32 %v571, 0.0
        %v592 = vmax.f32 %v574, 0.0
        %v593 = vrot.slane %v577, 1
        %v594 = vrot.slane %v578, 1
        %v595 = vrot.slane %v579, 1
        %v596 = vrot.slane %v580, 1
        %v597 = vrot.slane %v581, 1
        %v598 = vrot.slane %v582, 1
        %v599 = vrot.slane %v583, 1
        %v600 = vrot.slane %v584, 1
        %v601 = vrot.slane %v585, 1
        %v602 = vrot.slane %v586, 1
        %v603 = vrot.slane %v587, 1
        %v604 = vrot.slane %v588, 1
        %v605 = vrot.slane %v589, 1
        %v606 = vrot.slane %v590, 1
        %v607 = vrot.slane %v591, 1
        %v608 = vrot.slane %v592, 1
        %v609 = vlaneseq
        %v610 = vshrl.u32 %v609, 7
        %vm611 = vcmp.lt.s32.totalorder %v610, 7
        %v612 = vsel %vm611, %v607, %v608
        %v613 = vsel %vm611, %v606, %v607
        %v614 = vsel %vm611, %v605, %v606
        %v615 = vsel %vm611, %v604, %v605
        %v616 = vsel %vm611, %v603, %v604
        %v617 = vsel %vm611, %v602, %v603
        %v618 = vsel %vm611, %v601, %v602
        %v619 = vsel %vm611, %v600, %v601
        %v620 = vsel %vm611, %v599, %v600
        %v621 = vsel %vm611, %v598, %v599
        %v622 = vsel %vm611, %v597, %v598
        %v623 = vsel %vm611, %v596, %v597
        %v624 = vsel %vm611, %v595, %v596
        %v625 = vsel %vm611, %v594, %v595
        %v626 = vsel %vm611, %v593, %v594
        %v627 = vsel %vm611, %v608, %v593
        %v628 = vrot.slane %v577, 7
        %v629 = vrot.slane %v578, 7
        %v630 = vrot.slane %v579, 7
        %v631 = vrot.slane %v580, 7
        %v632 = vrot.slane %v581, 7
        %v633 = vrot.slane %v582, 7
        %v634 = vrot.slane %v583, 7
        %v635 = vrot.slane %v584, 7
        %v636 = vrot.slane %v585, 7
        %v637 = vrot.slane %v586, 7
        %v638 = vrot.slane %v587, 7
        %v639 = vrot.slane %v588, 7
        %v640 = vrot.slane %v589, 7
        %v641 = vrot.slane %v590, 7
        %v642 = vrot.slane %v591, 7
        %v643 = vrot.slane %v592, 7
        %vm644 = vcmp.lt.s32.totalorder %v610, 1
        %v645 = vsel %vm644, %v642, %v643
        %v646 = vsel %vm644, %v641, %v642
        %v647 = vsel %vm644, %v640, %v641
        %v648 = vsel %vm644, %v639, %v640
        %v649 = vsel %vm644, %v638, %v639
        %v650 = vsel %vm644, %v637, %v638
        %v651 = vsel %vm644, %v636, %v637
        %v652 = vsel %vm644, %v635, %v636
        %v653 = vsel %vm644, %v634, %v635
        %v654 = vsel %vm644, %v633, %v634
        %v655 = vsel %vm644, %v632, %v633
        %v656 = vsel %vm644, %v631, %v632
        %v657 = vsel %vm644, %v630, %v631
        %v658 = vsel %vm644, %v629, %v630
        %v659 = vsel %vm644, %v628, %v629
        %v660 = vsel %vm644, %v643, %v628
        %v661 = vadd.s32 %v610, 8
        %v662 = vadd.s32 %v610, 16
        %v663 = vadd.s32 %v610, 24
        %v664 = vadd.s32 %v610, 32
        %v665 = vadd.s32 %v610, 40
        %v666 = vadd.s32 %v610, 48
        %v667 = vadd.s32 %v610, 56
        %v668 = vadd.s32 %v610, 64
        %v669 = vadd.s32 %v610, 72
        %v670 = vadd.s32 %v610, 80
        %v671 = vadd.s32 %v610, 88
        %v672 = vadd.s32 %v610, 96
        %v673 = vadd.s32 %v610, 104
        %v674 = vadd.s32 %v610, 112
        %v675 = vadd.s32 %v610, 120
        %vm676 = vcmp.lt.s32.totalorder %v610, 0
        %v677 = vsub.s32 0, %v610
        %v678 = vsel %vm676, %v677, %v610
        %v679 = vshrl.u32 %v678, 4
        %v680 = vand.u32 %v678, 15
        %v681 = vsub.s32 0, %v680
        %v682 = vsel %vm676, %v681, %v680
        %vm683 = vcmp.lt.s32.totalorder %v661, 0
        %v684 = vsub.s32 0, %v661
        %v685 = vsel %vm683, %v684, %v661
        %v686 = vshrl.u32 %v685, 4
        %v687 = vand.u32 %v685, 15
        %v688 = vsub.s32 0, %v687
        %v689 = vsel %vm683, %v688, %v687
        %vm690 = vcmp.lt.s32.totalorder %v662, 0
        %v691 = vsub.s32 0, %v662
        %v692 = vsel %vm690, %v691, %v662
        %v693 = vshrl.u32 %v692, 4
        %v694 = vand.u32 %v692, 15
        %v695 = vsub.s32 0, %v694
        %v696 = vsel %vm690, %v695, %v694
        %vm697 = vcmp.lt.s32.totalorder %v663, 0
        %v698 = vsub.s32 0, %v663
        %v699 = vsel %vm697, %v698, %v663
        %v700 = vshrl.u32 %v699, 4
        %v701 = vand.u32 %v699, 15
        %v702 = vsub.s32 0, %v701
        %v703 = vsel %vm697, %v702, %v701
        %vm704 = vcmp.lt.s32.totalorder %v664, 0
        %v705 = vsub.s32 0, %v664
        %v706 = vsel %vm704, %v705, %v664
        %v707 = vshrl.u32 %v706, 4
        %v708 = vand.u32 %v706, 15
        %v709 = vsub.s32 0, %v708
        %v710 = vsel %vm704, %v709, %v708
        %vm711 = vcmp.lt.s32.totalorder %v665, 0
        %v712 = vsub.s32 0, %v665
        %v713 = vsel %vm711, %v712, %v665
        %v714 = vshrl.u32 %v713, 4
        %v715 = vand.u32 %v713, 15
        %v716 = vsub.s32 0, %v715
        %v717 = vsel %vm711, %v716, %v715
        %vm718 = vcmp.lt.s32.totalorder %v666, 0
        %v719 = vsub.s32 0, %v666
        %v720 = vsel %vm718, %v719, %v666
        %v721 = vshrl.u32 %v720, 4
        %v722 = vand.u32 %v720, 15
        %v723 = vsub.s32 0, %v722
        %v724 = vsel %vm718, %v723, %v722
        %vm725 = vcmp.lt.s32.totalorder %v667, 0
        %v726 = vsub.s32 0, %v667
        %v727 = vsel %vm725, %v726, %v667
        %v728 = vshrl.u32 %v727, 4
        %v729 = vand.u32 %v727, 15
        %v730 = vsub.s32 0, %v729
        %v731 = vsel %vm725, %v730, %v729
        %vm732 = vcmp.lt.s32.totalorder %v668, 0
        %v733 = vsub.s32 0, %v668
        %v734 = vsel %vm732, %v733, %v668
        %v735 = vshrl.u32 %v734, 4
        %v736 = vand.u32 %v734, 15
        %v737 = vsub.s32 0, %v736
        %v738 = vsel %vm732, %v737, %v736
        %vm739 = vcmp.lt.s32.totalorder %v669, 0
        %v740 = vsub.s32 0, %v669
        %v741 = vsel %vm739, %v740, %v669
        %v742 = vshrl.u32 %v741, 4
        %v743 = vand.u32 %v741, 15
        %v744 = vsub.s32 0, %v743
        %v745 = vsel %vm739, %v744, %v743
        %vm746 = vcmp.lt.s32.totalorder %v670, 0
        %v747 = vsub.s32 0, %v670
        %v748 = vsel %vm746, %v747, %v670
        %v749 = vshrl.u32 %v748, 4
        %v750 = vand.u32 %v748, 15
        %v751 = vsub.s32 0, %v750
        %v752 = vsel %vm746, %v751, %v750
        %vm753 = vcmp.lt.s32.totalorder %v671, 0
        %v754 = vsub.s32 0, %v671
        %v755 = vsel %vm753, %v754, %v671
        %v756 = vshrl.u32 %v755, 4
        %v757 = vand.u32 %v755, 15
        %v758 = vsub.s32 0, %v757
        %v759 = vsel %vm753, %v758, %v757
        %vm760 = vcmp.lt.s32.totalorder %v672, 0
        %v761 = vsub.s32 0, %v672
        %v762 = vsel %vm760, %v761, %v672
        %v763 = vshrl.u32 %v762, 4
        %v764 = vand.u32 %v762, 15
        %v765 = vsub.s32 0, %v764
        %v766 = vsel %vm760, %v765, %v764
        %vm767 = vcmp.lt.s32.totalorder %v673, 0
        %v768 = vsub.s32 0, %v673
        %v769 = vsel %vm767, %v768, %v673
        %v770 = vshrl.u32 %v769, 4
        %v771 = vand.u32 %v769, 15
        %v772 = vsub.s32 0, %v771
        %v773 = vsel %vm767, %v772, %v771
        %vm774 = vcmp.lt.s32.totalorder %v674, 0
        %v775 = vsub.s32 0, %v674
        %v776 = vsel %vm774, %v775, %v674
        %v777 = vshrl.u32 %v776, 4
        %v778 = vand.u32 %v776, 15
        %v779 = vsub.s32 0, %v778
        %v780 = vsel %vm774, %v779, %v778
        %vm781 = vcmp.lt.s32.totalorder %v675, 0
        %v782 = vsub.s32 0, %v675
        %v783 = vsel %vm781, %v782, %v675
        %v784 = vshrl.u32 %v783, 4
        %v785 = vand.u32 %v783, 15
        %v786 = vsub.s32 0, %v785
        %v787 = vsel %vm781, %v786, %v785
        %vm788 = vcmp.ne.s32.totalorder %v682, 0
        %vm789 = vcmp.ne.s32.totalorder %v689, 0
        %vm790 = vcmp.ne.s32.totalorder %v696, 0
        %vm791 = vcmp.ne.s32.totalorder %v703, 0
        %vm792 = vcmp.ne.s32.totalorder %v710, 0
        %vm793 = vcmp.ne.s32.totalorder %v717, 0
        %vm794 = vcmp.ne.s32.totalorder %v724, 0
        %vm795 = vcmp.ne.s32.totalorder %v731, 0
        %vm796 = vcmp.ne.s32.totalorder %v738, 0
        %vm797 = vcmp.ne.s32.totalorder %v745, 0
        %vm798 = vcmp.ne.s32.totalorder %v752, 0
        %vm799 = vcmp.ne.s32.totalorder %v759, 0
        %vm800 = vcmp.ne.s32.totalorder %v766, 0
        %vm801 = vcmp.ne.s32.totalorder %v773, 0
        %vm802 = vcmp.ne.s32.totalorder %v780, 0
        %vm803 = vcmp.ne.s32.totalorder %v787, 0
        %vm804 = vcmp.lt.s32.totalorder %v682, 0
        %vm805 = vcmp.lt.s32.totalorder %v689, 0
        %vm806 = vcmp.lt.s32.totalorder %v696, 0
        %vm807 = vcmp.lt.s32.totalorder %v703, 0
        %vm808 = vcmp.lt.s32.totalorder %v710, 0
        %vm809 = vcmp.lt.s32.totalorder %v717, 0
        %vm810 = vcmp.lt.s32.totalorder %v724, 0
        %vm811 = vcmp.lt.s32.totalorder %v731, 0
        %vm812 = vcmp.lt.s32.totalorder %v738, 0
        %vm813 = vcmp.lt.s32.totalorder %v745, 0
        %vm814 = vcmp.lt.s32.totalorder %v752, 0
        %vm815 = vcmp.lt.s32.totalorder %v759, 0
        %vm816 = vcmp.lt.s32.totalorder %v766, 0
        %vm817 = vcmp.lt.s32.totalorder %v773, 0
        %vm818 = vcmp.lt.s32.totalorder %v780, 0
        %vm819 = vcmp.lt.s32.totalorder %v787, 0
        %vm820 = vmand %vm804, %vm788
        %vm821 = vmand %vm805, %vm789
        %vm822 = vmand %vm806, %vm790
        %vm823 = vmand %vm807, %vm791
        %vm824 = vmand %vm808, %vm792
        %vm825 = vmand %vm809, %vm793
        %vm826 = vmand %vm810, %vm794
        %vm827 = vmand %vm811, %vm795
        %vm828 = vmand %vm812, %vm796
        %vm829 = vmand %vm813, %vm797
        %vm830 = vmand %vm814, %vm798
        %vm831 = vmand %vm815, %vm799
        %vm832 = vmand %vm816, %vm800
        %vm833 = vmand %vm817, %vm801
        %vm834 = vmand %vm818, %vm802
        %vm835 = vmand %vm819, %vm803
        %v836 = vadd.s32 %v682, 16
        %v837 = vadd.s32 %v689, 16
        %v838 = vadd.s32 %v696, 16
        %v839 = vadd.s32 %v703, 16
        %v840 = vadd.s32 %v710, 16
        %v841 = vadd.s32 %v717, 16
        %v842 = vadd.s32 %v724, 16
        %v843 = vadd.s32 %v731, 16
        %v844 = vadd.s32 %v738, 16
        %v845 = vadd.s32 %v745, 16
        %v846 = vadd.s32 %v752, 16
        %v847 = vadd.s32 %v759, 16
        %v848 = vadd.s32 %v766, 16
        %v849 = vadd.s32 %v773, 16
        %v850 = vadd.s32 %v780, 16
        %v851 = vadd.s32 %v787, 16
        %v852 = vsel %vm820, %v836, %v682
        %v853 = vsel %vm821, %v837, %v689
        %v854 = vsel %vm822, %v838, %v696
        %v855 = vsel %vm823, %v839, %v703
        %v856 = vsel %vm824, %v840, %v710
        %v857 = vsel %vm825, %v841, %v717
        %v858 = vsel %vm826, %v842, %v724
        %v859 = vsel %vm827, %v843, %v731
        %v860 = vsel %vm828, %v844, %v738
        %v861 = vsel %vm829, %v845, %v745
        %v862 = vsel %vm830, %v846, %v752
        %v863 = vsel %vm831, %v847, %v759
        %v864 = vsel %vm832, %v848, %v766
        %v865 = vsel %vm833, %v849, %v773
        %v866 = vsel %vm834, %v850, %v780
        %v867 = vsel %vm835, %v851, %v787
        %vm868 = vcmp.ne.s32.totalorder %v852, 15
        %vm869 = vcmp.ne.s32.totalorder %v853, 15
        %vm870 = vcmp.ne.s32.totalorder %v854, 15
        %vm871 = vcmp.ne.s32.totalorder %v855, 15
        %vm872 = vcmp.ne.s32.totalorder %v856, 15
        %vm873 = vcmp.ne.s32.totalorder %v857, 15
        %vm874 = vcmp.ne.s32.totalorder %v858, 15
        %vm875 = vcmp.ne.s32.totalorder %v859, 15
        %vm876 = vcmp.ne.s32.totalorder %v860, 15
        %vm877 = vcmp.ne.s32.totalorder %v861, 15
        %vm878 = vcmp.ne.s32.totalorder %v862, 15
        %vm879 = vcmp.ne.s32.totalorder %v863, 15
        %vm880 = vcmp.ne.s32.totalorder %v864, 15
        %vm881 = vcmp.ne.s32.totalorder %v865, 15
        %vm882 = vcmp.ne.s32.totalorder %v866, 15
        %vm883 = vcmp.ne.s32.totalorder %v867, 15
        %v884 = vsel %vm868, %v626, 0.0
        %v885 = vsel %vm869, %v625, 0.0
        %v886 = vsel %vm870, %v624, 0.0
        %v887 = vsel %vm871, %v623, 0.0
        %v888 = vsel %vm872, %v622, 0.0
        %v889 = vsel %vm873, %v621, 0.0
        %v890 = vsel %vm874, %v620, 0.0
        %v891 = vsel %vm875, %v619, 0.0
        %v892 = vsel %vm876, %v618, 0.0
        %v893 = vsel %vm877, %v617, 0.0
        %v894 = vsel %vm878, %v616, 0.0
        %v895 = vsel %vm879, %v615, 0.0
        %v896 = vsel %vm880, %v614, 0.0
        %v897 = vsel %vm881, %v613, 0.0
        %v898 = vsel %vm882, %v612, 0.0
        %v899 = vsel %vm883, %v627, 0.0
        %vm900 = vcmp.ne.s32.totalorder %v852, 0
        %vm901 = vcmp.ne.s32.totalorder %v853, 0
        %vm902 = vcmp.ne.s32.totalorder %v854, 0
        %vm903 = vcmp.ne.s32.totalorder %v855, 0
        %vm904 = vcmp.ne.s32.totalorder %v856, 0
        %vm905 = vcmp.ne.s32.totalorder %v857, 0
        %vm906 = vcmp.ne.s32.totalorder %v858, 0
        %vm907 = vcmp.ne.s32.totalorder %v859, 0
        %vm908 = vcmp.ne.s32.totalorder %v860, 0
        %vm909 = vcmp.ne.s32.totalorder %v861, 0
        %vm910 = vcmp.ne.s32.totalorder %v862, 0
        %vm911 = vcmp.ne.s32.totalorder %v863, 0
        %vm912 = vcmp.ne.s32.totalorder %v864, 0
        %vm913 = vcmp.ne.s32.totalorder %v865, 0
        %vm914 = vcmp.ne.s32.totalorder %v866, 0
        %vm915 = vcmp.ne.s32.totalorder %v867, 0
        %v916 = vsel %vm900, %v660, 0.0
        %v917 = vsel %vm901, %v659, 0.0
        %v918 = vsel %vm902, %v658, 0.0
        %v919 = vsel %vm903, %v657, 0.0
        %v920 = vsel %vm904, %v656, 0.0
        %v921 = vsel %vm905, %v655, 0.0
        %v922 = vsel %vm906, %v654, 0.0
        %v923 = vsel %vm907, %v653, 0.0
        %v924 = vsel %vm908, %v652, 0.0
        %v925 = vsel %vm909, %v651, 0.0
        %v926 = vsel %vm910, %v650, 0.0
        %v927 = vsel %vm911, %v649, 0.0
        %v928 = vsel %vm912, %v648, 0.0
        %v929 = vsel %vm913, %v647, 0.0
        %v930 = vsel %vm914, %v646, 0.0
        %v931 = vsel %vm915, %v645, 0.0
        %v932 = vld [vmem:[%s1 + $0x50] sm:$0xf]
        %v933 = vld [vmem:[%s1 + $0x54] sm:$0xf]
        %v934 = vld [vmem:[%s1 + $0x58] sm:$0xf]
        %v935 = vld [vmem:[%s1 + $0x5c] sm:$0xf]
        %v936 = vld [vmem:[%s1 + $0x60] sm:$0xf]
        %v937 = vld [vmem:[%s1 + $0x64] sm:$0xf]
        %v938 = vld [vmem:[%s1 + $0x68] sm:$0xf]
        %v939 = vld [vmem:[%s1 + $0x6c] sm:$0xf]
        %v940 = vld [vmem:[%s1 + $0x70] sm:$0xf]
        %v941 = vld [vmem:[%s1 + $0x74] sm:$0xf]
        %v942 = vld [vmem:[%s1 + $0x78] sm:$0xf]
        %v943 = vld [vmem:[%s1 + $0x7c] sm:$0xf]
        %v944 = vld [vmem:[%s1 + $0x80] sm:$0xf]
        %v945 = vld [vmem:[%s1 + $0x84] sm:$0xf]
        %v946 = vld [vmem:[%s1 + $0x88] sm:$0xf]
        %v947 = vld [vmem:[%s1 + $0x8c] sm:$0xf]
        %v948 = vld [vmem:[%s1 + $0x90] sm:$0xf]
        %v949 = vld [vmem:[%s1 + $0x94] sm:$0xf]
        %v950 = vld [vmem:[%s1 + $0x98] sm:$0xf]
        %v951 = vld [vmem:[%s1 + $0x9c] sm:$0xf]
        %v952 = vld [vmem:[%s1 + $0xa0] sm:$0xf]
        %v953 = vld [vmem:[%s1 + $0xa4] sm:$0xf]
        %v954 = vld [vmem:[%s1 + $0xa8] sm:$0xf]
        %v955 = vld [vmem:[%s1 + $0xac] sm:$0xf]
        %v956 = vld [vmem:[%s1 + $0xb0] sm:$0xf]
        %v957 = vld [vmem:[%s1 + $0xb4] sm:$0xf]
        %v958 = vld [vmem:[%s1 + $0xb8] sm:$0xf]
        %v959 = vld [vmem:[%s1 + $0xbc] sm:$0xf]
        %v960 = vld [vmem:[%s1 + $0xc0] sm:$0xf]
        %v961 = vld [vmem:[%s1 + $0xc4] sm:$0xf]
        %v962 = vld [vmem:[%s1 + $0xc8] sm:$0xf]
        %v963 = vld [vmem:[%s1 + $0xcc] sm:$0xf]
        %v964 = vld [vmem:[%s1 + $0xd0] sm:$0xf]
        %v965 = vld [vmem:[%s1 + $0xd4] sm:$0xf]
        %v966 = vld [vmem:[%s1 + $0xd8] sm:$0xf]
        %v967 = vld [vmem:[%s1 + $0xdc] sm:$0xf]
        %v968 = vld [vmem:[%s1 + $0xe0] sm:$0xf]
        %v969 = vld [vmem:[%s1 + $0xe4] sm:$0xf]
        %v970 = vld [vmem:[%s1 + $0xe8] sm:$0xf]
        %v971 = vld [vmem:[%s1 + $0xec] sm:$0xf]
        %v972 = vld [vmem:[%s1 + $0xf0] sm:$0xf]
        %v973 = vld [vmem:[%s1 + $0xf4] sm:$0xf]
        %v974 = vld [vmem:[%s1 + $0xf8] sm:$0xf]
        %v975 = vld [vmem:[%s1 + $0xfc] sm:$0xf]
        %v976 = vld [vmem:[%s1 + $0x100] sm:$0xf]
        %v977 = vld [vmem:[%s1 + $0x104] sm:$0xf]
        %v978 = vld [vmem:[%s1 + $0x108] sm:$0xf]
        %v979 = vld [vmem:[%s1 + $0x10c] sm:$0xf]
        %v980 = vpack.c.bf16 %v917, %v916
        %v981 = vpack.c.bf16 %v578, %v577
        %v982 = vpack.c.bf16 %v885, %v884
        %v983 = vpack.c.bf16 %v919, %v918
        %v984 = vpack.c.bf16 %v580, %v579
        %v985 = vpack.c.bf16 %v887, %v886
        %v986 = vpack.c.bf16 %v921, %v920
        %v987 = vpack.c.bf16 %v582, %v581
        %v988 = vpack.c.bf16 %v889, %v888
        %v989 = vpack.c.bf16 %v923, %v922
        %v990 = vpack.c.bf16 %v584, %v583
        %v991 = vpack.c.bf16 %v891, %v890
        %v992 = vpack.c.bf16 %v925, %v924
        %v993 = vpack.c.bf16 %v586, %v585
        %v994 = vpack.c.bf16 %v893, %v892
        %v995 = vpack.c.bf16 %v927, %v926
        %v996 = vpack.c.bf16 %v588, %v587
        %v997 = vpack.c.bf16 %v895, %v894
        %v998 = vpack.c.bf16 %v929, %v928
        %v999 = vpack.c.bf16 %v590, %v589
        %v1000 = vpack.c.bf16 %v897, %v896
        %v1001 = vpack.c.bf16 %v931, %v930
        %v1002 = vpack.c.bf16 %v592, %v591
        %v1003 = vpack.c.bf16 %v899, %v898
        %v1004 = vld [vmem:[%s3 + $0x1] sm:$0x1]
        %v1005 = vlaneseq
        %v1006 = vshrl.u32 %v1005, 7
        %v1007 = vsub.s32 0, %v1006
        %v1008 = vrot.slane %v1004, %v1007
        %v1057 = vunpack.c.l.b16 %v932
        %v1058 = vunpack.c.l.b16 %v933
        %v1059 = vunpack.c.l.b16 %v934
        %v1060 = vunpack.c.l.b16 %v935
        %v1061 = vunpack.c.l.b16 %v936
        %v1062 = vunpack.c.l.b16 %v937
        %v1063 = vunpack.c.l.b16 %v938
        %v1064 = vunpack.c.l.b16 %v939
        %v1065 = vunpack.c.l.b16 %v940
        %v1066 = vunpack.c.l.b16 %v941
        %v1067 = vunpack.c.l.b16 %v942
        %v1068 = vunpack.c.l.b16 %v943
        %v1069 = vunpack.c.l.b16 %v944
        %v1070 = vunpack.c.l.b16 %v945
        %v1071 = vunpack.c.l.b16 %v946
        %v1072 = vunpack.c.l.b16 %v947
        %v1073 = vunpack.c.l.b16 %v948
        %v1074 = vunpack.c.l.b16 %v949
        %v1075 = vunpack.c.l.b16 %v950
        %v1076 = vunpack.c.l.b16 %v951
        %v1077 = vunpack.c.l.b16 %v952
        %v1078 = vunpack.c.l.b16 %v953
        %v1079 = vunpack.c.l.b16 %v954
        %v1080 = vunpack.c.l.b16 %v955
        %v1081 = vunpack.c.l.b16 %v956
        %v1082 = vunpack.c.l.b16 %v957
        %v1083 = vunpack.c.l.b16 %v958
        %v1084 = vunpack.c.l.b16 %v959
        %v1085 = vunpack.c.l.b16 %v960
        %v1086 = vunpack.c.l.b16 %v961
        %v1087 = vunpack.c.l.b16 %v962
        %v1088 = vunpack.c.l.b16 %v963
        %v1089 = vunpack.c.l.b16 %v964
        %v1090 = vunpack.c.l.b16 %v965
        %v1091 = vunpack.c.l.b16 %v966
        %v1092 = vunpack.c.l.b16 %v967
        %v1093 = vunpack.c.l.b16 %v968
        %v1094 = vunpack.c.l.b16 %v969
        %v1095 = vunpack.c.l.b16 %v970
        %v1096 = vunpack.c.l.b16 %v971
        %v1097 = vunpack.c.l.b16 %v972
        %v1098 = vunpack.c.l.b16 %v973
        %v1099 = vunpack.c.l.b16 %v974
        %v1100 = vunpack.c.l.b16 %v975
        %v1101 = vunpack.c.l.b16 %v976
        %v1102 = vunpack.c.l.b16 %v977
        %v1103 = vunpack.c.l.b16 %v978
        %v1104 = vunpack.c.l.b16 %v979
        %v1105 = vpack.c.b16 %v1058, %v1057
        %v1106 = vpack.c.b16 %v1060, %v1059
        %v1107 = vpack.c.b16 %v1062, %v1061
        %v1108 = vpack.c.b16 %v1064, %v1063
        %v1109 = vpack.c.b16 %v1066, %v1065
        %v1110 = vpack.c.b16 %v1068, %v1067
        %v1111 = vpack.c.b16 %v1070, %v1069
        %v1112 = vpack.c.b16 %v1072, %v1071
        %v1113 = vpack.c.b16 %v1074, %v1073
        %v1114 = vpack.c.b16 %v1076, %v1075
        %v1115 = vpack.c.b16 %v1078, %v1077
        %v1116 = vpack.c.b16 %v1080, %v1079
        %v1117 = vpack.c.b16 %v1082, %v1081
        %v1118 = vpack.c.b16 %v1084, %v1083
        %v1119 = vpack.c.b16 %v1086, %v1085
        %v1120 = vpack.c.b16 %v1088, %v1087
        %v1121 = vpack.c.b16 %v1090, %v1089
        %v1122 = vpack.c.b16 %v1092, %v1091
        %v1123 = vpack.c.b16 %v1094, %v1093
        %v1124 = vpack.c.b16 %v1096, %v1095
        %v1125 = vpack.c.b16 %v1098, %v1097
        %v1126 = vpack.c.b16 %v1100, %v1099
        %v1127 = vpack.c.b16 %v1102, %v1101
        %v1128 = vpack.c.b16 %v1104, %v1103
        %1153 = vmatprep.subr.bf16.mxu0 0
        %1154 = vmatpush1.bf16.msra.mxu0 %v1105
        %1155 = vmatprep.subr.bf16.mxu0 0
        %1156 = vmatpush1.bf16.msra.mxu0 %v1106
        %1157 = vmatprep.subr.bf16.mxu0 0
        %1158 = vmatpush1.bf16.msra.mxu0 %v1107
        %1159 = vmatprep.subr.bf16.mxu0 0
        %1160 = vmatpush1.bf16.msra.mxu0 %v1108
        %1161 = vmatprep.subr.bf16.mxu0 0
        %1162 = vmatpush1.bf16.msra.mxu0 %v1109
        %1163 = vmatprep.subr.bf16.mxu0 0
        %1164 = vmatpush1.bf16.msra.mxu0 %v1110
        %1165 = vmatprep.subr.bf16.mxu0 0
        %1166 = vmatpush1.bf16.msra.mxu0 %v1111
        %1167 = vmatprep.subr.bf16.mxu0 0
        %1168 = vmatpush1.bf16.msra.mxu0 %v1112
        %1169 = vmatprep.subr.bf16.mxu0 0
        %1170 = vmatpush1.bf16.msra.mxu0 %v1113
        %1171 = vmatprep.subr.bf16.mxu0 0
        %1172 = vmatpush1.bf16.msra.mxu0 %v1114
        %1173 = vmatprep.subr.bf16.mxu0 0
        %1174 = vmatpush1.bf16.msra.mxu0 %v1115
        %1175 = vmatprep.subr.bf16.mxu0 0
        %1176 = vmatpush1.bf16.msra.mxu0 %v1116
        %1177 = vmatprep.subr.bf16.mxu0 0
        %1178 = vmatpush1.bf16.msra.mxu0 %v1117
        %1179 = vmatprep.subr.bf16.mxu0 0
        %1180 = vmatpush1.bf16.msra.mxu0 %v1118
        %1181 = vmatprep.subr.bf16.mxu0 0
        %1182 = vmatpush1.bf16.msra.mxu0 %v1119
        %1183 = vmatprep.subr.bf16.mxu0 0
        %1184 = vmatpush1.bf16.msra.mxu0 %v1120
        %1185 = vmatprep.mubr.bf16.mxu0 %v981
        %1186 = vmatmul.mubr.bf16.gmra.mrb[0].mxu0 %v980
        %v1187 = vpop.f32.mrb[0].mxu0
        %v1188 = vadd.f32 %v1008, %v1187
        %v1189 = vpop.f32.mrb[0].mxu0
        %v1190 = vpop.f32.mrb[0].mxu0
        %v1191 = vadd.f32 %v1008, %v1190
        %v1192 = vpop.f32.mrb[0].mxu0
        %1193 = vmatprep.mubr.bf16.mxu0 %v984
        %1194 = vmatmul.mubr.bf16.gmra.mrb[0].mxu0 %v983
        %v1195 = vpop.f32.mrb[0].mxu0
        %v1196 = vadd.f32 %v1008, %v1195
        %v1197 = vpop.f32.mrb[0].mxu0
        %v1198 = vpop.f32.mrb[0].mxu0
        %v1199 = vadd.f32 %v1008, %v1198
        %v1200 = vpop.f32.mrb[0].mxu0
        %1201 = vmatprep.mubr.bf16.mxu0 %v987
        %1202 = vmatmul.mubr.bf16.gmra.mrb[0].mxu0 %v986
        %v1203 = vpop.f32.mrb[0].mxu0
        %v1204 = vadd.f32 %v1008, %v1203
        %v1205 = vpop.f32.mrb[0].mxu0
        %v1206 = vpop.f32.mrb[0].mxu0
        %v1207 = vadd.f32 %v1008, %v1206
        %v1208 = vpop.f32.mrb[0].mxu0
        %1209 = vmatprep.mubr.bf16.mxu0 %v990
        %1210 = vmatmul.mubr.bf16.gmra.mrb[0].mxu0 %v989
        %v1211 = vpop.f32.mrb[0].mxu0
        %v1212 = vadd.f32 %v1008, %v1211
        %v1213 = vpop.f32.mrb[0].mxu0
        %v1214 = vpop.f32.mrb[0].mxu0
        %v1215 = vadd.f32 %v1008, %v1214
        %v1216 = vpop.f32.mrb[0].mxu0
        %1217 = vmatprep.mubr.bf16.mxu0 %v993
        %1218 = vmatmul.mubr.bf16.gmra.mrb[0].mxu0 %v992
        %v1219 = vpop.f32.mrb[0].mxu0
        %v1220 = vadd.f32 %v1008, %v1219
        %v1221 = vpop.f32.mrb[0].mxu0
        %v1222 = vpop.f32.mrb[0].mxu0
        %v1223 = vadd.f32 %v1008, %v1222
        %v1224 = vpop.f32.mrb[0].mxu0
        %1225 = vmatprep.mubr.bf16.mxu0 %v996
        %1226 = vmatmul.mubr.bf16.gmra.mrb[0].mxu0 %v995
        %v1227 = vpop.f32.mrb[0].mxu0
        %v1228 = vadd.f32 %v1008, %v1227
        %v1229 = vpop.f32.mrb[0].mxu0
        %v1230 = vpop.f32.mrb[0].mxu0
        %v1231 = vadd.f32 %v1008, %v1230
        %v1232 = vpop.f32.mrb[0].mxu0
        %1233 = vmatprep.mubr.bf16.mxu0 %v999
        %1234 = vmatmul.mubr.bf16.gmra.mrb[0].mxu0 %v998
        %v1235 = vpop.f32.mrb[0].mxu0
        %v1236 = vadd.f32 %v1008, %v1235
        %v1237 = vpop.f32.mrb[0].mxu0
        %v1238 = vpop.f32.mrb[0].mxu0
        %v1239 = vadd.f32 %v1008, %v1238
        %v1240 = vpop.f32.mrb[0].mxu0
        %1241 = vmatprep.mubr.bf16.mxu0 %v1002
        %1242 = vmatmul.mubr.bf16.gmra.mrb[0].mxu0 %v1001
        %v1243 = vpop.f32.mrb[0].mxu0
        %v1244 = vadd.f32 %v1008, %v1243
        %v1245 = vpop.f32.mrb[0].mxu0
        %v1246 = vpop.f32.mrb[0].mxu0
        %v1247 = vadd.f32 %v1008, %v1246
        %v1248 = vpop.f32.mrb[0].mxu0
        %1249 = vdwg.mxu0
        %1250 = vmatprep.subr.bf16.mxu0 0
        %1251 = vmatpush1.bf16.msra.mxu0 %v1121
        %1252 = vmatprep.subr.bf16.mxu0 0
        %1253 = vmatpush1.bf16.msra.mxu0 %v1122
        %1254 = vmatprep.subr.bf16.mxu0 0
        %1255 = vmatpush1.bf16.msra.mxu0 %v1123
        %1256 = vmatprep.subr.bf16.mxu0 0
        %1257 = vmatpush1.bf16.msra.mxu0 %v1124
        %1258 = vmatprep.subr.bf16.mxu0 0
        %1259 = vmatpush1.bf16.msra.mxu0 %v1125
        %1260 = vmatprep.subr.bf16.mxu0 0
        %1261 = vmatpush1.bf16.msra.mxu0 %v1126
        %1262 = vmatprep.subr.bf16.mxu0 0
        %1263 = vmatpush1.bf16.msra.mxu0 %v1127
        %1264 = vmatprep.subr.bf16.mxu0 0
        %1265 = vmatpush1.bf16.msra.mxu0 %v1128
        %1266 = vmatprep.subr.bf16.mxu0 0
        %1267 = vmatpush1.bf16.msra.mxu0 0
        %1268 = vmatprep.subr.bf16.mxu0 0
        %1269 = vmatpush1.bf16.msra.mxu0 0
        %1270 = vmatprep.subr.bf16.mxu0 0
        %1271 = vmatpush1.bf16.msra.mxu0 0
        %1272 = vmatprep.subr.bf16.mxu0 0
        %1273 = vmatpush1.bf16.msra.mxu0 0
        %1274 = vmatprep.subr.bf16.mxu0 0
        %1275 = vmatpush1.bf16.msra.mxu0 0
        %1276 = vmatprep.subr.bf16.mxu0 0
        %1277 = vmatpush1.bf16.msra.mxu0 0
        %1278 = vmatprep.subr.bf16.mxu0 0
        %1279 = vmatpush1.bf16.msra.mxu0 0
        %1280 = vmatprep.subr.bf16.mxu0 0
        %1281 = vmatpush1.bf16.msra.mxu0 0
        %1282 = vmatprep.mubr.bf16.mxu0 0
        %1283 = vmatmul.mubr.bf16.gmra.mrb[0].mxu0 %v982
        %v1284 = vpop.f32.mrb[0].mxu0
        %v1285 = vadd.f32 %v1188, %v1284
        %v1286 = vpop.f32.mrb[0].mxu0
        %v1287 = vpop.f32.mrb[0].mxu0
        %v1288 = vadd.f32 %v1191, %v1287
        %v1289 = vpop.f32.mrb[0].mxu0
        %1290 = vmatprep.mubr.bf16.mxu0 0
        %1291 = vmatmul.mubr.bf16.gmra.mrb[0].mxu0 %v985
        %v1292 = vpop.f32.mrb[0].mxu0
        %v1293 = vadd.f32 %v1196, %v1292
        %v1294 = vpop.f32.mrb[0].mxu0
        %v1295 = vpop.f32.mrb[0].mxu0
        %v1296 = vadd.f32 %v1199, %v1295
        %v1297 = vpop.f32.mrb[0].mxu0
        %1298 = vmatprep.mubr.bf16.mxu0 0
        %1299 = vmatmul.mubr.bf16.gmra.mrb[0].mxu0 %v988
        %v1300 = vpop.f32.mrb[0].mxu0
        %v1301 = vadd.f32 %v1204, %v1300
        %v1302 = vpop.f32.mrb[0].mxu0
        %v1303 = vpop.f32.mrb[0].mxu0
        %v1304 = vadd.f32 %v1207, %v1303
        %v1305 = vpop.f32.mrb[0].mxu0
        %1306 = vmatprep.mubr.bf16.mxu0 0
        %1307 = vmatmul.mubr.bf16.gmra.mrb[0].mxu0 %v991
        %v1308 = vpop.f32.mrb[0].mxu0
        %v1309 = vadd.f32 %v1212, %v1308
        %v1310 = vpop.f32.mrb[0].mxu0
        %v1311 = vpop.f32.mrb[0].mxu0
        %v1312 = vadd.f32 %v1215, %v1311
        %v1313 = vpop.f32.mrb[0].mxu0
        %1314 = vmatprep.mubr.bf16.mxu0 0
        %1315 = vmatmul.mubr.bf16.gmra.mrb[0].mxu0 %v994
        %v1316 = vpop.f32.mrb[0].mxu0
        %v1317 = vadd.f32 %v1220, %v1316
        %v1318 = vpop.f32.mrb[0].mxu0
        %v1319 = vpop.f32.mrb[0].mxu0
        %v1320 = vadd.f32 %v1223, %v1319
        %v1321 = vpop.f32.mrb[0].mxu0
        %1322 = vmatprep.mubr.bf16.mxu0 0
        %1323 = vmatmul.mubr.bf16.gmra.mrb[0].mxu0 %v997
        %v1324 = vpop.f32.mrb[0].mxu0
        %v1325 = vadd.f32 %v1228, %v1324
        %v1326 = vpop.f32.mrb[0].mxu0
        %v1327 = vpop.f32.mrb[0].mxu0
        %v1328 = vadd.f32 %v1231, %v1327
        %v1329 = vpop.f32.mrb[0].mxu0
        %1330 = vmatprep.mubr.bf16.mxu0 0
        %1331 = vmatmul.mubr.bf16.gmra.mrb[0].mxu0 %v1000
        %v1332 = vpop.f32.mrb[0].mxu0
        %v1333 = vadd.f32 %v1236, %v1332
        %v1334 = vpop.f32.mrb[0].mxu0
        %v1335 = vpop.f32.mrb[0].mxu0
        %v1336 = vadd.f32 %v1239, %v1335
        %v1337 = vpop.f32.mrb[0].mxu0
        %1338 = vmatprep.mubr.bf16.mxu0 0
        %1339 = vmatmul.mubr.bf16.gmra.mrb[0].mxu0 %v1003
        %v1340 = vpop.f32.mrb[0].mxu0
        %v1341 = vadd.f32 %v1244, %v1340
        %v1342 = vpop.f32.mrb[0].mxu0
        %v1343 = vpop.f32.mrb[0].mxu0
        %v1344 = vadd.f32 %v1247, %v1343
        %v1345 = vpop.f32.mrb[0].mxu0
        %1346 = vdwg.mxu0
        %v1347 = vrot.slane %v1285, 1
        %v1348 = vrot.slane %v1288, 1
        %v1349 = vrot.slane %v1293, 1
        %v1350 = vrot.slane %v1296, 1
        %v1351 = vrot.slane %v1301, 1
        %v1352 = vrot.slane %v1304, 1
        %v1353 = vrot.slane %v1309, 1
        %v1354 = vrot.slane %v1312, 1
        %v1355 = vrot.slane %v1317, 1
        %v1356 = vrot.slane %v1320, 1
        %v1357 = vrot.slane %v1325, 1
        %v1358 = vrot.slane %v1328, 1
        %v1359 = vrot.slane %v1333, 1
        %v1360 = vrot.slane %v1336, 1
        %v1361 = vrot.slane %v1341, 1
        %v1362 = vrot.slane %v1344, 1
        %v1363 = vsel %vm611, %v1361, %v1362
        %v1364 = vsel %vm611, %v1360, %v1361
        %v1365 = vsel %vm611, %v1359, %v1360
        %v1366 = vsel %vm611, %v1358, %v1359
        %v1367 = vsel %vm611, %v1357, %v1358
        %v1368 = vsel %vm611, %v1356, %v1357
        %v1369 = vsel %vm611, %v1355, %v1356
        %v1370 = vsel %vm611, %v1354, %v1355
        %v1371 = vsel %vm611, %v1353, %v1354
        %v1372 = vsel %vm611, %v1352, %v1353
        %v1373 = vsel %vm611, %v1351, %v1352
        %v1374 = vsel %vm611, %v1350, %v1351
        %v1375 = vsel %vm611, %v1349, %v1350
        %v1376 = vsel %vm611, %v1348, %v1349
        %v1377 = vsel %vm611, %v1347, %v1348
        %v1378 = vsel %vm611, %v1362, %v1347
        %v1379 = vrot.slane %v1285, 7
        %v1380 = vrot.slane %v1288, 7
        %v1381 = vrot.slane %v1293, 7
        %v1382 = vrot.slane %v1296, 7
        %v1383 = vrot.slane %v1301, 7
        %v1384 = vrot.slane %v1304, 7
        %v1385 = vrot.slane %v1309, 7
        %v1386 = vrot.slane %v1312, 7
        %v1387 = vrot.slane %v1317, 7
        %v1388 = vrot.slane %v1320, 7
        %v1389 = vrot.slane %v1325, 7
        %v1390 = vrot.slane %v1328, 7
        %v1391 = vrot.slane %v1333, 7
        %v1392 = vrot.slane %v1336, 7
        %v1393 = vrot.slane %v1341, 7
        %v1394 = vrot.slane %v1344, 7
        %v1395 = vsel %vm644, %v1393, %v1394
        %v1396 = vsel %vm644, %v1392, %v1393
        %v1397 = vsel %vm644, %v1391, %v1392
        %v1398 = vsel %vm644, %v1390, %v1391
        %v1399 = vsel %vm644, %v1389, %v1390
        %v1400 = vsel %vm644, %v1388, %v1389
        %v1401 = vsel %vm644, %v1387, %v1388
        %v1402 = vsel %vm644, %v1386, %v1387
        %v1403 = vsel %vm644, %v1385, %v1386
        %v1404 = vsel %vm644, %v1384, %v1385
        %v1405 = vsel %vm644, %v1383, %v1384
        %v1406 = vsel %vm644, %v1382, %v1383
        %v1407 = vsel %vm644, %v1381, %v1382
        %v1408 = vsel %vm644, %v1380, %v1381
        %v1409 = vsel %vm644, %v1379, %v1380
        %v1410 = vsel %vm644, %v1394, %v1379
        %v1411 = vsel %vm868, %v1377, 0.0
        %v1412 = vsel %vm869, %v1376, 0.0
        %v1413 = vsel %vm870, %v1375, 0.0
        %v1414 = vsel %vm871, %v1374, 0.0
        %v1415 = vsel %vm872, %v1373, 0.0
        %v1416 = vsel %vm873, %v1372, 0.0
        %v1417 = vsel %vm874, %v1371, 0.0
        %v1418 = vsel %vm875, %v1370, 0.0
        %v1419 = vsel %vm876, %v1369, 0.0
        %v1420 = vsel %vm877, %v1368, 0.0
        %v1421 = vsel %vm878, %v1367, 0.0
        %v1422 = vsel %vm879, %v1366, 0.0
        %v1423 = vsel %vm880, %v1365, 0.0
        %v1424 = vsel %vm881, %v1364, 0.0
        %v1425 = vsel %vm882, %v1363, 0.0
        %v1426 = vsel %vm883, %v1378, 0.0
        %v1427 = vsel %vm900, %v1410, 0.0
        %v1428 = vsel %vm901, %v1409, 0.0
        %v1429 = vsel %vm902, %v1408, 0.0
        %v1430 = vsel %vm903, %v1407, 0.0
        %v1431 = vsel %vm904, %v1406, 0.0
        %v1432 = vsel %vm905, %v1405, 0.0
        %v1433 = vsel %vm906, %v1404, 0.0
        %v1434 = vsel %vm907, %v1403, 0.0
        %v1435 = vsel %vm908, %v1402, 0.0
        %v1436 = vsel %vm909, %v1401, 0.0
        %v1437 = vsel %vm910, %v1400, 0.0
        %v1438 = vsel %vm911, %v1399, 0.0
        %v1439 = vsel %vm912, %v1398, 0.0
        %v1440 = vsel %vm913, %v1397, 0.0
        %v1441 = vsel %vm914, %v1396, 0.0
        %v1442 = vsel %vm915, %v1395, 0.0
        %v1443 = vld [vmem:[%s1 + $0x110] sm:$0xf]
        %v1444 = vld [vmem:[%s1 + $0x114] sm:$0xf]
        %v1445 = vld [vmem:[%s1 + $0x118] sm:$0xf]
        %v1446 = vld [vmem:[%s1 + $0x11c] sm:$0xf]
        %v1447 = vld [vmem:[%s1 + $0x120] sm:$0xf]
        %v1448 = vld [vmem:[%s1 + $0x124] sm:$0xf]
        %v1449 = vld [vmem:[%s1 + $0x128] sm:$0xf]
        %v1450 = vld [vmem:[%s1 + $0x12c] sm:$0xf]
        %v1451 = vld [vmem:[%s1 + $0x130] sm:$0xf]
        %v1452 = vld [vmem:[%s1 + $0x134] sm:$0xf]
        %v1453 = vld [vmem:[%s1 + $0x138] sm:$0xf]
        %v1454 = vld [vmem:[%s1 + $0x13c] sm:$0xf]
        %v1455 = vld [vmem:[%s1 + $0x140] sm:$0xf]
        %v1456 = vld [vmem:[%s1 + $0x144] sm:$0xf]
        %v1457 = vld [vmem:[%s1 + $0x148] sm:$0xf]
        %v1458 = vld [vmem:[%s1 + $0x14c] sm:$0xf]
        %v1459 = vld [vmem:[%s1 + $0x150] sm:$0xf]
        %v1460 = vld [vmem:[%s1 + $0x154] sm:$0xf]
        %v1461 = vld [vmem:[%s1 + $0x158] sm:$0xf]
        %v1462 = vld [vmem:[%s1 + $0x15c] sm:$0xf]
        %v1463 = vld [vmem:[%s1 + $0x160] sm:$0xf]
        %v1464 = vld [vmem:[%s1 + $0x164] sm:$0xf]
        %v1465 = vld [vmem:[%s1 + $0x168] sm:$0xf]
        %v1466 = vld [vmem:[%s1 + $0x16c] sm:$0xf]
        %v1467 = vld [vmem:[%s1 + $0x170] sm:$0xf]
        %v1468 = vld [vmem:[%s1 + $0x174] sm:$0xf]
        %v1469 = vld [vmem:[%s1 + $0x178] sm:$0xf]
        %v1470 = vld [vmem:[%s1 + $0x17c] sm:$0xf]
        %v1471 = vld [vmem:[%s1 + $0x180] sm:$0xf]
        %v1472 = vld [vmem:[%s1 + $0x184] sm:$0xf]
        %v1473 = vld [vmem:[%s1 + $0x188] sm:$0xf]
        %v1474 = vld [vmem:[%s1 + $0x18c] sm:$0xf]
        %v1475 = vld [vmem:[%s1 + $0x190] sm:$0xf]
        %v1476 = vld [vmem:[%s1 + $0x194] sm:$0xf]
        %v1477 = vld [vmem:[%s1 + $0x198] sm:$0xf]
        %v1478 = vld [vmem:[%s1 + $0x19c] sm:$0xf]
        %v1479 = vld [vmem:[%s1 + $0x1a0] sm:$0xf]
        %v1480 = vld [vmem:[%s1 + $0x1a4] sm:$0xf]
        %v1481 = vld [vmem:[%s1 + $0x1a8] sm:$0xf]
        %v1482 = vld [vmem:[%s1 + $0x1ac] sm:$0xf]
        %v1483 = vld [vmem:[%s1 + $0x1b0] sm:$0xf]
        %v1484 = vld [vmem:[%s1 + $0x1b4] sm:$0xf]
        %v1485 = vld [vmem:[%s1 + $0x1b8] sm:$0xf]
        %v1486 = vld [vmem:[%s1 + $0x1bc] sm:$0xf]
        %v1487 = vld [vmem:[%s1 + $0x1c0] sm:$0xf]
        %v1488 = vld [vmem:[%s1 + $0x1c4] sm:$0xf]
        %v1489 = vld [vmem:[%s1 + $0x1c8] sm:$0xf]
        %v1490 = vld [vmem:[%s1 + $0x1cc] sm:$0xf]
        %v1491 = vpack.c.bf16 %v1428, %v1427
        %v1492 = vpack.c.bf16 %v1288, %v1285
        %v1493 = vpack.c.bf16 %v1412, %v1411
        %v1494 = vpack.c.bf16 %v1430, %v1429
        %v1495 = vpack.c.bf16 %v1296, %v1293
        %v1496 = vpack.c.bf16 %v1414, %v1413
        %v1497 = vpack.c.bf16 %v1432, %v1431
        %v1498 = vpack.c.bf16 %v1304, %v1301
        %v1499 = vpack.c.bf16 %v1416, %v1415
        %v1500 = vpack.c.bf16 %v1434, %v1433
        %v1501 = vpack.c.bf16 %v1312, %v1309
        %v1502 = vpack.c.bf16 %v1418, %v1417
        %v1503 = vpack.c.bf16 %v1436, %v1435
        %v1504 = vpack.c.bf16 %v1320, %v1317
        %v1505 = vpack.c.bf16 %v1420, %v1419
        %v1506 = vpack.c.bf16 %v1438, %v1437
        %v1507 = vpack.c.bf16 %v1328, %v1325
        %v1508 = vpack.c.bf16 %v1422, %v1421
        %v1509 = vpack.c.bf16 %v1440, %v1439
        %v1510 = vpack.c.bf16 %v1336, %v1333
        %v1511 = vpack.c.bf16 %v1424, %v1423
        %v1512 = vpack.c.bf16 %v1442, %v1441
        %v1513 = vpack.c.bf16 %v1344, %v1341
        %v1514 = vpack.c.bf16 %v1426, %v1425
        %v1515 = vld [vmem:[%s3 + $0x2] sm:$0x1]
        %v1516 = vlaneseq
        %v1517 = vshrl.u32 %v1516, 7
        %v1518 = vsub.s32 0, %v1517
        %v1519 = vrot.slane %v1515, %v1518
        %v1568 = vunpack.c.l.b16 %v1443
        %v1569 = vunpack.c.l.b16 %v1444
        %v1570 = vunpack.c.l.b16 %v1445
        %v1571 = vunpack.c.l.b16 %v1446
        %v1572 = vunpack.c.l.b16 %v1447
        %v1573 = vunpack.c.l.b16 %v1448
        %v1574 = vunpack.c.l.b16 %v1449
        %v1575 = vunpack.c.l.b16 %v1450
        %v1576 = vunpack.c.l.b16 %v1451
        %v1577 = vunpack.c.l.b16 %v1452
        %v1578 = vunpack.c.l.b16 %v1453
        %v1579 = vunpack.c.l.b16 %v1454
        %v1580 = vunpack.c.l.b16 %v1455
        %v1581 = vunpack.c.l.b16 %v1456
        %v1582 = vunpack.c.l.b16 %v1457
        %v1583 = vunpack.c.l.b16 %v1458
        %v1584 = vunpack.c.l.b16 %v1459
        %v1585 = vunpack.c.l.b16 %v1460
        %v1586 = vunpack.c.l.b16 %v1461
        %v1587 = vunpack.c.l.b16 %v1462
        %v1588 = vunpack.c.l.b16 %v1463
        %v1589 = vunpack.c.l.b16 %v1464
        %v1590 = vunpack.c.l.b16 %v1465
        %v1591 = vunpack.c.l.b16 %v1466
        %v1592 = vunpack.c.l.b16 %v1467
        %v1593 = vunpack.c.l.b16 %v1468
        %v1594 = vunpack.c.l.b16 %v1469
        %v1595 = vunpack.c.l.b16 %v1470
        %v1596 = vunpack.c.l.b16 %v1471
        %v1597 = vunpack.c.l.b16 %v1472
        %v1598 = vunpack.c.l.b16 %v1473
        %v1599 = vunpack.c.l.b16 %v1474
        %v1600 = vunpack.c.l.b16 %v1475
        %v1601 = vunpack.c.l.b16 %v1476
        %v1602 = vunpack.c.l.b16 %v1477
        %v1603 = vunpack.c.l.b16 %v1478
        %v1604 = vunpack.c.l.b16 %v1479
        %v1605 = vunpack.c.l.b16 %v1480
        %v1606 = vunpack.c.l.b16 %v1481
        %v1607 = vunpack.c.l.b16 %v1482
        %v1608 = vunpack.c.l.b16 %v1483
        %v1609 = vunpack.c.l.b16 %v1484
        %v1610 = vunpack.c.l.b16 %v1485
        %v1611 = vunpack.c.l.b16 %v1486
        %v1612 = vunpack.c.l.b16 %v1487
        %v1613 = vunpack.c.l.b16 %v1488
        %v1614 = vunpack.c.l.b16 %v1489
        %v1615 = vunpack.c.l.b16 %v1490
        %v1616 = vpack.c.b16 %v1569, %v1568
        %v1617 = vpack.c.b16 %v1571, %v1570
        %v1618 = vpack.c.b16 %v1573, %v1572
        %v1619 = vpack.c.b16 %v1575, %v1574
        %v1620 = vpack.c.b16 %v1577, %v1576
        %v1621 = vpack.c.b16 %v1579, %v1578
        %v1622 = vpack.c.b16 %v1581, %v1580
        %v1623 = vpack.c.b16 %v1583, %v1582
        %v1624 = vpack.c.b16 %v1585, %v1584
        %v1625 = vpack.c.b16 %v1587, %v1586
        %v1626 = vpack.c.b16 %v1589, %v1588
        %v1627 = vpack.c.b16 %v1591, %v1590
        %v1628 = vpack.c.b16 %v1593, %v1592
        %v1629 = vpack.c.b16 %v1595, %v1594
        %v1630 = vpack.c.b16 %v1597, %v1596
        %v1631 = vpack.c.b16 %v1599, %v1598
        %v1632 = vpack.c.b16 %v1601, %v1600
        %v1633 = vpack.c.b16 %v1603, %v1602
        %v1634 = vpack.c.b16 %v1605, %v1604
        %v1635 = vpack.c.b16 %v1607, %v1606
        %v1636 = vpack.c.b16 %v1609, %v1608
        %v1637 = vpack.c.b16 %v1611, %v1610
        %v1638 = vpack.c.b16 %v1613, %v1612
        %v1639 = vpack.c.b16 %v1615, %v1614
        %1664 = vmatprep.subr.bf16.mxu0 0
        %1665 = vmatpush1.bf16.msra.mxu0 %v1616
        %1666 = vmatprep.subr.bf16.mxu0 0
        %1667 = vmatpush1.bf16.msra.mxu0 %v1617
        %1668 = vmatprep.subr.bf16.mxu0 0
        %1669 = vmatpush1.bf16.msra.mxu0 %v1618
        %1670 = vmatprep.subr.bf16.mxu0 0
        %1671 = vmatpush1.bf16.msra.mxu0 %v1619
        %1672 = vmatprep.subr.bf16.mxu0 0
        %1673 = vmatpush1.bf16.msra.mxu0 %v1620
        %1674 = vmatprep.subr.bf16.mxu0 0
        %1675 = vmatpush1.bf16.msra.mxu0 %v1621
        %1676 = vmatprep.subr.bf16.mxu0 0
        %1677 = vmatpush1.bf16.msra.mxu0 %v1622
        %1678 = vmatprep.subr.bf16.mxu0 0
        %1679 = vmatpush1.bf16.msra.mxu0 %v1623
        %1680 = vmatprep.subr.bf16.mxu0 0
        %1681 = vmatpush1.bf16.msra.mxu0 %v1624
        %1682 = vmatprep.subr.bf16.mxu0 0
        %1683 = vmatpush1.bf16.msra.mxu0 %v1625
        %1684 = vmatprep.subr.bf16.mxu0 0
        %1685 = vmatpush1.bf16.msra.mxu0 %v1626
        %1686 = vmatprep.subr.bf16.mxu0 0
        %1687 = vmatpush1.bf16.msra.mxu0 %v1627
        %1688 = vmatprep.subr.bf16.mxu0 0
        %1689 = vmatpush1.bf16.msra.mxu0 %v1628
        %1690 = vmatprep.subr.bf16.mxu0 0
        %1691 = vmatpush1.bf16.msra.mxu0 %v1629
        %1692 = vmatprep.subr.bf16.mxu0 0
        %1693 = vmatpush1.bf16.msra.mxu0 %v1630
        %1694 = vmatprep.subr.bf16.mxu0 0
        %1695 = vmatpush1.bf16.msra.mxu0 %v1631
        %1696 = vmatprep.mubr.bf16.mxu0 %v1492
        %1697 = vmatmul.mubr.bf16.gmra.mrb[0].mxu0 %v1491
        %v1698 = vpop.f32.mrb[0].mxu0
        %v1699 = vadd.f32 %v1519, %v1698
        %v1700 = vpop.f32.mrb[0].mxu0
        %v1701 = vpop.f32.mrb[0].mxu0
        %v1702 = vadd.f32 %v1519, %v1701
        %v1703 = vpop.f32.mrb[0].mxu0
        %1704 = vmatprep.mubr.bf16.mxu0 %v1495
        %1705 = vmatmul.mubr.bf16.gmra.mrb[0].mxu0 %v1494
        %v1706 = vpop.f32.mrb[0].mxu0
        %v1707 = vadd.f32 %v1519, %v1706
        %v1708 = vpop.f32.mrb[0].mxu0
        %v1709 = vpop.f32.mrb[0].mxu0
        %v1710 = vadd.f32 %v1519, %v1709
        %v1711 = vpop.f32.mrb[0].mxu0
        %1712 = vmatprep.mubr.bf16.mxu0 %v1498
        %1713 = vmatmul.mubr.bf16.gmra.mrb[0].mxu0 %v1497
        %v1714 = vpop.f32.mrb[0].mxu0
        %v1715 = vadd.f32 %v1519, %v1714
        %v1716 = vpop.f32.mrb[0].mxu0
        %v1717 = vpop.f32.mrb[0].mxu0
        %v1718 = vadd.f32 %v1519, %v1717
        %v1719 = vpop.f32.mrb[0].mxu0
        %1720 = vmatprep.mubr.bf16.mxu0 %v1501
        %1721 = vmatmul.mubr.bf16.gmra.mrb[0].mxu0 %v1500
        %v1722 = vpop.f32.mrb[0].mxu0
        %v1723 = vadd.f32 %v1519, %v1722
        %v1724 = vpop.f32.mrb[0].mxu0
        %v1725 = vpop.f32.mrb[0].mxu0
        %v1726 = vadd.f32 %v1519, %v1725
        %v1727 = vpop.f32.mrb[0].mxu0
        %1728 = vmatprep.mubr.bf16.mxu0 %v1504
        %1729 = vmatmul.mubr.bf16.gmra.mrb[0].mxu0 %v1503
        %v1730 = vpop.f32.mrb[0].mxu0
        %v1731 = vadd.f32 %v1519, %v1730
        %v1732 = vpop.f32.mrb[0].mxu0
        %v1733 = vpop.f32.mrb[0].mxu0
        %v1734 = vadd.f32 %v1519, %v1733
        %v1735 = vpop.f32.mrb[0].mxu0
        %1736 = vmatprep.mubr.bf16.mxu0 %v1507
        %1737 = vmatmul.mubr.bf16.gmra.mrb[0].mxu0 %v1506
        %v1738 = vpop.f32.mrb[0].mxu0
        %v1739 = vadd.f32 %v1519, %v1738
        %v1740 = vpop.f32.mrb[0].mxu0
        %v1741 = vpop.f32.mrb[0].mxu0
        %v1742 = vadd.f32 %v1519, %v1741
        %v1743 = vpop.f32.mrb[0].mxu0
        %1744 = vmatprep.mubr.bf16.mxu0 %v1510
        %1745 = vmatmul.mubr.bf16.gmra.mrb[0].mxu0 %v1509
        %v1746 = vpop.f32.mrb[0].mxu0
        %v1747 = vadd.f32 %v1519, %v1746
        %v1748 = vpop.f32.mrb[0].mxu0
        %v1749 = vpop.f32.mrb[0].mxu0
        %v1750 = vadd.f32 %v1519, %v1749
        %v1751 = vpop.f32.mrb[0].mxu0
        %1752 = vmatprep.mubr.bf16.mxu0 %v1513
        %1753 = vmatmul.mubr.bf16.gmra.mrb[0].mxu0 %v1512
        %v1754 = vpop.f32.mrb[0].mxu0
        %v1755 = vadd.f32 %v1519, %v1754
        %v1756 = vpop.f32.mrb[0].mxu0
        %v1757 = vpop.f32.mrb[0].mxu0
        %v1758 = vadd.f32 %v1519, %v1757
        %v1759 = vpop.f32.mrb[0].mxu0
        %1760 = vdwg.mxu0
        %1761 = vmatprep.subr.bf16.mxu0 0
        %1762 = vmatpush1.bf16.msra.mxu0 %v1632
        %1763 = vmatprep.subr.bf16.mxu0 0
        %1764 = vmatpush1.bf16.msra.mxu0 %v1633
        %1765 = vmatprep.subr.bf16.mxu0 0
        %1766 = vmatpush1.bf16.msra.mxu0 %v1634
        %1767 = vmatprep.subr.bf16.mxu0 0
        %1768 = vmatpush1.bf16.msra.mxu0 %v1635
        %1769 = vmatprep.subr.bf16.mxu0 0
        %1770 = vmatpush1.bf16.msra.mxu0 %v1636
        %1771 = vmatprep.subr.bf16.mxu0 0
        %1772 = vmatpush1.bf16.msra.mxu0 %v1637
        %1773 = vmatprep.subr.bf16.mxu0 0
        %1774 = vmatpush1.bf16.msra.mxu0 %v1638
        %1775 = vmatprep.subr.bf16.mxu0 0
        %1776 = vmatpush1.bf16.msra.mxu0 %v1639
        %1777 = vmatprep.subr.bf16.mxu0 0
        %1778 = vmatpush1.bf16.msra.mxu0 0
        %1779 = vmatprep.subr.bf16.mxu0 0
        %1780 = vmatpush1.bf16.msra.mxu0 0
        %1781 = vmatprep.subr.bf16.mxu0 0
        %1782 = vmatpush1.bf16.msra.mxu0 0
        %1783 = vmatprep.subr.bf16.mxu0 0
        %1784 = vmatpush1.bf16.msra.mxu0 0
        %1785 = vmatprep.subr.bf16.mxu0 0
        %1786 = vmatpush1.bf16.msra.mxu0 0
        %1787 = vmatprep.subr.bf16.mxu0 0
        %1788 = vmatpush1.bf16.msra.mxu0 0
        %1789 = vmatprep.subr.bf16.mxu0 0
        %1790 = vmatpush1.bf16.msra.mxu0 0
        %1791 = vmatprep.subr.bf16.mxu0 0
        %1792 = vmatpush1.bf16.msra.mxu0 0
        %1793 = vmatprep.mubr.bf16.mxu0 0
        %1794 = vmatmul.mubr.bf16.gmra.mrb[0].mxu0 %v1493
        %v1795 = vpop.f32.mrb[0].mxu0
        %v1796 = vadd.f32 %v1699, %v1795
        %v1797 = vpop.f32.mrb[0].mxu0
        %v1798 = vpop.f32.mrb[0].mxu0
        %v1799 = vadd.f32 %v1702, %v1798
        %v1800 = vpop.f32.mrb[0].mxu0
        %1801 = vmatprep.mubr.bf16.mxu0 0
        %1802 = vmatmul.mubr.bf16.gmra.mrb[0].mxu0 %v1496
        %v1803 = vpop.f32.mrb[0].mxu0
        %v1804 = vadd.f32 %v1707, %v1803
        %v1805 = vpop.f32.mrb[0].mxu0
        %v1806 = vpop.f32.mrb[0].mxu0
        %v1807 = vadd.f32 %v1710, %v1806
        %v1808 = vpop.f32.mrb[0].mxu0
        %1809 = vmatprep.mubr.bf16.mxu0 0
        %1810 = vmatmul.mubr.bf16.gmra.mrb[0].mxu0 %v1499
        %v1811 = vpop.f32.mrb[0].mxu0
        %v1812 = vadd.f32 %v1715, %v1811
        %v1813 = vpop.f32.mrb[0].mxu0
        %v1814 = vpop.f32.mrb[0].mxu0
        %v1815 = vadd.f32 %v1718, %v1814
        %v1816 = vpop.f32.mrb[0].mxu0
        %1817 = vmatprep.mubr.bf16.mxu0 0
        %1818 = vmatmul.mubr.bf16.gmra.mrb[0].mxu0 %v1502
        %v1819 = vpop.f32.mrb[0].mxu0
        %v1820 = vadd.f32 %v1723, %v1819
        %v1821 = vpop.f32.mrb[0].mxu0
        %v1822 = vpop.f32.mrb[0].mxu0
        %v1823 = vadd.f32 %v1726, %v1822
        %v1824 = vpop.f32.mrb[0].mxu0
        %1825 = vmatprep.mubr.bf16.mxu0 0
        %1826 = vmatmul.mubr.bf16.gmra.mrb[0].mxu0 %v1505
        %v1827 = vpop.f32.mrb[0].mxu0
        %v1828 = vadd.f32 %v1731, %v1827
        %v1829 = vpop.f32.mrb[0].mxu0
        %v1830 = vpop.f32.mrb[0].mxu0
        %v1831 = vadd.f32 %v1734, %v1830
        %v1832 = vpop.f32.mrb[0].mxu0
        %1833 = vmatprep.mubr.bf16.mxu0 0
        %1834 = vmatmul.mubr.bf16.gmra.mrb[0].mxu0 %v1508
        %v1835 = vpop.f32.mrb[0].mxu0
        %v1836 = vadd.f32 %v1739, %v1835
        %v1837 = vpop.f32.mrb[0].mxu0
        %v1838 = vpop.f32.mrb[0].mxu0
        %v1839 = vadd.f32 %v1742, %v1838
        %v1840 = vpop.f32.mrb[0].mxu0
        %1841 = vmatprep.mubr.bf16.mxu0 0
        %1842 = vmatmul.mubr.bf16.gmra.mrb[0].mxu0 %v1511
        %v1843 = vpop.f32.mrb[0].mxu0
        %v1844 = vadd.f32 %v1747, %v1843
        %v1845 = vpop.f32.mrb[0].mxu0
        %v1846 = vpop.f32.mrb[0].mxu0
        %v1847 = vadd.f32 %v1750, %v1846
        %v1848 = vpop.f32.mrb[0].mxu0
        %1849 = vmatprep.mubr.bf16.mxu0 0
        %1850 = vmatmul.mubr.bf16.gmra.mrb[0].mxu0 %v1514
        %v1851 = vpop.f32.mrb[0].mxu0
        %v1852 = vadd.f32 %v1755, %v1851
        %v1853 = vpop.f32.mrb[0].mxu0
        %v1854 = vpop.f32.mrb[0].mxu0
        %v1855 = vadd.f32 %v1758, %v1854
        %v1856 = vpop.f32.mrb[0].mxu0
        %1857 = vdwg.mxu0
        %v1858 = vrot.slane %v1796, 1
        %v1859 = vrot.slane %v1799, 1
        %v1860 = vrot.slane %v1804, 1
        %v1861 = vrot.slane %v1807, 1
        %v1862 = vrot.slane %v1812, 1
        %v1863 = vrot.slane %v1815, 1
        %v1864 = vrot.slane %v1820, 1
        %v1865 = vrot.slane %v1823, 1
        %v1866 = vrot.slane %v1828, 1
        %v1867 = vrot.slane %v1831, 1
        %v1868 = vrot.slane %v1836, 1
        %v1869 = vrot.slane %v1839, 1
        %v1870 = vrot.slane %v1844, 1
        %v1871 = vrot.slane %v1847, 1
        %v1872 = vrot.slane %v1852, 1
        %v1873 = vrot.slane %v1855, 1
        %v1874 = vsel %vm611, %v1872, %v1873
        %v1875 = vsel %vm611, %v1871, %v1872
        %v1876 = vsel %vm611, %v1870, %v1871
        %v1877 = vsel %vm611, %v1869, %v1870
        %v1878 = vsel %vm611, %v1868, %v1869
        %v1879 = vsel %vm611, %v1867, %v1868
        %v1880 = vsel %vm611, %v1866, %v1867
        %v1881 = vsel %vm611, %v1865, %v1866
        %v1882 = vsel %vm611, %v1864, %v1865
        %v1883 = vsel %vm611, %v1863, %v1864
        %v1884 = vsel %vm611, %v1862, %v1863
        %v1885 = vsel %vm611, %v1861, %v1862
        %v1886 = vsel %vm611, %v1860, %v1861
        %v1887 = vsel %vm611, %v1859, %v1860
        %v1888 = vsel %vm611, %v1858, %v1859
        %v1889 = vsel %vm611, %v1873, %v1858
        %v1890 = vmax.f32 %v1796, %v1888
        %v1891 = vmax.f32 %v1799, %v1887
        %v1892 = vmax.f32 %v1804, %v1886
        %v1893 = vmax.f32 %v1807, %v1885
        %v1894 = vmax.f32 %v1812, %v1884
        %v1895 = vmax.f32 %v1815, %v1883
        %v1896 = vmax.f32 %v1820, %v1882
        %v1897 = vmax.f32 %v1823, %v1881
        %v1898 = vmax.f32 %v1828, %v1880
        %v1899 = vmax.f32 %v1831, %v1879
        %v1900 = vmax.f32 %v1836, %v1878
        %v1901 = vmax.f32 %v1839, %v1877
        %v1902 = vmax.f32 %v1844, %v1876
        %v1903 = vmax.f32 %v1847, %v1875
        %v1904 = vmax.f32 %v1852, %v1874
        %v1905 = vmax.f32 %v1855, %v1889
        %v1906 = vld [vmem:[%s1 + $0x1d0] sm:$0xf]
        %v1907 = vld [vmem:[%s1 + $0x1d4] sm:$0xf]
        %v1908 = vld [vmem:[%s1 + $0x1d8] sm:$0xf]
        %v1909 = vld [vmem:[%s1 + $0x1dc] sm:$0xf]
        %v1910 = vld [vmem:[%s1 + $0x1e0] sm:$0xf]
        %v1911 = vld [vmem:[%s1 + $0x1e4] sm:$0xf]
        %v1912 = vld [vmem:[%s1 + $0x1e8] sm:$0xf]
        %v1913 = vld [vmem:[%s1 + $0x1ec] sm:$0xf]
        %v1914 = vpack.c.bf16 %v1891, %v1890
        %v1915 = vpack.c.bf16 %v1893, %v1892
        %v1916 = vpack.c.bf16 %v1895, %v1894
        %v1917 = vpack.c.bf16 %v1897, %v1896
        %v1918 = vpack.c.bf16 %v1899, %v1898
        %v1919 = vpack.c.bf16 %v1901, %v1900
        %v1920 = vpack.c.bf16 %v1903, %v1902
        %v1921 = vpack.c.bf16 %v1905, %v1904
        %v1930 = vunpack.c.l.b16 %v1906
        %v1931 = vunpack.c.l.b16 %v1907
        %v1932 = vunpack.c.l.b16 %v1908
        %v1933 = vunpack.c.l.b16 %v1909
        %v1934 = vunpack.c.l.b16 %v1910
        %v1935 = vunpack.c.l.b16 %v1911
        %v1936 = vunpack.c.l.b16 %v1912
        %v1937 = vunpack.c.l.b16 %v1913
        %v1938 = vpack.c.b16 %v1931, %v1930
        %v1939 = vpack.c.b16 %v1933, %v1932
        %v1940 = vpack.c.b16 %v1935, %v1934
        %v1941 = vpack.c.b16 %v1937, %v1936
        %1946 = vmatprep.subr.bf16.mxu0 0
        %1947 = vmatpush1.bf16.msra.mxu0 %v1914
        %1948 = vmatprep.subr.bf16.mxu0 0
        %1949 = vmatpush1.bf16.msra.mxu0 %v1915
        %1950 = vmatprep.subr.bf16.mxu0 0
        %1951 = vmatpush1.bf16.msra.mxu0 %v1916
        %1952 = vmatprep.subr.bf16.mxu0 0
        %1953 = vmatpush1.bf16.msra.mxu0 %v1917
        %1954 = vmatprep.subr.bf16.mxu0 0
        %1955 = vmatpush1.bf16.msra.mxu0 %v1918
        %1956 = vmatprep.subr.bf16.mxu0 0
        %1957 = vmatpush1.bf16.msra.mxu0 %v1919
        %1958 = vmatprep.subr.bf16.mxu0 0
        %1959 = vmatpush1.bf16.msra.mxu0 %v1920
        %1960 = vmatprep.subr.bf16.mxu0 0
        %1961 = vmatpush1.bf16.msra.mxu0 %v1921
        %1962 = vmatprep.subr.bf16.mxu0 0
        %1963 = vmatpush1.bf16.msra.mxu0 0
        %1964 = vmatprep.subr.bf16.mxu0 0
        %1965 = vmatpush1.bf16.msra.mxu0 0
        %1966 = vmatprep.subr.bf16.mxu0 0
        %1967 = vmatpush1.bf16.msra.mxu0 0
        %1968 = vmatprep.subr.bf16.mxu0 0
        %1969 = vmatpush1.bf16.msra.mxu0 0
        %1970 = vmatprep.subr.bf16.mxu0 0
        %1971 = vmatpush1.bf16.msra.mxu0 0
        %1972 = vmatprep.subr.bf16.mxu0 0
        %1973 = vmatpush1.bf16.msra.mxu0 0
        %1974 = vmatprep.subr.bf16.mxu0 0
        %1975 = vmatpush1.bf16.msra.mxu0 0
        %1976 = vmatprep.subr.bf16.mxu0 0
        %1977 = vmatpush1.bf16.msra.mxu0 0
        %1978 = vmatprep.mubr.bf16.mxu0 0
        %1979 = vmatmul.mubr.bf16.gmra.mrb[0].mxu0 %v1938
        %v1980 = vpop.f32.mrb[0].mxu0
        %v1981 = vadd.f32 0.0, %v1980
        %v1982 = vpop.f32.mrb[0].mxu0
        %v1983 = vpop.f32.mrb[0].mxu0
        %v1984 = vadd.f32 0.0, %v1983
        %v1985 = vpop.f32.mrb[0].mxu0
        %1986 = vmatprep.mubr.bf16.mxu0 0
        %1987 = vmatmul.mubr.bf16.gmra.mrb[0].mxu0 %v1939
        %v1988 = vpop.f32.mrb[0].mxu0
        %v1989 = vadd.f32 0.0, %v1988
        %v1990 = vpop.f32.mrb[0].mxu0
        %v1991 = vpop.f32.mrb[0].mxu0
        %v1992 = vadd.f32 0.0, %v1991
        %v1993 = vpop.f32.mrb[0].mxu0
        %1994 = vmatprep.mubr.bf16.mxu0 0
        %1995 = vmatmul.mubr.bf16.gmra.mrb[0].mxu0 %v1940
        %v1996 = vpop.f32.mrb[0].mxu0
        %v1997 = vadd.f32 0.0, %v1996
        %v1998 = vpop.f32.mrb[0].mxu0
        %v1999 = vpop.f32.mrb[0].mxu0
        %v2000 = vadd.f32 0.0, %v1999
        %v2001 = vpop.f32.mrb[0].mxu0
        %2002 = vmatprep.mubr.bf16.mxu0 0
        %2003 = vmatmul.mubr.bf16.gmra.mrb[0].mxu0 %v1941
        %v2004 = vpop.f32.mrb[0].mxu0
        %v2005 = vadd.f32 0.0, %v2004
        %v2006 = vpop.f32.mrb[0].mxu0
        %v2007 = vpop.f32.mrb[0].mxu0
        %v2008 = vadd.f32 0.0, %v2007
        %v2009 = vpop.f32.mrb[0].mxu0
        %2010 = vdwg.mxu0
        %2011 = vrot.lane.b32.xlu0 %v1981, 120
        %v2012 = vpop.permute.xlu0 %2011
        %2013 = vrot.lane.b32.xlu0 %v1984, 120
        %v2014 = vpop.permute.xlu0 %2013
        %2015 = vrot.lane.b32.xlu0 %v1989, 120
        %v2016 = vpop.permute.xlu0 %2015
        %2017 = vrot.lane.b32.xlu0 %v1992, 120
        %v2018 = vpop.permute.xlu0 %2017
        %2019 = vrot.lane.b32.xlu0 %v1997, 120
        %v2020 = vpop.permute.xlu0 %2019
        %2021 = vrot.lane.b32.xlu0 %v2000, 120
        %v2022 = vpop.permute.xlu0 %2021
        %2023 = vrot.lane.b32.xlu0 %v2005, 120
        %v2024 = vpop.permute.xlu0 %2023
        %2025 = vrot.lane.b32.xlu0 %v2008, 120
        %v2026 = vpop.permute.xlu0 %2025
        %v2027 = vmax.f32 %v1981, %v2012
        %v2028 = vmax.f32 %v1984, %v2014
        %v2029 = vmax.f32 %v1989, %v2016
        %v2030 = vmax.f32 %v1992, %v2018
        %v2031 = vmax.f32 %v1997, %v2020
        %v2032 = vmax.f32 %v2000, %v2022
        %v2033 = vmax.f32 %v2005, %v2024
        %v2034 = vmax.f32 %v2008, %v2026
        %v2035 = vrot.slane %v2027, 1
        %v2036 = vrot.slane %v2028, 1
        %v2037 = vrot.slane %v2029, 1
        %v2038 = vrot.slane %v2030, 1
        %v2039 = vrot.slane %v2031, 1
        %v2040 = vrot.slane %v2032, 1
        %v2041 = vrot.slane %v2033, 1
        %v2042 = vrot.slane %v2034, 1
        %v2043 = vsel %vm611, %v2041, %v2042
        %v2044 = vsel %vm611, %v2040, %v2041
        %v2045 = vsel %vm611, %v2039, %v2040
        %v2046 = vsel %vm611, %v2038, %v2039
        %v2047 = vsel %vm611, %v2037, %v2038
        %v2048 = vsel %vm611, %v2036, %v2037
        %v2049 = vsel %vm611, %v2035, %v2036
        %v2050 = vsel %vm611, %v2042, %v2035
        %v2051 = vrot.slane %v2027, 7
        %v2052 = vrot.slane %v2028, 7
        %v2053 = vrot.slane %v2029, 7
        %v2054 = vrot.slane %v2030, 7
        %v2055 = vrot.slane %v2031, 7
        %v2056 = vrot.slane %v2032, 7
        %v2057 = vrot.slane %v2033, 7
        %v2058 = vrot.slane %v2034, 7
        %v2059 = vsel %vm644, %v2057, %v2058
        %v2060 = vsel %vm644, %v2056, %v2057
        %v2061 = vsel %vm644, %v2055, %v2056
        %v2062 = vsel %vm644, %v2054, %v2055
        %v2063 = vsel %vm644, %v2053, %v2054
        %v2064 = vsel %vm644, %v2052, %v2053
        %v2065 = vsel %vm644, %v2051, %v2052
        %v2066 = vsel %vm644, %v2058, %v2051
        %vm2067 = vcmp.lt.s32.totalorder %v610, 0
        %v2068 = vsub.s32 0, %v610
        %v2069 = vsel %vm2067, %v2068, %v610
        %v2070 = vshrl.u32 %v2069, 3
        %v2071 = vand.u32 %v2069, 7
        %v2072 = vsub.s32 0, %v2071
        %v2073 = vsel %vm2067, %v2072, %v2071
        %vm2074 = vcmp.lt.s32.totalorder %v661, 0
        %v2075 = vsub.s32 0, %v661
        %v2076 = vsel %vm2074, %v2075, %v661
        %v2077 = vshrl.u32 %v2076, 3
        %v2078 = vand.u32 %v2076, 7
        %v2079 = vsub.s32 0, %v2078
        %v2080 = vsel %vm2074, %v2079, %v2078
        %vm2081 = vcmp.lt.s32.totalorder %v662, 0
        %v2082 = vsub.s32 0, %v662
        %v2083 = vsel %vm2081, %v2082, %v662
        %v2084 = vshrl.u32 %v2083, 3
        %v2085 = vand.u32 %v2083, 7
        %v2086 = vsub.s32 0, %v2085
        %v2087 = vsel %vm2081, %v2086, %v2085
        %vm2088 = vcmp.lt.s32.totalorder %v663, 0
        %v2089 = vsub.s32 0, %v663
        %v2090 = vsel %vm2088, %v2089, %v663
        %v2091 = vshrl.u32 %v2090, 3
        %v2092 = vand.u32 %v2090, 7
        %v2093 = vsub.s32 0, %v2092
        %v2094 = vsel %vm2088, %v2093, %v2092
        %vm2095 = vcmp.lt.s32.totalorder %v664, 0
        %v2096 = vsub.s32 0, %v664
        %v2097 = vsel %vm2095, %v2096, %v664
        %v2098 = vshrl.u32 %v2097, 3
        %v2099 = vand.u32 %v2097, 7
        %v2100 = vsub.s32 0, %v2099
        %v2101 = vsel %vm2095, %v2100, %v2099
        %vm2102 = vcmp.lt.s32.totalorder %v665, 0
        %v2103 = vsub.s32 0, %v665
        %v2104 = vsel %vm2102, %v2103, %v665
        %v2105 = vshrl.u32 %v2104, 3
        %v2106 = vand.u32 %v2104, 7
        %v2107 = vsub.s32 0, %v2106
        %v2108 = vsel %vm2102, %v2107, %v2106
        %vm2109 = vcmp.lt.s32.totalorder %v666, 0
        %v2110 = vsub.s32 0, %v666
        %v2111 = vsel %vm2109, %v2110, %v666
        %v2112 = vshrl.u32 %v2111, 3
        %v2113 = vand.u32 %v2111, 7
        %v2114 = vsub.s32 0, %v2113
        %v2115 = vsel %vm2109, %v2114, %v2113
        %vm2116 = vcmp.lt.s32.totalorder %v667, 0
        %v2117 = vsub.s32 0, %v667
        %v2118 = vsel %vm2116, %v2117, %v667
        %v2119 = vshrl.u32 %v2118, 3
        %v2120 = vand.u32 %v2118, 7
        %v2121 = vsub.s32 0, %v2120
        %v2122 = vsel %vm2116, %v2121, %v2120
        %vm2123 = vcmp.ne.s32.totalorder %v2073, 0
        %vm2124 = vcmp.ne.s32.totalorder %v2080, 0
        %vm2125 = vcmp.ne.s32.totalorder %v2087, 0
        %vm2126 = vcmp.ne.s32.totalorder %v2094, 0
        %vm2127 = vcmp.ne.s32.totalorder %v2101, 0
        %vm2128 = vcmp.ne.s32.totalorder %v2108, 0
        %vm2129 = vcmp.ne.s32.totalorder %v2115, 0
        %vm2130 = vcmp.ne.s32.totalorder %v2122, 0
        %vm2131 = vcmp.lt.s32.totalorder %v2073, 0
        %vm2132 = vcmp.lt.s32.totalorder %v2080, 0
        %vm2133 = vcmp.lt.s32.totalorder %v2087, 0
        %vm2134 = vcmp.lt.s32.totalorder %v2094, 0
        %vm2135 = vcmp.lt.s32.totalorder %v2101, 0
        %vm2136 = vcmp.lt.s32.totalorder %v2108, 0
        %vm2137 = vcmp.lt.s32.totalorder %v2115, 0
        %vm2138 = vcmp.lt.s32.totalorder %v2122, 0
        %vm2139 = vmand %vm2131, %vm2123
        %vm2140 = vmand %vm2132, %vm2124
        %vm2141 = vmand %vm2133, %vm2125
        %vm2142 = vmand %vm2134, %vm2126
        %vm2143 = vmand %vm2135, %vm2127
        %vm2144 = vmand %vm2136, %vm2128
        %vm2145 = vmand %vm2137, %vm2129
        %vm2146 = vmand %vm2138, %vm2130
        %v2147 = vadd.s32 %v2073, 8
        %v2148 = vadd.s32 %v2080, 8
        %v2149 = vadd.s32 %v2087, 8
        %v2150 = vadd.s32 %v2094, 8
        %v2151 = vadd.s32 %v2101, 8
        %v2152 = vadd.s32 %v2108, 8
        %v2153 = vadd.s32 %v2115, 8
        %v2154 = vadd.s32 %v2122, 8
        %v2155 = vsel %vm2139, %v2147, %v2073
        %v2156 = vsel %vm2140, %v2148, %v2080
        %v2157 = vsel %vm2141, %v2149, %v2087
        %v2158 = vsel %vm2142, %v2150, %v2094
        %v2159 = vsel %vm2143, %v2151, %v2101
        %v2160 = vsel %vm2144, %v2152, %v2108
        %v2161 = vsel %vm2145, %v2153, %v2115
        %v2162 = vsel %vm2146, %v2154, %v2122
        %vm2163 = vcmp.ne.s32.totalorder %v2155, 7
        %vm2164 = vcmp.ne.s32.totalorder %v2156, 7
        %vm2165 = vcmp.ne.s32.totalorder %v2157, 7
        %vm2166 = vcmp.ne.s32.totalorder %v2158, 7
        %vm2167 = vcmp.ne.s32.totalorder %v2159, 7
        %vm2168 = vcmp.ne.s32.totalorder %v2160, 7
        %vm2169 = vcmp.ne.s32.totalorder %v2161, 7
        %vm2170 = vcmp.ne.s32.totalorder %v2162, 7
        %v2171 = vsel %vm2163, %v2049, 0.0
        %v2172 = vsel %vm2164, %v2048, 0.0
        %v2173 = vsel %vm2165, %v2047, 0.0
        %v2174 = vsel %vm2166, %v2046, 0.0
        %v2175 = vsel %vm2167, %v2045, 0.0
        %v2176 = vsel %vm2168, %v2044, 0.0
        %v2177 = vsel %vm2169, %v2043, 0.0
        %v2178 = vsel %vm2170, %v2050, 0.0
        %vm2179 = vcmp.ne.s32.totalorder %v2155, 0
        %vm2180 = vcmp.ne.s32.totalorder %v2156, 0
        %vm2181 = vcmp.ne.s32.totalorder %v2157, 0
        %vm2182 = vcmp.ne.s32.totalorder %v2158, 0
        %vm2183 = vcmp.ne.s32.totalorder %v2159, 0
        %vm2184 = vcmp.ne.s32.totalorder %v2160, 0
        %vm2185 = vcmp.ne.s32.totalorder %v2161, 0
        %vm2186 = vcmp.ne.s32.totalorder %v2162, 0
        %v2187 = vsel %vm2179, %v2066, 0.0
        %v2188 = vsel %vm2180, %v2065, 0.0
        %v2189 = vsel %vm2181, %v2064, 0.0
        %v2190 = vsel %vm2182, %v2063, 0.0
        %v2191 = vsel %vm2183, %v2062, 0.0
        %v2192 = vsel %vm2184, %v2061, 0.0
        %v2193 = vsel %vm2185, %v2060, 0.0
        %v2194 = vsel %vm2186, %v2059, 0.0
        %v2195 = vld [vmem:[%s1 + $0x1f0] sm:$0xf]
        %v2196 = vld [vmem:[%s1 + $0x1f4] sm:$0xf]
        %v2197 = vld [vmem:[%s1 + $0x1f8] sm:$0xf]
        %v2198 = vld [vmem:[%s1 + $0x1fc] sm:$0xf]
        %v2199 = vld [vmem:[%s1 + $0x200] sm:$0xf]
        %v2200 = vld [vmem:[%s1 + $0x204] sm:$0xf]
        %v2201 = vld [vmem:[%s1 + $0x208] sm:$0xf]
        %v2202 = vld [vmem:[%s1 + $0x20c] sm:$0xf]
        %v2203 = vld [vmem:[%s1 + $0x210] sm:$0xf]
        %v2204 = vld [vmem:[%s1 + $0x214] sm:$0xf]
        %v2205 = vld [vmem:[%s1 + $0x218] sm:$0xf]
        %v2206 = vld [vmem:[%s1 + $0x21c] sm:$0xf]
        %v2207 = vld [vmem:[%s1 + $0x220] sm:$0xf]
        %v2208 = vld [vmem:[%s1 + $0x224] sm:$0xf]
        %v2209 = vld [vmem:[%s1 + $0x228] sm:$0xf]
        %v2210 = vld [vmem:[%s1 + $0x22c] sm:$0xf]
        %v2211 = vld [vmem:[%s1 + $0x230] sm:$0xf]
        %v2212 = vld [vmem:[%s1 + $0x234] sm:$0xf]
        %v2213 = vld [vmem:[%s1 + $0x238] sm:$0xf]
        %v2214 = vld [vmem:[%s1 + $0x23c] sm:$0xf]
        %v2215 = vld [vmem:[%s1 + $0x240] sm:$0xf]
        %v2216 = vld [vmem:[%s1 + $0x244] sm:$0xf]
        %v2217 = vld [vmem:[%s1 + $0x248] sm:$0xf]
        %v2218 = vld [vmem:[%s1 + $0x24c] sm:$0xf]
        %v2219 = vld [vmem:[%s1 + $0x250] sm:$0xf]
        %v2220 = vld [vmem:[%s1 + $0x254] sm:$0xf]
        %v2221 = vld [vmem:[%s1 + $0x258] sm:$0xf]
        %v2222 = vld [vmem:[%s1 + $0x25c] sm:$0xf]
        %v2223 = vld [vmem:[%s1 + $0x260] sm:$0xf]
        %v2224 = vld [vmem:[%s1 + $0x264] sm:$0xf]
        %v2225 = vld [vmem:[%s1 + $0x268] sm:$0xf]
        %v2226 = vld [vmem:[%s1 + $0x26c] sm:$0xf]
        %v2227 = vld [vmem:[%s1 + $0x270] sm:$0xf]
        %v2228 = vld [vmem:[%s1 + $0x274] sm:$0xf]
        %v2229 = vld [vmem:[%s1 + $0x278] sm:$0xf]
        %v2230 = vld [vmem:[%s1 + $0x27c] sm:$0xf]
        %v2231 = vld [vmem:[%s1 + $0x280] sm:$0xf]
        %v2232 = vld [vmem:[%s1 + $0x284] sm:$0xf]
        %v2233 = vld [vmem:[%s1 + $0x288] sm:$0xf]
        %v2234 = vld [vmem:[%s1 + $0x28c] sm:$0xf]
        %v2235 = vld [vmem:[%s1 + $0x290] sm:$0xf]
        %v2236 = vld [vmem:[%s1 + $0x294] sm:$0xf]
        %v2237 = vld [vmem:[%s1 + $0x298] sm:$0xf]
        %v2238 = vld [vmem:[%s1 + $0x29c] sm:$0xf]
        %v2239 = vld [vmem:[%s1 + $0x2a0] sm:$0xf]
        %v2240 = vld [vmem:[%s1 + $0x2a4] sm:$0xf]
        %v2241 = vld [vmem:[%s1 + $0x2a8] sm:$0xf]
        %v2242 = vld [vmem:[%s1 + $0x2ac] sm:$0xf]
        %v2243 = vpack.c.bf16 %v2188, %v2187
        %v2244 = vpack.c.bf16 %v2028, %v2027
        %v2245 = vpack.c.bf16 %v2172, %v2171
        %v2246 = vpack.c.bf16 %v2190, %v2189
        %v2247 = vpack.c.bf16 %v2030, %v2029
        %v2248 = vpack.c.bf16 %v2174, %v2173
        %v2249 = vpack.c.bf16 %v2192, %v2191
        %v2250 = vpack.c.bf16 %v2032, %v2031
        %v2251 = vpack.c.bf16 %v2176, %v2175
        %v2252 = vpack.c.bf16 %v2194, %v2193
        %v2253 = vpack.c.bf16 %v2034, %v2033
        %v2254 = vpack.c.bf16 %v2178, %v2177
        %v2255 = vld [vmem:[%s3 + $0x3] sm:$0x1]
        %v2256 = vlaneseq
        %v2257 = vshrl.u32 %v2256, 7
        %v2258 = vsub.s32 0, %v2257
        %v2259 = vrot.slane %v2255, %v2258
        %v2308 = vunpack.c.l.b16 %v2195
        %v2309 = vunpack.c.l.b16 %v2196
        %v2310 = vunpack.c.l.b16 %v2197
        %v2311 = vunpack.c.l.b16 %v2198
        %v2312 = vunpack.c.l.b16 %v2199
        %v2313 = vunpack.c.l.b16 %v2200
        %v2314 = vunpack.c.l.b16 %v2201
        %v2315 = vunpack.c.l.b16 %v2202
        %v2316 = vunpack.c.l.b16 %v2203
        %v2317 = vunpack.c.l.b16 %v2204
        %v2318 = vunpack.c.l.b16 %v2205
        %v2319 = vunpack.c.l.b16 %v2206
        %v2320 = vunpack.c.l.b16 %v2207
        %v2321 = vunpack.c.l.b16 %v2208
        %v2322 = vunpack.c.l.b16 %v2209
        %v2323 = vunpack.c.l.b16 %v2210
        %v2324 = vunpack.c.l.b16 %v2211
        %v2325 = vunpack.c.l.b16 %v2212
        %v2326 = vunpack.c.l.b16 %v2213
        %v2327 = vunpack.c.l.b16 %v2214
        %v2328 = vunpack.c.l.b16 %v2215
        %v2329 = vunpack.c.l.b16 %v2216
        %v2330 = vunpack.c.l.b16 %v2217
        %v2331 = vunpack.c.l.b16 %v2218
        %v2332 = vunpack.c.l.b16 %v2219
        %v2333 = vunpack.c.l.b16 %v2220
        %v2334 = vunpack.c.l.b16 %v2221
        %v2335 = vunpack.c.l.b16 %v2222
        %v2336 = vunpack.c.l.b16 %v2223
        %v2337 = vunpack.c.l.b16 %v2224
        %v2338 = vunpack.c.l.b16 %v2225
        %v2339 = vunpack.c.l.b16 %v2226
        %v2340 = vunpack.c.l.b16 %v2227
        %v2341 = vunpack.c.l.b16 %v2228
        %v2342 = vunpack.c.l.b16 %v2229
        %v2343 = vunpack.c.l.b16 %v2230
        %v2344 = vunpack.c.l.b16 %v2231
        %v2345 = vunpack.c.l.b16 %v2232
        %v2346 = vunpack.c.l.b16 %v2233
        %v2347 = vunpack.c.l.b16 %v2234
        %v2348 = vunpack.c.l.b16 %v2235
        %v2349 = vunpack.c.l.b16 %v2236
        %v2350 = vunpack.c.l.b16 %v2237
        %v2351 = vunpack.c.l.b16 %v2238
        %v2352 = vunpack.c.l.b16 %v2239
        %v2353 = vunpack.c.l.b16 %v2240
        %v2354 = vunpack.c.l.b16 %v2241
        %v2355 = vunpack.c.l.b16 %v2242
        %v2356 = vpack.c.b16 %v2309, %v2308
        %v2357 = vpack.c.b16 %v2311, %v2310
        %v2358 = vpack.c.b16 %v2313, %v2312
        %v2359 = vpack.c.b16 %v2315, %v2314
        %v2360 = vpack.c.b16 %v2317, %v2316
        %v2361 = vpack.c.b16 %v2319, %v2318
        %v2362 = vpack.c.b16 %v2321, %v2320
        %v2363 = vpack.c.b16 %v2323, %v2322
        %v2364 = vpack.c.b16 %v2325, %v2324
        %v2365 = vpack.c.b16 %v2327, %v2326
        %v2366 = vpack.c.b16 %v2329, %v2328
        %v2367 = vpack.c.b16 %v2331, %v2330
        %v2368 = vpack.c.b16 %v2333, %v2332
        %v2369 = vpack.c.b16 %v2335, %v2334
        %v2370 = vpack.c.b16 %v2337, %v2336
        %v2371 = vpack.c.b16 %v2339, %v2338
        %v2372 = vpack.c.b16 %v2341, %v2340
        %v2373 = vpack.c.b16 %v2343, %v2342
        %v2374 = vpack.c.b16 %v2345, %v2344
        %v2375 = vpack.c.b16 %v2347, %v2346
        %v2376 = vpack.c.b16 %v2349, %v2348
        %v2377 = vpack.c.b16 %v2351, %v2350
        %v2378 = vpack.c.b16 %v2353, %v2352
        %v2379 = vpack.c.b16 %v2355, %v2354
        %2404 = vmatprep.subr.bf16.mxu0 0
        %2405 = vmatpush1.bf16.msra.mxu0 %v2356
        %2406 = vmatprep.subr.bf16.mxu0 0
        %2407 = vmatpush1.bf16.msra.mxu0 %v2357
        %2408 = vmatprep.subr.bf16.mxu0 0
        %2409 = vmatpush1.bf16.msra.mxu0 %v2358
        %2410 = vmatprep.subr.bf16.mxu0 0
        %2411 = vmatpush1.bf16.msra.mxu0 %v2359
        %2412 = vmatprep.subr.bf16.mxu0 0
        %2413 = vmatpush1.bf16.msra.mxu0 %v2360
        %2414 = vmatprep.subr.bf16.mxu0 0
        %2415 = vmatpush1.bf16.msra.mxu0 %v2361
        %2416 = vmatprep.subr.bf16.mxu0 0
        %2417 = vmatpush1.bf16.msra.mxu0 %v2362
        %2418 = vmatprep.subr.bf16.mxu0 0
        %2419 = vmatpush1.bf16.msra.mxu0 %v2363
        %2420 = vmatprep.subr.bf16.mxu0 0
        %2421 = vmatpush1.bf16.msra.mxu0 %v2364
        %2422 = vmatprep.subr.bf16.mxu0 0
        %2423 = vmatpush1.bf16.msra.mxu0 %v2365
        %2424 = vmatprep.subr.bf16.mxu0 0
        %2425 = vmatpush1.bf16.msra.mxu0 %v2366
        %2426 = vmatprep.subr.bf16.mxu0 0
        %2427 = vmatpush1.bf16.msra.mxu0 %v2367
        %2428 = vmatprep.subr.bf16.mxu0 0
        %2429 = vmatpush1.bf16.msra.mxu0 %v2368
        %2430 = vmatprep.subr.bf16.mxu0 0
        %2431 = vmatpush1.bf16.msra.mxu0 %v2369
        %2432 = vmatprep.subr.bf16.mxu0 0
        %2433 = vmatpush1.bf16.msra.mxu0 %v2370
        %2434 = vmatprep.subr.bf16.mxu0 0
        %2435 = vmatpush1.bf16.msra.mxu0 %v2371
        %2436 = vmatprep.mubr.bf16.mxu0 %v2244
        %2437 = vmatmul.mubr.bf16.gmra.mrb[0].mxu0 %v2243
        %v2438 = vpop.f32.mrb[0].mxu0
        %v2439 = vadd.f32 %v2259, %v2438
        %v2440 = vpop.f32.mrb[0].mxu0
        %v2441 = vpop.f32.mrb[0].mxu0
        %v2442 = vadd.f32 %v2259, %v2441
        %v2443 = vpop.f32.mrb[0].mxu0
        %2444 = vmatprep.mubr.bf16.mxu0 %v2247
        %2445 = vmatmul.mubr.bf16.gmra.mrb[0].mxu0 %v2246
        %v2446 = vpop.f32.mrb[0].mxu0
        %v2447 = vadd.f32 %v2259, %v2446
        %v2448 = vpop.f32.mrb[0].mxu0
        %v2449 = vpop.f32.mrb[0].mxu0
        %v2450 = vadd.f32 %v2259, %v2449
        %v2451 = vpop.f32.mrb[0].mxu0
        %2452 = vmatprep.mubr.bf16.mxu0 %v2250
        %2453 = vmatmul.mubr.bf16.gmra.mrb[0].mxu0 %v2249
        %v2454 = vpop.f32.mrb[0].mxu0
        %v2455 = vadd.f32 %v2259, %v2454
        %v2456 = vpop.f32.mrb[0].mxu0
        %v2457 = vpop.f32.mrb[0].mxu0
        %v2458 = vadd.f32 %v2259, %v2457
        %v2459 = vpop.f32.mrb[0].mxu0
        %2460 = vmatprep.mubr.bf16.mxu0 %v2253
        %2461 = vmatmul.mubr.bf16.gmra.mrb[0].mxu0 %v2252
        %v2462 = vpop.f32.mrb[0].mxu0
        %v2463 = vadd.f32 %v2259, %v2462
        %v2464 = vpop.f32.mrb[0].mxu0
        %v2465 = vpop.f32.mrb[0].mxu0
        %v2466 = vadd.f32 %v2259, %v2465
        %v2467 = vpop.f32.mrb[0].mxu0
        %2468 = vdwg.mxu0
        %2469 = vmatprep.subr.bf16.mxu0 0
        %2470 = vmatpush1.bf16.msra.mxu0 %v2372
        %2471 = vmatprep.subr.bf16.mxu0 0
        %2472 = vmatpush1.bf16.msra.mxu0 %v2373
        %2473 = vmatprep.subr.bf16.mxu0 0
        %2474 = vmatpush1.bf16.msra.mxu0 %v2374
        %2475 = vmatprep.subr.bf16.mxu0 0
        %2476 = vmatpush1.bf16.msra.mxu0 %v2375
        %2477 = vmatprep.subr.bf16.mxu0 0
        %2478 = vmatpush1.bf16.msra.mxu0 %v2376
        %2479 = vmatprep.subr.bf16.mxu0 0
        %2480 = vmatpush1.bf16.msra.mxu0 %v2377
        %2481 = vmatprep.subr.bf16.mxu0 0
        %2482 = vmatpush1.bf16.msra.mxu0 %v2378
        %2483 = vmatprep.subr.bf16.mxu0 0
        %2484 = vmatpush1.bf16.msra.mxu0 %v2379
        %2485 = vmatprep.subr.bf16.mxu0 0
        %2486 = vmatpush1.bf16.msra.mxu0 0
        %2487 = vmatprep.subr.bf16.mxu0 0
        %2488 = vmatpush1.bf16.msra.mxu0 0
        %2489 = vmatprep.subr.bf16.mxu0 0
        %2490 = vmatpush1.bf16.msra.mxu0 0
        %2491 = vmatprep.subr.bf16.mxu0 0
        %2492 = vmatpush1.bf16.msra.mxu0 0
        %2493 = vmatprep.subr.bf16.mxu0 0
        %2494 = vmatpush1.bf16.msra.mxu0 0
        %2495 = vmatprep.subr.bf16.mxu0 0
        %2496 = vmatpush1.bf16.msra.mxu0 0
        %2497 = vmatprep.subr.bf16.mxu0 0
        %2498 = vmatpush1.bf16.msra.mxu0 0
        %2499 = vmatprep.subr.bf16.mxu0 0
        %2500 = vmatpush1.bf16.msra.mxu0 0
        %2501 = vmatprep.mubr.bf16.mxu0 0
        %2502 = vmatmul.mubr.bf16.gmra.mrb[0].mxu0 %v2245
        %v2503 = vpop.f32.mrb[0].mxu0
        %v2504 = vadd.f32 %v2439, %v2503
        %v2505 = vpop.f32.mrb[0].mxu0
        %v2506 = vpop.f32.mrb[0].mxu0
        %v2507 = vadd.f32 %v2442, %v2506
        %v2508 = vpop.f32.mrb[0].mxu0
        %2509 = vmatprep.mubr.bf16.mxu0 0
        %2510 = vmatmul.mubr.bf16.gmra.mrb[0].mxu0 %v2248
        %v2511 = vpop.f32.mrb[0].mxu0
        %v2512 = vadd.f32 %v2447, %v2511
        %v2513 = vpop.f32.mrb[0].mxu0
        %v2514 = vpop.f32.mrb[0].mxu0
        %v2515 = vadd.f32 %v2450, %v2514
        %v2516 = vpop.f32.mrb[0].mxu0
        %2517 = vmatprep.mubr.bf16.mxu0 0
        %2518 = vmatmul.mubr.bf16.gmra.mrb[0].mxu0 %v2251
        %v2519 = vpop.f32.mrb[0].mxu0
        %v2520 = vadd.f32 %v2455, %v2519
        %v2521 = vpop.f32.mrb[0].mxu0
        %v2522 = vpop.f32.mrb[0].mxu0
        %v2523 = vadd.f32 %v2458, %v2522
        %v2524 = vpop.f32.mrb[0].mxu0
        %2525 = vmatprep.mubr.bf16.mxu0 0
        %2526 = vmatmul.mubr.bf16.gmra.mrb[0].mxu0 %v2254
        %v2527 = vpop.f32.mrb[0].mxu0
        %v2528 = vadd.f32 %v2463, %v2527
        %v2529 = vpop.f32.mrb[0].mxu0
        %v2530 = vpop.f32.mrb[0].mxu0
        %v2531 = vadd.f32 %v2466, %v2530
        %v2532 = vpop.f32.mrb[0].mxu0
        %2533 = vdwg.mxu0
        %v2534 = vrot.slane %v2504, 1
        %v2535 = vrot.slane %v2507, 1
        %v2536 = vrot.slane %v2512, 1
        %v2537 = vrot.slane %v2515, 1
        %v2538 = vrot.slane %v2520, 1
        %v2539 = vrot.slane %v2523, 1
        %v2540 = vrot.slane %v2528, 1
        %v2541 = vrot.slane %v2531, 1
        %v2542 = vsel %vm611, %v2540, %v2541
        %v2543 = vsel %vm611, %v2539, %v2540
        %v2544 = vsel %vm611, %v2538, %v2539
        %v2545 = vsel %vm611, %v2537, %v2538
        %v2546 = vsel %vm611, %v2536, %v2537
        %v2547 = vsel %vm611, %v2535, %v2536
        %v2548 = vsel %vm611, %v2534, %v2535
        %v2549 = vsel %vm611, %v2541, %v2534
        %v2550 = vmax.f32 %v2504, %v2548
        %v2551 = vmax.f32 %v2507, %v2547
        %v2552 = vmax.f32 %v2512, %v2546
        %v2553 = vmax.f32 %v2515, %v2545
        %v2554 = vmax.f32 %v2520, %v2544
        %v2555 = vmax.f32 %v2523, %v2543
        %v2556 = vmax.f32 %v2528, %v2542
        %v2557 = vmax.f32 %v2531, %v2549
        %v2558 = vld [vmem:[%s1 + $0x2b0] sm:$0xf]
        %v2559 = vld [vmem:[%s1 + $0x2b4] sm:$0xf]
        %v2560 = vld [vmem:[%s1 + $0x2b8] sm:$0xf]
        %v2561 = vld [vmem:[%s1 + $0x2bc] sm:$0xf]
        %v2562 = vpack.c.bf16 %v2551, %v2550
        %v2563 = vpack.c.bf16 %v2553, %v2552
        %v2564 = vpack.c.bf16 %v2555, %v2554
        %v2565 = vpack.c.bf16 %v2557, %v2556
        %v2570 = vunpack.c.l.b16 %v2558
        %v2571 = vunpack.c.l.b16 %v2559
        %v2572 = vunpack.c.l.b16 %v2560
        %v2573 = vunpack.c.l.b16 %v2561
        %v2574 = vpack.c.b16 %v2571, %v2570
        %v2575 = vpack.c.b16 %v2573, %v2572
        %vm2576 = vcmask 523264
        %v2578 = vsel %vm2576, %v2574, 0
        %v2581 = vsel %vm2576, %v2575, 0
        %2583 = vmatprep.subr.bf16.mxu0 0
        %2584 = vmatpush1.bf16.msra.mxu0 %v2562
        %2585 = vmatprep.subr.bf16.mxu0 0
        %2586 = vmatpush1.bf16.msra.mxu0 %v2563
        %2587 = vmatprep.subr.bf16.mxu0 0
        %2588 = vmatpush1.bf16.msra.mxu0 %v2564
        %2589 = vmatprep.subr.bf16.mxu0 0
        %2590 = vmatpush1.bf16.msra.mxu0 %v2565
        %2591 = vmatprep.subr.bf16.mxu0 0
        %2592 = vmatpush1.bf16.msra.mxu0 0
        %2593 = vmatprep.subr.bf16.mxu0 0
        %2594 = vmatpush1.bf16.msra.mxu0 0
        %2595 = vmatprep.subr.bf16.mxu0 0
        %2596 = vmatpush1.bf16.msra.mxu0 0
        %2597 = vmatprep.subr.bf16.mxu0 0
        %2598 = vmatpush1.bf16.msra.mxu0 0
        %2599 = vmatprep.subr.bf16.mxu0 0
        %2600 = vmatpush1.bf16.msra.mxu0 0
        %2601 = vmatprep.subr.bf16.mxu0 0
        %2602 = vmatpush1.bf16.msra.mxu0 0
        %2603 = vmatprep.subr.bf16.mxu0 0
        %2604 = vmatpush1.bf16.msra.mxu0 0
        %2605 = vmatprep.subr.bf16.mxu0 0
        %2606 = vmatpush1.bf16.msra.mxu0 0
        %2607 = vmatprep.subr.bf16.mxu0 0
        %2608 = vmatpush1.bf16.msra.mxu0 0
        %2609 = vmatprep.subr.bf16.mxu0 0
        %2610 = vmatpush1.bf16.msra.mxu0 0
        %2611 = vmatprep.subr.bf16.mxu0 0
        %2612 = vmatpush1.bf16.msra.mxu0 0
        %2613 = vmatprep.subr.bf16.mxu0 0
        %2614 = vmatpush1.bf16.msra.mxu0 0
        %2615 = vmatprep.mubr.bf16.mxu0 0
        %2616 = vmatmul.mubr.bf16.gmra.mrb[0].mxu0 %v2578
        %v2617 = vpop.f32.mrb[0].mxu0
        %v2618 = vadd.f32 0.0, %v2617
        %v2619 = vpop.f32.mrb[0].mxu0
        %v2620 = vpop.f32.mrb[0].mxu0
        %v2621 = vadd.f32 0.0, %v2620
        %v2622 = vpop.f32.mrb[0].mxu0
        %2623 = vmatprep.mubr.bf16.mxu0 0
        %2624 = vmatmul.mubr.bf16.gmra.mrb[0].mxu0 %v2581
        %v2625 = vpop.f32.mrb[0].mxu0
        %v2626 = vadd.f32 0.0, %v2625
        %v2627 = vpop.f32.mrb[0].mxu0
        %v2628 = vpop.f32.mrb[0].mxu0
        %v2629 = vadd.f32 0.0, %v2628
        %v2630 = vpop.f32.mrb[0].mxu0
        %2631 = vdwg.mxu0
        %2632 = vrot.lane.b32.xlu0 %v2618, 112
        %v2633 = vpop.permute.xlu0 %2632
        %2634 = vrot.lane.b32.xlu0 %v2621, 112
        %v2635 = vpop.permute.xlu0 %2634
        %2636 = vrot.lane.b32.xlu0 %v2626, 112
        %v2637 = vpop.permute.xlu0 %2636
        %2638 = vrot.lane.b32.xlu0 %v2629, 112
        %v2639 = vpop.permute.xlu0 %2638
        %v2640 = vmax.f32 %v2618, %v2633
        %v2641 = vmax.f32 %v2621, %v2635
        %v2642 = vmax.f32 %v2626, %v2637
        %v2643 = vmax.f32 %v2629, %v2639
        %v2644 = vrot.slane %v2640, 1
        %v2645 = vrot.slane %v2641, 1
        %v2646 = vrot.slane %v2642, 1
        %v2647 = vrot.slane %v2643, 1
        %v2648 = vsel %vm611, %v2646, %v2647
        %v2649 = vsel %vm611, %v2645, %v2646
        %v2650 = vsel %vm611, %v2644, %v2645
        %v2651 = vsel %vm611, %v2647, %v2644
        %v2652 = vrot.slane %v2640, 7
        %v2653 = vrot.slane %v2641, 7
        %v2654 = vrot.slane %v2642, 7
        %v2655 = vrot.slane %v2643, 7
        %v2656 = vsel %vm644, %v2654, %v2655
        %v2657 = vsel %vm644, %v2653, %v2654
        %v2658 = vsel %vm644, %v2652, %v2653
        %v2659 = vsel %vm644, %v2655, %v2652
        %vm2660 = vcmp.lt.s32.totalorder %v610, 0
        %v2661 = vsub.s32 0, %v610
        %v2662 = vsel %vm2660, %v2661, %v610
        %v2663 = vshrl.u32 %v2662, 2
        %v2664 = vand.u32 %v2662, 3
        %v2665 = vsub.s32 0, %v2664
        %v2666 = vsel %vm2660, %v2665, %v2664
        %vm2667 = vcmp.lt.s32.totalorder %v661, 0
        %v2668 = vsub.s32 0, %v661
        %v2669 = vsel %vm2667, %v2668, %v661
        %v2670 = vshrl.u32 %v2669, 2
        %v2671 = vand.u32 %v2669, 3
        %v2672 = vsub.s32 0, %v2671
        %v2673 = vsel %vm2667, %v2672, %v2671
        %vm2674 = vcmp.lt.s32.totalorder %v662, 0
        %v2675 = vsub.s32 0, %v662
        %v2676 = vsel %vm2674, %v2675, %v662
        %v2677 = vshrl.u32 %v2676, 2
        %v2678 = vand.u32 %v2676, 3
        %v2679 = vsub.s32 0, %v2678
        %v2680 = vsel %vm2674, %v2679, %v2678
        %vm2681 = vcmp.lt.s32.totalorder %v663, 0
        %v2682 = vsub.s32 0, %v663
        %v2683 = vsel %vm2681, %v2682, %v663
        %v2684 = vshrl.u32 %v2683, 2
        %v2685 = vand.u32 %v2683, 3
        %v2686 = vsub.s32 0, %v2685
        %v2687 = vsel %vm2681, %v2686, %v2685
        %vm2688 = vcmp.ne.s32.totalorder %v2666, 0
        %vm2689 = vcmp.ne.s32.totalorder %v2673, 0
        %vm2690 = vcmp.ne.s32.totalorder %v2680, 0
        %vm2691 = vcmp.ne.s32.totalorder %v2687, 0
        %vm2692 = vcmp.lt.s32.totalorder %v2666, 0
        %vm2693 = vcmp.lt.s32.totalorder %v2673, 0
        %vm2694 = vcmp.lt.s32.totalorder %v2680, 0
        %vm2695 = vcmp.lt.s32.totalorder %v2687, 0
        %vm2696 = vmand %vm2692, %vm2688
        %vm2697 = vmand %vm2693, %vm2689
        %vm2698 = vmand %vm2694, %vm2690
        %vm2699 = vmand %vm2695, %vm2691
        %v2700 = vadd.s32 %v2666, 4
        %v2701 = vadd.s32 %v2673, 4
        %v2702 = vadd.s32 %v2680, 4
        %v2703 = vadd.s32 %v2687, 4
        %v2704 = vsel %vm2696, %v2700, %v2666
        %v2705 = vsel %vm2697, %v2701, %v2673
        %v2706 = vsel %vm2698, %v2702, %v2680
        %v2707 = vsel %vm2699, %v2703, %v2687
        %vm2708 = vcmp.ne.s32.totalorder %v2704, 3
        %vm2709 = vcmp.ne.s32.totalorder %v2705, 3
        %vm2710 = vcmp.ne.s32.totalorder %v2706, 3
        %vm2711 = vcmp.ne.s32.totalorder %v2707, 3
        %v2712 = vsel %vm2708, %v2650, 0.0
        %v2713 = vsel %vm2709, %v2649, 0.0
        %v2714 = vsel %vm2710, %v2648, 0.0
        %v2715 = vsel %vm2711, %v2651, 0.0
        %vm2716 = vcmp.ne.s32.totalorder %v2704, 0
        %vm2717 = vcmp.ne.s32.totalorder %v2705, 0
        %vm2718 = vcmp.ne.s32.totalorder %v2706, 0
        %vm2719 = vcmp.ne.s32.totalorder %v2707, 0
        %v2720 = vsel %vm2716, %v2659, 0.0
        %v2721 = vsel %vm2717, %v2658, 0.0
        %v2722 = vsel %vm2718, %v2657, 0.0
        %v2723 = vsel %vm2719, %v2656, 0.0
        %v2724 = vld [vmem:[%s1 + $0x2c0] sm:$0xf]
        %v2725 = vld [vmem:[%s1 + $0x2c4] sm:$0xf]
        %v2726 = vld [vmem:[%s1 + $0x2c8] sm:$0xf]
        %v2727 = vld [vmem:[%s1 + $0x2cc] sm:$0xf]
        %v2728 = vld [vmem:[%s1 + $0x2d0] sm:$0xf]
        %v2729 = vld [vmem:[%s1 + $0x2d4] sm:$0xf]
        %v2730 = vld [vmem:[%s1 + $0x2d8] sm:$0xf]
        %v2731 = vld [vmem:[%s1 + $0x2dc] sm:$0xf]
        %v2732 = vld [vmem:[%s1 + $0x2e0] sm:$0xf]
        %v2733 = vld [vmem:[%s1 + $0x2e4] sm:$0xf]
        %v2734 = vld [vmem:[%s1 + $0x2e8] sm:$0xf]
        %v2735 = vld [vmem:[%s1 + $0x2ec] sm:$0xf]
        %v2736 = vld [vmem:[%s1 + $0x2f0] sm:$0xf]
        %v2737 = vld [vmem:[%s1 + $0x2f4] sm:$0xf]
        %v2738 = vld [vmem:[%s1 + $0x2f8] sm:$0xf]
        %v2739 = vld [vmem:[%s1 + $0x2fc] sm:$0xf]
        %v2740 = vld [vmem:[%s1 + $0x300] sm:$0xf]
        %v2741 = vld [vmem:[%s1 + $0x304] sm:$0xf]
        %v2742 = vld [vmem:[%s1 + $0x308] sm:$0xf]
        %v2743 = vld [vmem:[%s1 + $0x30c] sm:$0xf]
        %v2744 = vld [vmem:[%s1 + $0x310] sm:$0xf]
        %v2745 = vld [vmem:[%s1 + $0x314] sm:$0xf]
        %v2746 = vld [vmem:[%s1 + $0x318] sm:$0xf]
        %v2747 = vld [vmem:[%s1 + $0x31c] sm:$0xf]
        %v2748 = vld [vmem:[%s1 + $0x320] sm:$0xf]
        %v2749 = vld [vmem:[%s1 + $0x324] sm:$0xf]
        %v2750 = vld [vmem:[%s1 + $0x328] sm:$0xf]
        %v2751 = vld [vmem:[%s1 + $0x32c] sm:$0xf]
        %v2752 = vld [vmem:[%s1 + $0x330] sm:$0xf]
        %v2753 = vld [vmem:[%s1 + $0x334] sm:$0xf]
        %v2754 = vld [vmem:[%s1 + $0x338] sm:$0xf]
        %v2755 = vld [vmem:[%s1 + $0x33c] sm:$0xf]
        %v2756 = vld [vmem:[%s1 + $0x340] sm:$0xf]
        %v2757 = vld [vmem:[%s1 + $0x344] sm:$0xf]
        %v2758 = vld [vmem:[%s1 + $0x348] sm:$0xf]
        %v2759 = vld [vmem:[%s1 + $0x34c] sm:$0xf]
        %v2760 = vld [vmem:[%s1 + $0x350] sm:$0xf]
        %v2761 = vld [vmem:[%s1 + $0x354] sm:$0xf]
        %v2762 = vld [vmem:[%s1 + $0x358] sm:$0xf]
        %v2763 = vld [vmem:[%s1 + $0x35c] sm:$0xf]
        %v2764 = vld [vmem:[%s1 + $0x360] sm:$0xf]
        %v2765 = vld [vmem:[%s1 + $0x364] sm:$0xf]
        %v2766 = vld [vmem:[%s1 + $0x368] sm:$0xf]
        %v2767 = vld [vmem:[%s1 + $0x36c] sm:$0xf]
        %v2768 = vld [vmem:[%s1 + $0x370] sm:$0xf]
        %v2769 = vld [vmem:[%s1 + $0x374] sm:$0xf]
        %v2770 = vld [vmem:[%s1 + $0x378] sm:$0xf]
        %v2771 = vld [vmem:[%s1 + $0x37c] sm:$0xf]
        %v2772 = vpack.c.bf16 %v2721, %v2720
        %v2773 = vpack.c.bf16 %v2641, %v2640
        %v2774 = vpack.c.bf16 %v2713, %v2712
        %v2775 = vpack.c.bf16 %v2723, %v2722
        %v2776 = vpack.c.bf16 %v2643, %v2642
        %v2777 = vpack.c.bf16 %v2715, %v2714
        %v2778 = vld [vmem:[%s3 + $0x4] sm:$0x1]
        %v2779 = vlaneseq
        %v2780 = vshrl.u32 %v2779, 7
        %v2781 = vsub.s32 0, %v2780
        %v2782 = vrot.slane %v2778, %v2781
        %v2831 = vunpack.c.l.b16 %v2724
        %v2832 = vunpack.c.l.b16 %v2725
        %v2833 = vunpack.c.l.b16 %v2726
        %v2834 = vunpack.c.l.b16 %v2727
        %v2835 = vunpack.c.l.b16 %v2728
        %v2836 = vunpack.c.l.b16 %v2729
        %v2837 = vunpack.c.l.b16 %v2730
        %v2838 = vunpack.c.l.b16 %v2731
        %v2839 = vunpack.c.l.b16 %v2732
        %v2840 = vunpack.c.l.b16 %v2733
        %v2841 = vunpack.c.l.b16 %v2734
        %v2842 = vunpack.c.l.b16 %v2735
        %v2843 = vunpack.c.l.b16 %v2736
        %v2844 = vunpack.c.l.b16 %v2737
        %v2845 = vunpack.c.l.b16 %v2738
        %v2846 = vunpack.c.l.b16 %v2739
        %v2847 = vunpack.c.l.b16 %v2740
        %v2848 = vunpack.c.l.b16 %v2741
        %v2849 = vunpack.c.l.b16 %v2742
        %v2850 = vunpack.c.l.b16 %v2743
        %v2851 = vunpack.c.l.b16 %v2744
        %v2852 = vunpack.c.l.b16 %v2745
        %v2853 = vunpack.c.l.b16 %v2746
        %v2854 = vunpack.c.l.b16 %v2747
        %v2855 = vunpack.c.l.b16 %v2748
        %v2856 = vunpack.c.l.b16 %v2749
        %v2857 = vunpack.c.l.b16 %v2750
        %v2858 = vunpack.c.l.b16 %v2751
        %v2859 = vunpack.c.l.b16 %v2752
        %v2860 = vunpack.c.l.b16 %v2753
        %v2861 = vunpack.c.l.b16 %v2754
        %v2862 = vunpack.c.l.b16 %v2755
        %v2863 = vunpack.c.l.b16 %v2756
        %v2864 = vunpack.c.l.b16 %v2757
        %v2865 = vunpack.c.l.b16 %v2758
        %v2866 = vunpack.c.l.b16 %v2759
        %v2867 = vunpack.c.l.b16 %v2760
        %v2868 = vunpack.c.l.b16 %v2761
        %v2869 = vunpack.c.l.b16 %v2762
        %v2870 = vunpack.c.l.b16 %v2763
        %v2871 = vunpack.c.l.b16 %v2764
        %v2872 = vunpack.c.l.b16 %v2765
        %v2873 = vunpack.c.l.b16 %v2766
        %v2874 = vunpack.c.l.b16 %v2767
        %v2875 = vunpack.c.l.b16 %v2768
        %v2876 = vunpack.c.l.b16 %v2769
        %v2877 = vunpack.c.l.b16 %v2770
        %v2878 = vunpack.c.l.b16 %v2771
        %v2879 = vpack.c.b16 %v2832, %v2831
        %v2880 = vpack.c.b16 %v2834, %v2833
        %v2881 = vpack.c.b16 %v2836, %v2835
        %v2882 = vpack.c.b16 %v2838, %v2837
        %v2883 = vpack.c.b16 %v2840, %v2839
        %v2884 = vpack.c.b16 %v2842, %v2841
        %v2885 = vpack.c.b16 %v2844, %v2843
        %v2886 = vpack.c.b16 %v2846, %v2845
        %v2887 = vpack.c.b16 %v2848, %v2847
        %v2888 = vpack.c.b16 %v2850, %v2849
        %v2889 = vpack.c.b16 %v2852, %v2851
        %v2890 = vpack.c.b16 %v2854, %v2853
        %v2891 = vpack.c.b16 %v2856, %v2855
        %v2892 = vpack.c.b16 %v2858, %v2857
        %v2893 = vpack.c.b16 %v2860, %v2859
        %v2894 = vpack.c.b16 %v2862, %v2861
        %v2895 = vpack.c.b16 %v2864, %v2863
        %v2896 = vpack.c.b16 %v2866, %v2865
        %v2897 = vpack.c.b16 %v2868, %v2867
        %v2898 = vpack.c.b16 %v2870, %v2869
        %v2899 = vpack.c.b16 %v2872, %v2871
        %v2900 = vpack.c.b16 %v2874, %v2873
        %v2901 = vpack.c.b16 %v2876, %v2875
        %v2902 = vpack.c.b16 %v2878, %v2877
        %2927 = vmatprep.subr.bf16.mxu0 0
        %2928 = vmatpush1.bf16.msra.mxu0 %v2879
        %2929 = vmatprep.subr.bf16.mxu0 0
        %2930 = vmatpush1.bf16.msra.mxu0 %v2880
        %2931 = vmatprep.subr.bf16.mxu0 0
        %2932 = vmatpush1.bf16.msra.mxu0 %v2881
        %2933 = vmatprep.subr.bf16.mxu0 0
        %2934 = vmatpush1.bf16.msra.mxu0 %v2882
        %2935 = vmatprep.subr.bf16.mxu0 0
        %2936 = vmatpush1.bf16.msra.mxu0 %v2883
        %2937 = vmatprep.subr.bf16.mxu0 0
        %2938 = vmatpush1.bf16.msra.mxu0 %v2884
        %2939 = vmatprep.subr.bf16.mxu0 0
        %2940 = vmatpush1.bf16.msra.mxu0 %v2885
        %2941 = vmatprep.subr.bf16.mxu0 0
        %2942 = vmatpush1.bf16.msra.mxu0 %v2886
        %2943 = vmatprep.subr.bf16.mxu0 0
        %2944 = vmatpush1.bf16.msra.mxu0 %v2887
        %2945 = vmatprep.subr.bf16.mxu0 0
        %2946 = vmatpush1.bf16.msra.mxu0 %v2888
        %2947 = vmatprep.subr.bf16.mxu0 0
        %2948 = vmatpush1.bf16.msra.mxu0 %v2889
        %2949 = vmatprep.subr.bf16.mxu0 0
        %2950 = vmatpush1.bf16.msra.mxu0 %v2890
        %2951 = vmatprep.subr.bf16.mxu0 0
        %2952 = vmatpush1.bf16.msra.mxu0 %v2891
        %2953 = vmatprep.subr.bf16.mxu0 0
        %2954 = vmatpush1.bf16.msra.mxu0 %v2892
        %2955 = vmatprep.subr.bf16.mxu0 0
        %2956 = vmatpush1.bf16.msra.mxu0 %v2893
        %2957 = vmatprep.subr.bf16.mxu0 0
        %2958 = vmatpush1.bf16.msra.mxu0 %v2894
        %2959 = vmatprep.mubr.bf16.mxu0 %v2773
        %2960 = vmatmul.mubr.bf16.gmra.mrb[0].mxu0 %v2772
        %v2961 = vpop.f32.mrb[0].mxu0
        %v2962 = vadd.f32 %v2782, %v2961
        %v2963 = vpop.f32.mrb[0].mxu0
        %v2964 = vpop.f32.mrb[0].mxu0
        %v2965 = vadd.f32 %v2782, %v2964
        %v2966 = vpop.f32.mrb[0].mxu0
        %2967 = vmatprep.mubr.bf16.mxu0 %v2776
        %2968 = vmatmul.mubr.bf16.gmra.mrb[0].mxu0 %v2775
        %v2969 = vpop.f32.mrb[0].mxu0
        %v2970 = vadd.f32 %v2782, %v2969
        %v2971 = vpop.f32.mrb[0].mxu0
        %v2972 = vpop.f32.mrb[0].mxu0
        %v2973 = vadd.f32 %v2782, %v2972
        %v2974 = vpop.f32.mrb[0].mxu0
        %2975 = vdwg.mxu0
        %2976 = vmatprep.subr.bf16.mxu0 0
        %2977 = vmatpush1.bf16.msra.mxu0 %v2895
        %2978 = vmatprep.subr.bf16.mxu0 0
        %2979 = vmatpush1.bf16.msra.mxu0 %v2896
        %2980 = vmatprep.subr.bf16.mxu0 0
        %2981 = vmatpush1.bf16.msra.mxu0 %v2897
        %2982 = vmatprep.subr.bf16.mxu0 0
        %2983 = vmatpush1.bf16.msra.mxu0 %v2898
        %2984 = vmatprep.subr.bf16.mxu0 0
        %2985 = vmatpush1.bf16.msra.mxu0 %v2899
        %2986 = vmatprep.subr.bf16.mxu0 0
        %2987 = vmatpush1.bf16.msra.mxu0 %v2900
        %2988 = vmatprep.subr.bf16.mxu0 0
        %2989 = vmatpush1.bf16.msra.mxu0 %v2901
        %2990 = vmatprep.subr.bf16.mxu0 0
        %2991 = vmatpush1.bf16.msra.mxu0 %v2902
        %2992 = vmatprep.subr.bf16.mxu0 0
        %2993 = vmatpush1.bf16.msra.mxu0 0
        %2994 = vmatprep.subr.bf16.mxu0 0
        %2995 = vmatpush1.bf16.msra.mxu0 0
        %2996 = vmatprep.subr.bf16.mxu0 0
        %2997 = vmatpush1.bf16.msra.mxu0 0
        %2998 = vmatprep.subr.bf16.mxu0 0
        %2999 = vmatpush1.bf16.msra.mxu0 0
        %3000 = vmatprep.subr.bf16.mxu0 0
        %3001 = vmatpush1.bf16.msra.mxu0 0
        %3002 = vmatprep.subr.bf16.mxu0 0
        %3003 = vmatpush1.bf16.msra.mxu0 0
        %3004 = vmatprep.subr.bf16.mxu0 0
        %3005 = vmatpush1.bf16.msra.mxu0 0
        %3006 = vmatprep.subr.bf16.mxu0 0
        %3007 = vmatpush1.bf16.msra.mxu0 0
        %3008 = vmatprep.mubr.bf16.mxu0 0
        %3009 = vmatmul.mubr.bf16.gmra.mrb[0].mxu0 %v2774
        %v3010 = vpop.f32.mrb[0].mxu0
        %v3011 = vadd.f32 %v2962, %v3010
        %v3012 = vpop.f32.mrb[0].mxu0
        %v3013 = vpop.f32.mrb[0].mxu0
        %v3014 = vadd.f32 %v2965, %v3013
        %v3015 = vpop.f32.mrb[0].mxu0
        %3016 = vmatprep.mubr.bf16.mxu0 0
        %3017 = vmatmul.mubr.bf16.gmra.mrb[0].mxu0 %v2777
        %v3018 = vpop.f32.mrb[0].mxu0
        %v3019 = vadd.f32 %v2970, %v3018
        %v3020 = vpop.f32.mrb[0].mxu0
        %v3021 = vpop.f32.mrb[0].mxu0
        %v3022 = vadd.f32 %v2973, %v3021
        %v3023 = vpop.f32.mrb[0].mxu0
        %3024 = vdwg.mxu0
        %v3025 = vmax.f32 %v3011, 0.0
        %v3026 = vmax.f32 %v3014, 0.0
        %v3027 = vmax.f32 %v3019, 0.0
        %v3028 = vmax.f32 %v3022, 0.0
        %v3029 = vrot.slane %v3025, 1
        %v3030 = vrot.slane %v3026, 1
        %v3031 = vrot.slane %v3027, 1
        %v3032 = vrot.slane %v3028, 1
        %v3033 = vsel %vm611, %v3031, %v3032
        %v3034 = vsel %vm611, %v3030, %v3031
        %v3035 = vsel %vm611, %v3029, %v3030
        %v3036 = vsel %vm611, %v3032, %v3029
        %v3037 = vmax.f32 %v3025, %v3035
        %v3038 = vmax.f32 %v3026, %v3034
        %v3039 = vmax.f32 %v3027, %v3033
        %v3040 = vmax.f32 %v3028, %v3036
        %v3041 = vld [vmem:[%s1 + $0x380] sm:$0xf]
        %v3042 = vld [vmem:[%s1 + $0x384] sm:$0xf]
        %v3043 = vpack.c.bf16 %v3038, %v3037
        %v3044 = vpack.c.bf16 %v3040, %v3039
        %v3047 = vunpack.c.l.b16 %v3041
        %v3048 = vunpack.c.l.b16 %v3042
        %v3049 = vpack.c.b16 %v3048, %v3047
        %vm3050 = vcmask 261120
        %v3052 = vsel %vm3050, %v3049, 0
        %3054 = vmatprep.subr.bf16.mxu0 0
        %3055 = vmatpush1.bf16.msra.mxu0 %v3043
        %3056 = vmatprep.subr.bf16.mxu0 0
        %3057 = vmatpush1.bf16.msra.mxu0 %v3044
        %3058 = vmatprep.subr.bf16.mxu0 0
        %3059 = vmatpush1.bf16.msra.mxu0 0
        %3060 = vmatprep.subr.bf16.mxu0 0
        %3061 = vmatpush1.bf16.msra.mxu0 0
        %3062 = vmatprep.subr.bf16.mxu0 0
        %3063 = vmatpush1.bf16.msra.mxu0 0
        %3064 = vmatprep.subr.bf16.mxu0 0
        %3065 = vmatpush1.bf16.msra.mxu0 0
        %3066 = vmatprep.subr.bf16.mxu0 0
        %3067 = vmatpush1.bf16.msra.mxu0 0
        %3068 = vmatprep.subr.bf16.mxu0 0
        %3069 = vmatpush1.bf16.msra.mxu0 0
        %3070 = vmatprep.subr.bf16.mxu0 0
        %3071 = vmatpush1.bf16.msra.mxu0 0
        %3072 = vmatprep.subr.bf16.mxu0 0
        %3073 = vmatpush1.bf16.msra.mxu0 0
        %3074 = vmatprep.subr.bf16.mxu0 0
        %3075 = vmatpush1.bf16.msra.mxu0 0
        %3076 = vmatprep.subr.bf16.mxu0 0
        %3077 = vmatpush1.bf16.msra.mxu0 0
        %3078 = vmatprep.subr.bf16.mxu0 0
        %3079 = vmatpush1.bf16.msra.mxu0 0
        %3080 = vmatprep.subr.bf16.mxu0 0
        %3081 = vmatpush1.bf16.msra.mxu0 0
        %3082 = vmatprep.subr.bf16.mxu0 0
        %3083 = vmatpush1.bf16.msra.mxu0 0
        %3084 = vmatprep.subr.bf16.mxu0 0
        %3085 = vmatpush1.bf16.msra.mxu0 0
        %3086 = vmatprep.mubr.bf16.mxu0 0
        %3087 = vmatmul.mubr.bf16.gmra.mrb[0].mxu0 %v3052
        %v3088 = vpop.f32.mrb[0].mxu0
        %v3089 = vadd.f32 0.0, %v3088
        %v3090 = vpop.f32.mrb[0].mxu0
        %v3091 = vpop.f32.mrb[0].mxu0
        %v3092 = vadd.f32 0.0, %v3091
        %v3093 = vpop.f32.mrb[0].mxu0
        %3094 = vdwg.mxu0
        %3095 = vrot.lane.b32.xlu0 %v3089, 96
        %v3096 = vpop.permute.xlu0 %3095
        %3097 = vrot.lane.b32.xlu0 %v3092, 96
        %v3098 = vpop.permute.xlu0 %3097
        %v3099 = vmax.f32 %v3089, %v3096
        %v3100 = vmax.f32 %v3092, %v3098
        %v3101 = vrot.slane %v3099, 1
        %v3102 = vrot.slane %v3100, 1
        %v3103 = vsel %vm611, %v3101, %v3102
        %v3104 = vsel %vm611, %v3102, %v3101
        %v3105 = vrot.slane %v3099, 7
        %v3106 = vrot.slane %v3100, 7
        %v3107 = vsel %vm644, %v3105, %v3106
        %v3108 = vsel %vm644, %v3106, %v3105
        %vm3109 = vcmp.lt.s32.totalorder %v610, 0
        %v3110 = vsub.s32 0, %v610
        %v3111 = vsel %vm3109, %v3110, %v610
        %v3112 = vshrl.u32 %v3111, 1
        %v3113 = vand.u32 %v3111, 1
        %v3114 = vsub.s32 0, %v3113
        %v3115 = vsel %vm3109, %v3114, %v3113
        %vm3116 = vcmp.lt.s32.totalorder %v661, 0
        %v3117 = vsub.s32 0, %v661
        %v3118 = vsel %vm3116, %v3117, %v661
        %v3119 = vshrl.u32 %v3118, 1
        %v3120 = vand.u32 %v3118, 1
        %v3121 = vsub.s32 0, %v3120
        %v3122 = vsel %vm3116, %v3121, %v3120
        %vm3123 = vcmp.ne.s32.totalorder %v3115, 0
        %vm3124 = vcmp.ne.s32.totalorder %v3122, 0
        %vm3125 = vcmp.lt.s32.totalorder %v3115, 0
        %vm3126 = vcmp.lt.s32.totalorder %v3122, 0
        %vm3127 = vmand %vm3125, %vm3123
        %vm3128 = vmand %vm3126, %vm3124
        %v3129 = vadd.s32 %v3115, 2
        %v3130 = vadd.s32 %v3122, 2
        %v3131 = vsel %vm3127, %v3129, %v3115
        %v3132 = vsel %vm3128, %v3130, %v3122
        %vm3133 = vcmp.ne.s32.totalorder %v3131, 1
        %vm3134 = vcmp.ne.s32.totalorder %v3132, 1
        %v3135 = vsel %vm3133, %v3103, 0.0
        %v3136 = vsel %vm3134, %v3104, 0.0
        %vm3137 = vcmp.ne.s32.totalorder %v3131, 0
        %vm3138 = vcmp.ne.s32.totalorder %v3132, 0
        %v3139 = vsel %vm3137, %v3108, 0.0
        %v3140 = vsel %vm3138, %v3107, 0.0
        %v3141 = vld [vmem:[%s1 + $0x388] sm:$0xf]
        %v3142 = vld [vmem:[%s1 + $0x38c] sm:$0xf]
        %v3143 = vld [vmem:[%s1 + $0x390] sm:$0xf]
        %v3144 = vld [vmem:[%s1 + $0x394] sm:$0xf]
        %v3145 = vld [vmem:[%s1 + $0x398] sm:$0xf]
        %v3146 = vld [vmem:[%s1 + $0x39c] sm:$0xf]
        %v3147 = vld [vmem:[%s1 + $0x3a0] sm:$0xf]
        %v3148 = vld [vmem:[%s1 + $0x3a4] sm:$0xf]
        %v3149 = vld [vmem:[%s1 + $0x3a8] sm:$0xf]
        %v3150 = vld [vmem:[%s1 + $0x3ac] sm:$0xf]
        %v3151 = vld [vmem:[%s1 + $0x3b0] sm:$0xf]
        %v3152 = vld [vmem:[%s1 + $0x3b4] sm:$0xf]
        %v3153 = vld [vmem:[%s1 + $0x3b8] sm:$0xf]
        %v3154 = vld [vmem:[%s1 + $0x3bc] sm:$0xf]
        %v3155 = vld [vmem:[%s1 + $0x3c0] sm:$0xf]
        %v3156 = vld [vmem:[%s1 + $0x3c4] sm:$0xf]
        %v3157 = vld [vmem:[%s1 + $0x3c8] sm:$0xf]
        %v3158 = vld [vmem:[%s1 + $0x3cc] sm:$0xf]
        %v3159 = vld [vmem:[%s1 + $0x3d0] sm:$0xf]
        %v3160 = vld [vmem:[%s1 + $0x3d4] sm:$0xf]
        %v3161 = vld [vmem:[%s1 + $0x3d8] sm:$0xf]
        %v3162 = vld [vmem:[%s1 + $0x3dc] sm:$0xf]
        %v3163 = vld [vmem:[%s1 + $0x3e0] sm:$0xf]
        %v3164 = vld [vmem:[%s1 + $0x3e4] sm:$0xf]
        %v3165 = vld [vmem:[%s1 + $0x3e8] sm:$0xf]
        %v3166 = vld [vmem:[%s1 + $0x3ec] sm:$0xf]
        %v3167 = vld [vmem:[%s1 + $0x3f0] sm:$0xf]
        %v3168 = vld [vmem:[%s1 + $0x3f4] sm:$0xf]
        %v3169 = vld [vmem:[%s1 + $0x3f8] sm:$0xf]
        %v3170 = vld [vmem:[%s1 + $0x3fc] sm:$0xf]
        %v3171 = vld [vmem:[%s1 + $0x400] sm:$0xf]
        %v3172 = vld [vmem:[%s1 + $0x404] sm:$0xf]
        %v3173 = vld [vmem:[%s1 + $0x408] sm:$0xf]
        %v3174 = vld [vmem:[%s1 + $0x40c] sm:$0xf]
        %v3175 = vld [vmem:[%s1 + $0x410] sm:$0xf]
        %v3176 = vld [vmem:[%s1 + $0x414] sm:$0xf]
        %v3177 = vld [vmem:[%s1 + $0x418] sm:$0xf]
        %v3178 = vld [vmem:[%s1 + $0x41c] sm:$0xf]
        %v3179 = vld [vmem:[%s1 + $0x420] sm:$0xf]
        %v3180 = vld [vmem:[%s1 + $0x424] sm:$0xf]
        %v3181 = vld [vmem:[%s1 + $0x428] sm:$0xf]
        %v3182 = vld [vmem:[%s1 + $0x42c] sm:$0xf]
        %v3183 = vld [vmem:[%s1 + $0x430] sm:$0xf]
        %v3184 = vld [vmem:[%s1 + $0x434] sm:$0xf]
        %v3185 = vld [vmem:[%s1 + $0x438] sm:$0xf]
        %v3186 = vld [vmem:[%s1 + $0x43c] sm:$0xf]
        %v3187 = vld [vmem:[%s1 + $0x440] sm:$0xf]
        %v3188 = vld [vmem:[%s1 + $0x444] sm:$0xf]
        %v3189 = vpack.c.bf16 %v3140, %v3139
        %v3190 = vpack.c.bf16 %v3100, %v3099
        %v3191 = vpack.c.bf16 %v3136, %v3135
        %v3192 = vld [vmem:[%s3 + $0x5] sm:$0x1]
        %v3193 = vlaneseq
        %v3194 = vshrl.u32 %v3193, 7
        %v3195 = vsub.s32 0, %v3194
        %v3196 = vrot.slane %v3192, %v3195
        %v3245 = vunpack.c.l.b16 %v3141
        %v3246 = vunpack.c.l.b16 %v3142
        %v3247 = vunpack.c.l.b16 %v3143
        %v3248 = vunpack.c.l.b16 %v3144
        %v3249 = vunpack.c.l.b16 %v3145
        %v3250 = vunpack.c.l.b16 %v3146
        %v3251 = vunpack.c.l.b16 %v3147
        %v3252 = vunpack.c.l.b16 %v3148
        %v3253 = vunpack.c.l.b16 %v3149
        %v3254 = vunpack.c.l.b16 %v3150
        %v3255 = vunpack.c.l.b16 %v3151
        %v3256 = vunpack.c.l.b16 %v3152
        %v3257 = vunpack.c.l.b16 %v3153
        %v3258 = vunpack.c.l.b16 %v3154
        %v3259 = vunpack.c.l.b16 %v3155
        %v3260 = vunpack.c.l.b16 %v3156
        %v3261 = vunpack.c.l.b16 %v3157
        %v3262 = vunpack.c.l.b16 %v3158
        %v3263 = vunpack.c.l.b16 %v3159
        %v3264 = vunpack.c.l.b16 %v3160
        %v3265 = vunpack.c.l.b16 %v3161
        %v3266 = vunpack.c.l.b16 %v3162
        %v3267 = vunpack.c.l.b16 %v3163
        %v3268 = vunpack.c.l.b16 %v3164
        %v3269 = vunpack.c.l.b16 %v3165
        %v3270 = vunpack.c.l.b16 %v3166
        %v3271 = vunpack.c.l.b16 %v3167
        %v3272 = vunpack.c.l.b16 %v3168
        %v3273 = vunpack.c.l.b16 %v3169
        %v3274 = vunpack.c.l.b16 %v3170
        %v3275 = vunpack.c.l.b16 %v3171
        %v3276 = vunpack.c.l.b16 %v3172
        %v3277 = vunpack.c.l.b16 %v3173
        %v3278 = vunpack.c.l.b16 %v3174
        %v3279 = vunpack.c.l.b16 %v3175
        %v3280 = vunpack.c.l.b16 %v3176
        %v3281 = vunpack.c.l.b16 %v3177
        %v3282 = vunpack.c.l.b16 %v3178
        %v3283 = vunpack.c.l.b16 %v3179
        %v3284 = vunpack.c.l.b16 %v3180
        %v3285 = vunpack.c.l.b16 %v3181
        %v3286 = vunpack.c.l.b16 %v3182
        %v3287 = vunpack.c.l.b16 %v3183
        %v3288 = vunpack.c.l.b16 %v3184
        %v3289 = vunpack.c.l.b16 %v3185
        %v3290 = vunpack.c.l.b16 %v3186
        %v3291 = vunpack.c.l.b16 %v3187
        %v3292 = vunpack.c.l.b16 %v3188
        %v3293 = vpack.c.b16 %v3246, %v3245
        %v3294 = vpack.c.b16 %v3248, %v3247
        %v3295 = vpack.c.b16 %v3250, %v3249
        %v3296 = vpack.c.b16 %v3252, %v3251
        %v3297 = vpack.c.b16 %v3254, %v3253
        %v3298 = vpack.c.b16 %v3256, %v3255
        %v3299 = vpack.c.b16 %v3258, %v3257
        %v3300 = vpack.c.b16 %v3260, %v3259
        %v3301 = vpack.c.b16 %v3262, %v3261
        %v3302 = vpack.c.b16 %v3264, %v3263
        %v3303 = vpack.c.b16 %v3266, %v3265
        %v3304 = vpack.c.b16 %v3268, %v3267
        %v3305 = vpack.c.b16 %v3270, %v3269
        %v3306 = vpack.c.b16 %v3272, %v3271
        %v3307 = vpack.c.b16 %v3274, %v3273
        %v3308 = vpack.c.b16 %v3276, %v3275
        %v3309 = vpack.c.b16 %v3278, %v3277
        %v3310 = vpack.c.b16 %v3280, %v3279
        %v3311 = vpack.c.b16 %v3282, %v3281
        %v3312 = vpack.c.b16 %v3284, %v3283
        %v3313 = vpack.c.b16 %v3286, %v3285
        %v3314 = vpack.c.b16 %v3288, %v3287
        %v3315 = vpack.c.b16 %v3290, %v3289
        %v3316 = vpack.c.b16 %v3292, %v3291
        %3341 = vmatprep.subr.bf16.mxu0 0
        %3342 = vmatpush1.bf16.msra.mxu0 %v3293
        %3343 = vmatprep.subr.bf16.mxu0 0
        %3344 = vmatpush1.bf16.msra.mxu0 %v3294
        %3345 = vmatprep.subr.bf16.mxu0 0
        %3346 = vmatpush1.bf16.msra.mxu0 %v3295
        %3347 = vmatprep.subr.bf16.mxu0 0
        %3348 = vmatpush1.bf16.msra.mxu0 %v3296
        %3349 = vmatprep.subr.bf16.mxu0 0
        %3350 = vmatpush1.bf16.msra.mxu0 %v3297
        %3351 = vmatprep.subr.bf16.mxu0 0
        %3352 = vmatpush1.bf16.msra.mxu0 %v3298
        %3353 = vmatprep.subr.bf16.mxu0 0
        %3354 = vmatpush1.bf16.msra.mxu0 %v3299
        %3355 = vmatprep.subr.bf16.mxu0 0
        %3356 = vmatpush1.bf16.msra.mxu0 %v3300
        %3357 = vmatprep.subr.bf16.mxu0 0
        %3358 = vmatpush1.bf16.msra.mxu0 %v3301
        %3359 = vmatprep.subr.bf16.mxu0 0
        %3360 = vmatpush1.bf16.msra.mxu0 %v3302
        %3361 = vmatprep.subr.bf16.mxu0 0
        %3362 = vmatpush1.bf16.msra.mxu0 %v3303
        %3363 = vmatprep.subr.bf16.mxu0 0
        %3364 = vmatpush1.bf16.msra.mxu0 %v3304
        %3365 = vmatprep.subr.bf16.mxu0 0
        %3366 = vmatpush1.bf16.msra.mxu0 %v3305
        %3367 = vmatprep.subr.bf16.mxu0 0
        %3368 = vmatpush1.bf16.msra.mxu0 %v3306
        %3369 = vmatprep.subr.bf16.mxu0 0
        %3370 = vmatpush1.bf16.msra.mxu0 %v3307
        %3371 = vmatprep.subr.bf16.mxu0 0
        %3372 = vmatpush1.bf16.msra.mxu0 %v3308
        %3373 = vmatprep.mubr.bf16.mxu0 %v3190
        %3374 = vmatmul.mubr.bf16.gmra.mrb[0].mxu0 %v3189
        %v3375 = vpop.f32.mrb[0].mxu0
        %v3376 = vadd.f32 %v3196, %v3375
        %v3377 = vpop.f32.mrb[0].mxu0
        %v3378 = vpop.f32.mrb[0].mxu0
        %v3379 = vadd.f32 %v3196, %v3378
        %v3380 = vpop.f32.mrb[0].mxu0
        %3381 = vdwg.mxu0
        %3382 = vmatprep.subr.bf16.mxu0 0
        %3383 = vmatpush1.bf16.msra.mxu0 %v3309
        %3384 = vmatprep.subr.bf16.mxu0 0
        %3385 = vmatpush1.bf16.msra.mxu0 %v3310
        %3386 = vmatprep.subr.bf16.mxu0 0
        %3387 = vmatpush1.bf16.msra.mxu0 %v3311
        %3388 = vmatprep.subr.bf16.mxu0 0
        %3389 = vmatpush1.bf16.msra.mxu0 %v3312
        %3390 = vmatprep.subr.bf16.mxu0 0
        %3391 = vmatpush1.bf16.msra.mxu0 %v3313
        %3392 = vmatprep.subr.bf16.mxu0 0
        %3393 = vmatpush1.bf16.msra.mxu0 %v3314
        %3394 = vmatprep.subr.bf16.mxu0 0
        %3395 = vmatpush1.bf16.msra.mxu0 %v3315
        %3396 = vmatprep.subr.bf16.mxu0 0
        %3397 = vmatpush1.bf16.msra.mxu0 %v3316
        %3398 = vmatprep.subr.bf16.mxu0 0
        %3399 = vmatpush1.bf16.msra.mxu0 0
        %3400 = vmatprep.subr.bf16.mxu0 0
        %3401 = vmatpush1.bf16.msra.mxu0 0
        %3402 = vmatprep.subr.bf16.mxu0 0
        %3403 = vmatpush1.bf16.msra.mxu0 0
        %3404 = vmatprep.subr.bf16.mxu0 0
        %3405 = vmatpush1.bf16.msra.mxu0 0
        %3406 = vmatprep.subr.bf16.mxu0 0
        %3407 = vmatpush1.bf16.msra.mxu0 0
        %3408 = vmatprep.subr.bf16.mxu0 0
        %3409 = vmatpush1.bf16.msra.mxu0 0
        %3410 = vmatprep.subr.bf16.mxu0 0
        %3411 = vmatpush1.bf16.msra.mxu0 0
        %3412 = vmatprep.subr.bf16.mxu0 0
        %3413 = vmatpush1.bf16.msra.mxu0 0
        %3414 = vmatprep.mubr.bf16.mxu0 0
        %3415 = vmatmul.mubr.bf16.gmra.mrb[0].mxu0 %v3191
        %v3416 = vpop.f32.mrb[0].mxu0
        %v3417 = vadd.f32 %v3376, %v3416
        %v3418 = vpop.f32.mrb[0].mxu0
        %v3419 = vpop.f32.mrb[0].mxu0
        %v3420 = vadd.f32 %v3379, %v3419
        %v3421 = vpop.f32.mrb[0].mxu0
        %3422 = vdwg.mxu0
        %v3423 = vmax.f32 %v3417, 0.0
        %v3424 = vmax.f32 %v3420, 0.0
        %v3425 = vrot.slane %v3423, 1
        %v3426 = vrot.slane %v3424, 1
        %v3427 = vsel %vm611, %v3425, %v3426
        %v3428 = vsel %vm611, %v3426, %v3425
        %v3429 = vmax.f32 %v3423, %v3427
        %v3430 = vmax.f32 %v3424, %v3428
        %v3431 = vld [vmem:[%s1 + $0x448] sm:$0xf]
        %v3432 = vpack.c.bf16 %v3430, %v3429
        %vm3433 = vcmask 130048
        %v3435 = vsel %vm3433, %v3431, 0
        %3437 = vmatprep.subr.bf16.mxu0 0
        %3438 = vmatpush1.bf16.msra.mxu0 %v3432
        %3439 = vmatprep.subr.bf16.mxu0 0
        %3440 = vmatpush1.bf16.msra.mxu0 0
        %3441 = vmatprep.subr.bf16.mxu0 0
        %3442 = vmatpush1.bf16.msra.mxu0 0
        %3443 = vmatprep.subr.bf16.mxu0 0
        %3444 = vmatpush1.bf16.msra.mxu0 0
        %3445 = vmatprep.subr.bf16.mxu0 0
        %3446 = vmatpush1.bf16.msra.mxu0 0
        %3447 = vmatprep.subr.bf16.mxu0 0
        %3448 = vmatpush1.bf16.msra.mxu0 0
        %3449 = vmatprep.subr.bf16.mxu0 0
        %3450 = vmatpush1.bf16.msra.mxu0 0
        %3451 = vmatprep.subr.bf16.mxu0 0
        %3452 = vmatpush1.bf16.msra.mxu0 0
        %3453 = vmatprep.subr.bf16.mxu0 0
        %3454 = vmatpush1.bf16.msra.mxu0 0
        %3455 = vmatprep.subr.bf16.mxu0 0
        %3456 = vmatpush1.bf16.msra.mxu0 0
        %3457 = vmatprep.subr.bf16.mxu0 0
        %3458 = vmatpush1.bf16.msra.mxu0 0
        %3459 = vmatprep.subr.bf16.mxu0 0
        %3460 = vmatpush1.bf16.msra.mxu0 0
        %3461 = vmatprep.subr.bf16.mxu0 0
        %3462 = vmatpush1.bf16.msra.mxu0 0
        %3463 = vmatprep.subr.bf16.mxu0 0
        %3464 = vmatpush1.bf16.msra.mxu0 0
        %3465 = vmatprep.subr.bf16.mxu0 0
        %3466 = vmatpush1.bf16.msra.mxu0 0
        %3467 = vmatprep.subr.bf16.mxu0 0
        %3468 = vmatpush1.bf16.msra.mxu0 0
        %3469 = vmatprep.mubr.bf16.mxu0 0
        %3470 = vmatmul.mubr.bf16.gmra.mrb[0].mxu0 %v3435
        %v3471 = vpop.f32.mrb[0].mxu0
        %v3472 = vadd.f32 0.0, %v3471
        %v3473 = vpop.f32.mrb[0].mxu0
        %v3474 = vpop.f32.mrb[0].mxu0
        %v3475 = vpop.f32.mrb[0].mxu0
        %3476 = vdwg.mxu0
        %3477 = vrot.lane.b32.xlu0 %v3472, 64
        %v3478 = vpop.permute.xlu0 %3477
        %v3479 = vmax.f32 %v3472, %v3478
        %v3480 = vld [vmem:[#allocation2] sm:$0xff]
        %v3481 = vld [vmem:[#allocation2 + $0x8] sm:$0xff]
        %v3482 = vld [vmem:[#allocation2 + $0x10] sm:$0xff]
        %v3483 = vld [vmem:[#allocation2 + $0x18] sm:$0xff]
        %v3484 = vld [vmem:[#allocation2 + $0x20] sm:$0xff]
        %v3485 = vld [vmem:[#allocation2 + $0x28] sm:$0xff]
        %v3486 = vld [vmem:[#allocation2 + $0x30] sm:$0xff]
        %v3487 = vld [vmem:[#allocation2 + $0x38] sm:$0xff]
        %v3488 = vld [vmem:[#allocation2 + $0x40] sm:$0xff]
        %v3489 = vld [vmem:[#allocation2 + $0x48] sm:$0xff]
        %v3490 = vld [vmem:[#allocation2 + $0x50] sm:$0xff]
        %v3491 = vld [vmem:[#allocation2 + $0x58] sm:$0xff]
        %v3492 = vld [vmem:[#allocation2 + $0x60] sm:$0xff]
        %v3493 = vld [vmem:[#allocation2 + $0x68] sm:$0xff]
        %v3494 = vld [vmem:[#allocation2 + $0x70] sm:$0xff]
        %v3495 = vld [vmem:[#allocation2 + $0x78] sm:$0xff]
        %v3496 = vld [vmem:[#allocation2 + $0x80] sm:$0xff]
        %v3497 = vld [vmem:[#allocation2 + $0x88] sm:$0xff]
        %v3498 = vld [vmem:[#allocation2 + $0x90] sm:$0xff]
        %v3499 = vld [vmem:[#allocation2 + $0x98] sm:$0xff]
        %v3500 = vld [vmem:[#allocation2 + $0xa0] sm:$0xff]
        %v3501 = vld [vmem:[#allocation2 + $0xa8] sm:$0xff]
        %v3502 = vld [vmem:[#allocation2 + $0xb0] sm:$0xff]
        %v3503 = vld [vmem:[#allocation2 + $0xb8] sm:$0xff]
        %v3504 = vld [vmem:[#allocation2 + $0xc0] sm:$0xff]
        %v3505 = vld [vmem:[#allocation2 + $0xc8] sm:$0xff]
        %v3506 = vld [vmem:[#allocation2 + $0xd0] sm:$0xff]
        %v3507 = vld [vmem:[#allocation2 + $0xd8] sm:$0xff]
        %v3508 = vld [vmem:[#allocation2 + $0xe0] sm:$0xff]
        %v3509 = vld [vmem:[#allocation2 + $0xe8] sm:$0xff]
        %v3510 = vld [vmem:[#allocation2 + $0xf0] sm:$0xff]
        %v3511 = vld [vmem:[#allocation2 + $0xf8] sm:$0xff]
        %v3512 = vpack.c.bf16 %v3479, %v3479
        %v3513 = vld [vmem:[%s4] sm:$0xf]
        %v3515 = vlaneseq
        %v3516 = vshrl.u32 %v3515, 7
        %v3517 = vsub.s32 0, %v3516
        %v3518 = vrot.slane %v3513, %v3517
        %v3519 = vlaneseq
        %v3520 = vshrl.u32 %v3519, 7
        %v3521 = vsub.s32 1, %v3520
        %v3522 = vrot.slane %v3513, %v3521
        %v3523 = vlaneseq
        %v3524 = vshrl.u32 %v3523, 7
        %v3525 = vsub.s32 2, %v3524
        %v3526 = vrot.slane %v3513, %v3525
        %v3527 = vlaneseq
        %v3528 = vshrl.u32 %v3527, 7
        %v3529 = vsub.s32 3, %v3528
        %v3530 = vrot.slane %v3513, %v3529
        %v3567 = vunpack.c.l.b16 %v3480
        %v3568 = vunpack.c.h.b16 %v3480
        %v3569 = vunpack.c.l.b16 %v3481
        %v3570 = vunpack.c.h.b16 %v3481
        %v3571 = vunpack.c.l.b16 %v3482
        %v3572 = vunpack.c.h.b16 %v3482
        %v3573 = vunpack.c.l.b16 %v3483
        %v3574 = vunpack.c.h.b16 %v3483
        %v3575 = vunpack.c.l.b16 %v3484
        %v3576 = vunpack.c.h.b16 %v3484
        %v3577 = vunpack.c.l.b16 %v3485
        %v3578 = vunpack.c.h.b16 %v3485
        %v3579 = vunpack.c.l.b16 %v3486
        %v3580 = vunpack.c.h.b16 %v3486
        %v3581 = vunpack.c.l.b16 %v3487
        %v3582 = vunpack.c.h.b16 %v3487
        %v3583 = vunpack.c.l.b16 %v3488
        %v3584 = vunpack.c.h.b16 %v3488
        %v3585 = vunpack.c.l.b16 %v3489
        %v3586 = vunpack.c.h.b16 %v3489
        %v3587 = vunpack.c.l.b16 %v3490
        %v3588 = vunpack.c.h.b16 %v3490
        %v3589 = vunpack.c.l.b16 %v3491
        %v3590 = vunpack.c.h.b16 %v3491
        %v3591 = vunpack.c.l.b16 %v3492
        %v3592 = vunpack.c.h.b16 %v3492
        %v3593 = vunpack.c.l.b16 %v3493
        %v3594 = vunpack.c.h.b16 %v3493
        %v3595 = vunpack.c.l.b16 %v3494
        %v3596 = vunpack.c.h.b16 %v3494
        %v3597 = vunpack.c.l.b16 %v3495
        %v3598 = vunpack.c.h.b16 %v3495
        %v3599 = vunpack.c.l.b16 %v3496
        %v3600 = vunpack.c.h.b16 %v3496
        %v3601 = vunpack.c.l.b16 %v3497
        %v3602 = vunpack.c.h.b16 %v3497
        %v3603 = vunpack.c.l.b16 %v3498
        %v3604 = vunpack.c.h.b16 %v3498
        %v3605 = vunpack.c.l.b16 %v3499
        %v3606 = vunpack.c.h.b16 %v3499
        %v3607 = vunpack.c.l.b16 %v3500
        %v3608 = vunpack.c.h.b16 %v3500
        %v3609 = vunpack.c.l.b16 %v3501
        %v3610 = vunpack.c.h.b16 %v3501
        %v3611 = vunpack.c.l.b16 %v3502
        %v3612 = vunpack.c.h.b16 %v3502
        %v3613 = vunpack.c.l.b16 %v3503
        %v3614 = vunpack.c.h.b16 %v3503
        %v3615 = vunpack.c.l.b16 %v3504
        %v3616 = vunpack.c.h.b16 %v3504
        %v3617 = vunpack.c.l.b16 %v3505
        %v3618 = vunpack.c.h.b16 %v3505
        %v3619 = vunpack.c.l.b16 %v3506
        %v3620 = vunpack.c.h.b16 %v3506
        %v3621 = vunpack.c.l.b16 %v3507
        %v3622 = vunpack.c.h.b16 %v3507
        %v3623 = vunpack.c.l.b16 %v3508
        %v3624 = vunpack.c.h.b16 %v3508
        %v3625 = vunpack.c.l.b16 %v3509
        %v3626 = vunpack.c.h.b16 %v3509
        %v3627 = vunpack.c.l.b16 %v3510
        %v3628 = vunpack.c.h.b16 %v3510
        %v3629 = vunpack.c.l.b16 %v3511
        %v3630 = vunpack.c.h.b16 %v3511
        %v3631 = vpack.c.b16 %v3571, %v3567
        %v3632 = vpack.c.b16 %v3572, %v3568
        %v3633 = vpack.c.b16 %v3573, %v3569
        %v3634 = vpack.c.b16 %v3574, %v3570
        %v3635 = vpack.c.b16 %v3579, %v3575
        %v3636 = vpack.c.b16 %v3580, %v3576
        %v3637 = vpack.c.b16 %v3581, %v3577
        %v3638 = vpack.c.b16 %v3582, %v3578
        %v3639 = vpack.c.b16 %v3587, %v3583
        %v3640 = vpack.c.b16 %v3588, %v3584
        %v3641 = vpack.c.b16 %v3589, %v3585
        %v3642 = vpack.c.b16 %v3590, %v3586
        %v3643 = vpack.c.b16 %v3595, %v3591
        %v3644 = vpack.c.b16 %v3596, %v3592
        %v3645 = vpack.c.b16 %v3597, %v3593
        %v3646 = vpack.c.b16 %v3598, %v3594
        %v3647 = vpack.c.b16 %v3603, %v3599
        %v3648 = vpack.c.b16 %v3604, %v3600
        %v3649 = vpack.c.b16 %v3605, %v3601
        %v3650 = vpack.c.b16 %v3606, %v3602
        %v3651 = vpack.c.b16 %v3611, %v3607
        %v3652 = vpack.c.b16 %v3612, %v3608
        %v3653 = vpack.c.b16 %v3613, %v3609
        %v3654 = vpack.c.b16 %v3614, %v3610
        %v3655 = vpack.c.b16 %v3619, %v3615
        %v3656 = vpack.c.b16 %v3620, %v3616
        %v3657 = vpack.c.b16 %v3621, %v3617
        %v3658 = vpack.c.b16 %v3622, %v3618
        %v3659 = vpack.c.b16 %v3627, %v3623
        %v3660 = vpack.c.b16 %v3628, %v3624
        %v3661 = vpack.c.b16 %v3629, %v3625
        %v3662 = vpack.c.b16 %v3630, %v3626
        %3695 = vmatprep.subr.bf16.mxu0 %v3632
        %3696 = vmatpush1.bf16.msra.mxu0 %v3631
        %3697 = vmatprep.subr.bf16.mxu0 %v3636
        %3698 = vmatpush1.bf16.msra.mxu0 %v3635
        %3699 = vmatprep.subr.bf16.mxu0 %v3640
        %3700 = vmatpush1.bf16.msra.mxu0 %v3639
        %3701 = vmatprep.subr.bf16.mxu0 %v3644
        %3702 = vmatpush1.bf16.msra.mxu0 %v3643
        %3703 = vmatprep.subr.bf16.mxu0 %v3648
        %3704 = vmatpush1.bf16.msra.mxu0 %v3647
        %3705 = vmatprep.subr.bf16.mxu0 %v3652
        %3706 = vmatpush1.bf16.msra.mxu0 %v3651
        %3707 = vmatprep.subr.bf16.mxu0 %v3656
        %3708 = vmatpush1.bf16.msra.mxu0 %v3655
        %3709 = vmatprep.subr.bf16.mxu0 %v3660
        %3710 = vmatpush1.bf16.msra.mxu0 %v3659
        %3711 = vmatprep.subr.bf16.mxu0 0
        %3712 = vmatpush1.bf16.msra.mxu0 0
        %3713 = vmatprep.subr.bf16.mxu0 0
        %3714 = vmatpush1.bf16.msra.mxu0 0
        %3715 = vmatprep.subr.bf16.mxu0 0
        %3716 = vmatpush1.bf16.msra.mxu0 0
        %3717 = vmatprep.subr.bf16.mxu0 0
        %3718 = vmatpush1.bf16.msra.mxu0 0
        %3719 = vmatprep.subr.bf16.mxu0 0
        %3720 = vmatpush1.bf16.msra.mxu0 0
        %3721 = vmatprep.subr.bf16.mxu0 0
        %3722 = vmatpush1.bf16.msra.mxu0 0
        %3723 = vmatprep.subr.bf16.mxu0 0
        %3724 = vmatpush1.bf16.msra.mxu0 0
        %3725 = vmatprep.subr.bf16.mxu0 0
        %3726 = vmatpush1.bf16.msra.mxu0 0
        %3727 = vmatprep.mubr.bf16.mxu0 0
        %3728 = vmatmul.mubr.bf16.gmra.mrb[0].mxu0 %v3512
        %v3729 = vpop.f32.mrb[0].mxu0
        %v3730 = vadd.f32 %v3518, %v3729
        %v3731 = vpop.f32.mrb[0].mxu0
        %v3732 = vadd.f32 %v3522, %v3731
        %v3733 = vpop.f32.mrb[0].mxu0
        %v3734 = vpop.f32.mrb[0].mxu0
        %3735 = vdwg.mxu0
        %3736 = vmatprep.subr.bf16.mxu0 %v3634
        %3737 = vmatpush1.bf16.msra.mxu0 %v3633
        %3738 = vmatprep.subr.bf16.mxu0 %v3638
        %3739 = vmatpush1.bf16.msra.mxu0 %v3637
        %3740 = vmatprep.subr.bf16.mxu0 %v3642
        %3741 = vmatpush1.bf16.msra.mxu0 %v3641
        %3742 = vmatprep.subr.bf16.mxu0 %v3646
        %3743 = vmatpush1.bf16.msra.mxu0 %v3645
        %3744 = vmatprep.subr.bf16.mxu0 %v3650
        %3745 = vmatpush1.bf16.msra.mxu0 %v3649
        %3746 = vmatprep.subr.bf16.mxu0 %v3654
        %3747 = vmatpush1.bf16.msra.mxu0 %v3653
        %3748 = vmatprep.subr.bf16.mxu0 %v3658
        %3749 = vmatpush1.bf16.msra.mxu0 %v3657
        %3750 = vmatprep.subr.bf16.mxu0 %v3662
        %3751 = vmatpush1.bf16.msra.mxu0 %v3661
        %3752 = vmatprep.subr.bf16.mxu0 0
        %3753 = vmatpush1.bf16.msra.mxu0 0
        %3754 = vmatprep.subr.bf16.mxu0 0
        %3755 = vmatpush1.bf16.msra.mxu0 0
        %3756 = vmatprep.subr.bf16.mxu0 0
        %3757 = vmatpush1.bf16.msra.mxu0 0
        %3758 = vmatprep.subr.bf16.mxu0 0
        %3759 = vmatpush1.bf16.msra.mxu0 0
        %3760 = vmatprep.subr.bf16.mxu0 0
        %3761 = vmatpush1.bf16.msra.mxu0 0
        %3762 = vmatprep.subr.bf16.mxu0 0
        %3763 = vmatpush1.bf16.msra.mxu0 0
        %3764 = vmatprep.subr.bf16.mxu0 0
        %3765 = vmatpush1.bf16.msra.mxu0 0
        %3766 = vmatprep.subr.bf16.mxu0 0
        %3767 = vmatpush1.bf16.msra.mxu0 0
        %3768 = vmatprep.mubr.bf16.mxu0 0
        %3769 = vmatmul.mubr.bf16.gmra.mrb[0].mxu0 %v3512
        %v3770 = vpop.f32.mrb[0].mxu0
        %v3771 = vadd.f32 %v3526, %v3770
        %v3772 = vpop.f32.mrb[0].mxu0
        %v3773 = vadd.f32 %v3530, %v3772
        %v3774 = vpop.f32.mrb[0].mxu0
        %v3775 = vpop.f32.mrb[0].mxu0
        %3776 = vdwg.mxu0
        %v3777 = vmax.f32 %v3730, 0.0
        %v3778 = vmax.f32 %v3732, 0.0
        %v3779 = vmax.f32 %v3771, 0.0
        %v3780 = vmax.f32 %v3773, 0.0
        %v3781 = vld [vmem:[%s1 + $0x450] sm:$0xf]
        %v3782 = vld [vmem:[%s1 + $0x454] sm:$0xf]
        %v3783 = vld [vmem:[%s1 + $0x458] sm:$0xf]
        %v3784 = vld [vmem:[%s1 + $0x45c] sm:$0xf]
        %v3785 = vld [vmem:[%s1 + $0x460] sm:$0xf]
        %v3786 = vld [vmem:[%s1 + $0x464] sm:$0xf]
        %v3787 = vld [vmem:[%s1 + $0x468] sm:$0xf]
        %v3788 = vld [vmem:[%s1 + $0x46c] sm:$0xf]
        %v3789 = vld [vmem:[%s1 + $0x470] sm:$0xf]
        %v3790 = vld [vmem:[%s1 + $0x474] sm:$0xf]
        %v3791 = vld [vmem:[%s1 + $0x478] sm:$0xf]
        %v3792 = vld [vmem:[%s1 + $0x47c] sm:$0xf]
        %v3793 = vld [vmem:[%s1 + $0x480] sm:$0xf]
        %v3794 = vld [vmem:[%s1 + $0x484] sm:$0xf]
        %v3795 = vld [vmem:[%s1 + $0x488] sm:$0xf]
        %v3796 = vld [vmem:[%s1 + $0x48c] sm:$0xf]
        %v3797 = vld [vmem:[%s1 + $0x490] sm:$0xf]
        %v3798 = vld [vmem:[%s1 + $0x494] sm:$0xf]
        %v3799 = vld [vmem:[%s1 + $0x498] sm:$0xf]
        %v3800 = vld [vmem:[%s1 + $0x49c] sm:$0xf]
        %v3801 = vld [vmem:[%s1 + $0x4a0] sm:$0xf]
        %v3802 = vld [vmem:[%s1 + $0x4a4] sm:$0xf]
        %v3803 = vld [vmem:[%s1 + $0x4a8] sm:$0xf]
        %v3804 = vld [vmem:[%s1 + $0x4ac] sm:$0xf]
        %v3805 = vld [vmem:[%s1 + $0x4b0] sm:$0xf]
        %v3806 = vld [vmem:[%s1 + $0x4b4] sm:$0xf]
        %v3807 = vld [vmem:[%s1 + $0x4b8] sm:$0xf]
        %v3808 = vld [vmem:[%s1 + $0x4bc] sm:$0xf]
        %v3809 = vld [vmem:[%s1 + $0x4c0] sm:$0xf]
        %v3810 = vld [vmem:[%s1 + $0x4c4] sm:$0xf]
        %v3811 = vld [vmem:[%s1 + $0x4c8] sm:$0xf]
        %v3812 = vld [vmem:[%s1 + $0x4cc] sm:$0xf]
        %v3813 = vld [vmem:[%s1 + $0x4d0] sm:$0xf]
        %v3814 = vld [vmem:[%s1 + $0x4d4] sm:$0xf]
        %v3815 = vld [vmem:[%s1 + $0x4d8] sm:$0xf]
        %v3816 = vld [vmem:[%s1 + $0x4dc] sm:$0xf]
        %v3817 = vld [vmem:[%s1 + $0x4e0] sm:$0xf]
        %v3818 = vld [vmem:[%s1 + $0x4e4] sm:$0xf]
        %v3819 = vld [vmem:[%s1 + $0x4e8] sm:$0xf]
        %v3820 = vld [vmem:[%s1 + $0x4ec] sm:$0xf]
        %v3821 = vld [vmem:[%s1 + $0x4f0] sm:$0xf]
        %v3822 = vld [vmem:[%s1 + $0x4f4] sm:$0xf]
        %v3823 = vld [vmem:[%s1 + $0x4f8] sm:$0xf]
        %v3824 = vld [vmem:[%s1 + $0x4fc] sm:$0xf]
        %v3825 = vld [vmem:[%s1 + $0x500] sm:$0xf]
        %v3826 = vld [vmem:[%s1 + $0x504] sm:$0xf]
        %v3827 = vld [vmem:[%s1 + $0x508] sm:$0xf]
        %v3828 = vld [vmem:[%s1 + $0x50c] sm:$0xf]
        %v3829 = vld [vmem:[%s1 + $0x510] sm:$0xf]
        %v3830 = vld [vmem:[%s1 + $0x514] sm:$0xf]
        %v3831 = vld [vmem:[%s1 + $0x518] sm:$0xf]
        %v3832 = vld [vmem:[%s1 + $0x51c] sm:$0xf]
        %v3833 = vld [vmem:[%s1 + $0x520] sm:$0xf]
        %v3834 = vld [vmem:[%s1 + $0x524] sm:$0xf]
        %v3835 = vld [vmem:[%s1 + $0x528] sm:$0xf]
        %v3836 = vld [vmem:[%s1 + $0x52c] sm:$0xf]
        %v3837 = vld [vmem:[%s1 + $0x530] sm:$0xf]
        %v3838 = vld [vmem:[%s1 + $0x534] sm:$0xf]
        %v3839 = vld [vmem:[%s1 + $0x538] sm:$0xf]
        %v3840 = vld [vmem:[%s1 + $0x53c] sm:$0xf]
        %v3841 = vld [vmem:[%s1 + $0x540] sm:$0xf]
        %v3842 = vld [vmem:[%s1 + $0x544] sm:$0xf]
        %v3843 = vld [vmem:[%s1 + $0x548] sm:$0xf]
        %v3844 = vld [vmem:[%s1 + $0x54c] sm:$0xf]
        %v3845 = vpack.c.bf16 %v3777, %v3777
        %v3846 = vpack.c.bf16 %v3778, %v3778
        %v3847 = vpack.c.bf16 %v3779, %v3779
        %v3848 = vpack.c.bf16 %v3780, %v3780
        %v3849 = vld [vmem:[%s3 + $0x6] sm:$0x1]
        %v3850 = vlaneseq
        %v3851 = vshrl.u32 %v3850, 7
        %v3852 = vsub.s32 0, %v3851
        %v3853 = vrot.slane %v3849, %v3852
        %v3918 = vunpack.c.l.b16 %v3781
        %v3919 = vunpack.c.l.b16 %v3782
        %v3920 = vunpack.c.l.b16 %v3783
        %v3921 = vunpack.c.l.b16 %v3784
        %v3922 = vunpack.c.l.b16 %v3785
        %v3923 = vunpack.c.l.b16 %v3786
        %v3924 = vunpack.c.l.b16 %v3787
        %v3925 = vunpack.c.l.b16 %v3788
        %v3926 = vunpack.c.l.b16 %v3789
        %v3927 = vunpack.c.l.b16 %v3790
        %v3928 = vunpack.c.l.b16 %v3791
        %v3929 = vunpack.c.l.b16 %v3792
        %v3930 = vunpack.c.l.b16 %v3793
        %v3931 = vunpack.c.l.b16 %v3794
        %v3932 = vunpack.c.l.b16 %v3795
        %v3933 = vunpack.c.l.b16 %v3796
        %v3934 = vunpack.c.l.b16 %v3797
        %v3935 = vunpack.c.l.b16 %v3798
        %v3936 = vunpack.c.l.b16 %v3799
        %v3937 = vunpack.c.l.b16 %v3800
        %v3938 = vunpack.c.l.b16 %v3801
        %v3939 = vunpack.c.l.b16 %v3802
        %v3940 = vunpack.c.l.b16 %v3803
        %v3941 = vunpack.c.l.b16 %v3804
        %v3942 = vunpack.c.l.b16 %v3805
        %v3943 = vunpack.c.l.b16 %v3806
        %v3944 = vunpack.c.l.b16 %v3807
        %v3945 = vunpack.c.l.b16 %v3808
        %v3946 = vunpack.c.l.b16 %v3809
        %v3947 = vunpack.c.l.b16 %v3810
        %v3948 = vunpack.c.l.b16 %v3811
        %v3949 = vunpack.c.l.b16 %v3812
        %v3950 = vunpack.c.l.b16 %v3813
        %v3951 = vunpack.c.l.b16 %v3814
        %v3952 = vunpack.c.l.b16 %v3815
        %v3953 = vunpack.c.l.b16 %v3816
        %v3954 = vunpack.c.l.b16 %v3817
        %v3955 = vunpack.c.l.b16 %v3818
        %v3956 = vunpack.c.l.b16 %v3819
        %v3957 = vunpack.c.l.b16 %v3820
        %v3958 = vunpack.c.l.b16 %v3821
        %v3959 = vunpack.c.l.b16 %v3822
        %v3960 = vunpack.c.l.b16 %v3823
        %v3961 = vunpack.c.l.b16 %v3824
        %v3962 = vunpack.c.l.b16 %v3825
        %v3963 = vunpack.c.l.b16 %v3826
        %v3964 = vunpack.c.l.b16 %v3827
        %v3965 = vunpack.c.l.b16 %v3828
        %v3966 = vunpack.c.l.b16 %v3829
        %v3967 = vunpack.c.l.b16 %v3830
        %v3968 = vunpack.c.l.b16 %v3831
        %v3969 = vunpack.c.l.b16 %v3832
        %v3970 = vunpack.c.l.b16 %v3833
        %v3971 = vunpack.c.l.b16 %v3834
        %v3972 = vunpack.c.l.b16 %v3835
        %v3973 = vunpack.c.l.b16 %v3836
        %v3974 = vunpack.c.l.b16 %v3837
        %v3975 = vunpack.c.l.b16 %v3838
        %v3976 = vunpack.c.l.b16 %v3839
        %v3977 = vunpack.c.l.b16 %v3840
        %v3978 = vunpack.c.l.b16 %v3841
        %v3979 = vunpack.c.l.b16 %v3842
        %v3980 = vunpack.c.l.b16 %v3843
        %v3981 = vunpack.c.l.b16 %v3844
        %v3982 = vpack.c.b16 %v3919, %v3918
        %v3983 = vpack.c.b16 %v3921, %v3920
        %v3984 = vpack.c.b16 %v3923, %v3922
        %v3985 = vpack.c.b16 %v3925, %v3924
        %v3986 = vpack.c.b16 %v3927, %v3926
        %v3987 = vpack.c.b16 %v3929, %v3928
        %v3988 = vpack.c.b16 %v3931, %v3930
        %v3989 = vpack.c.b16 %v3933, %v3932
        %v3990 = vpack.c.b16 %v3935, %v3934
        %v3991 = vpack.c.b16 %v3937, %v3936
        %v3992 = vpack.c.b16 %v3939, %v3938
        %v3993 = vpack.c.b16 %v3941, %v3940
        %v3994 = vpack.c.b16 %v3943, %v3942
        %v3995 = vpack.c.b16 %v3945, %v3944
        %v3996 = vpack.c.b16 %v3947, %v3946
        %v3997 = vpack.c.b16 %v3949, %v3948
        %v3998 = vpack.c.b16 %v3951, %v3950
        %v3999 = vpack.c.b16 %v3953, %v3952
        %v4000 = vpack.c.b16 %v3955, %v3954
        %v4001 = vpack.c.b16 %v3957, %v3956
        %v4002 = vpack.c.b16 %v3959, %v3958
        %v4003 = vpack.c.b16 %v3961, %v3960
        %v4004 = vpack.c.b16 %v3963, %v3962
        %v4005 = vpack.c.b16 %v3965, %v3964
        %v4006 = vpack.c.b16 %v3967, %v3966
        %v4007 = vpack.c.b16 %v3969, %v3968
        %v4008 = vpack.c.b16 %v3971, %v3970
        %v4009 = vpack.c.b16 %v3973, %v3972
        %v4010 = vpack.c.b16 %v3975, %v3974
        %v4011 = vpack.c.b16 %v3977, %v3976
        %v4012 = vpack.c.b16 %v3979, %v3978
        %v4013 = vpack.c.b16 %v3981, %v3980
        %4046 = vmatprep.subr.bf16.mxu0 0
        %4047 = vmatpush1.bf16.msra.mxu0 %v3982
        %4048 = vmatprep.subr.bf16.mxu0 0
        %4049 = vmatpush1.bf16.msra.mxu0 %v3983
        %4050 = vmatprep.subr.bf16.mxu0 0
        %4051 = vmatpush1.bf16.msra.mxu0 %v3984
        %4052 = vmatprep.subr.bf16.mxu0 0
        %4053 = vmatpush1.bf16.msra.mxu0 %v3985
        %4054 = vmatprep.subr.bf16.mxu0 0
        %4055 = vmatpush1.bf16.msra.mxu0 %v3986
        %4056 = vmatprep.subr.bf16.mxu0 0
        %4057 = vmatpush1.bf16.msra.mxu0 %v3987
        %4058 = vmatprep.subr.bf16.mxu0 0
        %4059 = vmatpush1.bf16.msra.mxu0 %v3988
        %4060 = vmatprep.subr.bf16.mxu0 0
        %4061 = vmatpush1.bf16.msra.mxu0 %v3989
        %4062 = vmatprep.subr.bf16.mxu0 0
        %4063 = vmatpush1.bf16.msra.mxu0 %v3990
        %4064 = vmatprep.subr.bf16.mxu0 0
        %4065 = vmatpush1.bf16.msra.mxu0 %v3991
        %4066 = vmatprep.subr.bf16.mxu0 0
        %4067 = vmatpush1.bf16.msra.mxu0 %v3992
        %4068 = vmatprep.subr.bf16.mxu0 0
        %4069 = vmatpush1.bf16.msra.mxu0 %v3993
        %4070 = vmatprep.subr.bf16.mxu0 0
        %4071 = vmatpush1.bf16.msra.mxu0 %v3994
        %4072 = vmatprep.subr.bf16.mxu0 0
        %4073 = vmatpush1.bf16.msra.mxu0 %v3995
        %4074 = vmatprep.subr.bf16.mxu0 0
        %4075 = vmatpush1.bf16.msra.mxu0 %v3996
        %4076 = vmatprep.subr.bf16.mxu0 0
        %4077 = vmatpush1.bf16.msra.mxu0 %v3997
        %4078 = vmatprep.mubr.bf16.mxu0 %v3846
        %4079 = vmatmul.mubr.bf16.gmra.mrb[0].mxu0 %v3845
        %v4080 = vpop.f32.mrb[0].mxu0
        %v4081 = vadd.f32 %v3853, %v4080
        %v4082 = vpop.f32.mrb[0].mxu0
        %v4083 = vpop.f32.mrb[0].mxu0
        %v4084 = vpop.f32.mrb[0].mxu0
        %4085 = vdwg.mxu0
        %4086 = vmatprep.subr.bf16.mxu0 0
        %4087 = vmatpush1.bf16.msra.mxu0 %v3998
        %4088 = vmatprep.subr.bf16.mxu0 0
        %4089 = vmatpush1.bf16.msra.mxu0 %v3999
        %4090 = vmatprep.subr.bf16.mxu0 0
        %4091 = vmatpush1.bf16.msra.mxu0 %v4000
        %4092 = vmatprep.subr.bf16.mxu0 0
        %4093 = vmatpush1.bf16.msra.mxu0 %v4001
        %4094 = vmatprep.subr.bf16.mxu0 0
        %4095 = vmatpush1.bf16.msra.mxu0 %v4002
        %4096 = vmatprep.subr.bf16.mxu0 0
        %4097 = vmatpush1.bf16.msra.mxu0 %v4003
        %4098 = vmatprep.subr.bf16.mxu0 0
        %4099 = vmatpush1.bf16.msra.mxu0 %v4004
        %4100 = vmatprep.subr.bf16.mxu0 0
        %4101 = vmatpush1.bf16.msra.mxu0 %v4005
        %4102 = vmatprep.subr.bf16.mxu0 0
        %4103 = vmatpush1.bf16.msra.mxu0 %v4006
        %4104 = vmatprep.subr.bf16.mxu0 0
        %4105 = vmatpush1.bf16.msra.mxu0 %v4007
        %4106 = vmatprep.subr.bf16.mxu0 0
        %4107 = vmatpush1.bf16.msra.mxu0 %v4008
        %4108 = vmatprep.subr.bf16.mxu0 0
        %4109 = vmatpush1.bf16.msra.mxu0 %v4009
        %4110 = vmatprep.subr.bf16.mxu0 0
        %4111 = vmatpush1.bf16.msra.mxu0 %v4010
        %4112 = vmatprep.subr.bf16.mxu0 0
        %4113 = vmatpush1.bf16.msra.mxu0 %v4011
        %4114 = vmatprep.subr.bf16.mxu0 0
        %4115 = vmatpush1.bf16.msra.mxu0 %v4012
        %4116 = vmatprep.subr.bf16.mxu0 0
        %4117 = vmatpush1.bf16.msra.mxu0 %v4013
        %4118 = vmatprep.mubr.bf16.mxu0 %v3848
        %4119 = vmatmul.mubr.bf16.gmra.mrb[0].mxu0 %v3847
        %v4120 = vpop.f32.mrb[0].mxu0
        %v4121 = vadd.f32 %v4081, %v4120
        %v4122 = vpop.f32.mrb[0].mxu0
        %v4123 = vpop.f32.mrb[0].mxu0
        %v4124 = vpop.f32.mrb[0].mxu0
        %4125 = vdwg.mxu0
        %4126 = vst [vmem:[%s233] sm:$0xff] %v4121
        %s4127 = sand.u32 %s138, 1
        %s4128 = scalar_lea.sflag [#allocation4], %s4127
        %s4129 = sand.u32 %s138, 1
        %s4130 = smul.addr %s4129, 8
        %s4131 = scalar_lea.vmem [#allocation5], %s4130
        // Predicated region
        $region45: #{hcn_forward.1} parent=39 // pred_check
          %p4132 = pneg %p148
        $region46: #{hcn_forward.1} parent=39 // pred_check_branch
          %4134 = sbr.rel (%p4132) target = $region48
        $region47: #{hcn_forward.1} parent=39 // pred_region
          %s4136 = ssub.s32 128, 128
          %4137 = vsyncadd %s4128, %s4136
          %s4138 = smul.addr %s20, 128
          %s4139 = scalar_lea.hbm %s5, %s4138
          %s4141 = sshll.u32 %s4131, 4
          %s4142 = int_to_ptr.vmem [resolvable:$true] %s4141
          %4144 = dma.vmem_to_hbm [thread:$0]  %s4142, 128, %s4139, %s4128
        $region48: #{hcn_forward.1} parent=39 // pred_fallthru
          _
      $region40: #{hcn_forward.1} parent=5 // pred_fallthru
        _
      %p4145 = scmp.le.s32.totalorder 2, %s15
      // Predicated region
      $region49: #{hcn_forward.1} parent=5 // pred_check
        %p4146 = pneg %p4145
      $region50: #{hcn_forward.1} parent=5 // pred_check_branch
        %4148 = sbr.rel (%p4146) target = $region52
      $region51: #{hcn_forward.1} parent=5 // pred_region
        %s4149 = ssub.s32 %s15, 2
        // Predicated region
        $region53: #{hcn_forward.1} parent=51 // pred_check
          %p4150 = pneg %p154
        $region54: #{hcn_forward.1} parent=51 // pred_check_branch
          %4152 = sbr.rel (%p4150) target = $region56
        $region55: #{hcn_forward.1} parent=51 // pred_region
          %s4153 = sand.u32 %s139, 1
          %s4154 = scalar_lea.sflag [#allocation4], %s4153
          %s4155 = sand.u32 %s139, 1
          %s4156 = smul.addr %s4155, 8
          %s4157 = scalar_lea.vmem [#allocation5], %s4156
          %4158 = dma.done %s4154, 128
        $region56: #{hcn_forward.1} parent=51 // pred_fallthru
          _
      $region52: #{hcn_forward.1} parent=5 // pred_fallthru
        _
    $region6: #{hcn_forward.1} parent=1 // loop_footer
      %s19 = sadd.s32 1, %s15
    $region7: #{hcn_forward.1} parent=1 // loop_footer_branch
      %14 = sbr.rel target = $region3
    $region8: #{hcn_forward.1} parent=1 // loop_exit
      _
    %4159 = vsyncpa [#allocation3], 1
    %s4160 = scalar_lea.sflag [#allocation3], 1
    %4161 = vsyncpa %s4160, 1
    %4162 = vsyncpa [#allocation4], 1
    %s4163 = scalar_lea.sflag [#allocation4], 1
    %4164 = vsyncpa %s4163, 1

</llo_original>
